<compile_context>
chip_gen: v6e
topology: v6e:2x2x1
jax: 0.10.0
libtpu: 0.0.40
codegen_flags: <defaults>
</compile_context>

<pallas_src>
import jax
import jax.numpy as jnp
from jax.experimental import pallas as pl
from jax.experimental.pallas import tpu as pltpu

_PREC = jax.lax.Precision.HIGHEST   # used only by the pure-JAX reference
_MAX_UNROLL_T = 16                  # full static unroll only for short sequences


def _bigru_kernel(msk_ref, wrd_ref, pos_ref, wihw_ref, wihp_ref, bih_ref,
                  wrec_ref, bhh_ref, out_ref, hid_ref, gi_sc, h_sc):
    """Single-invocation bidirectional GRU (B_pad = batch padded to a multiple of 8).

      msk_ref : (T, B_pad, 1) f32   validity masks (0 past len / for pad rows)
      wrd_ref : (T*B_pad, We) bf16  time-major word embeddings
      pos_ref : (T*B_pad, Pe) bf16  time-major position embeddings
      wihw_ref: (We, 6H) bf16   wihp_ref: (Pe, 6H) bf16   (forward|backward gate columns)
      bih_ref : (1, 6H) f32     wrec_ref: (2H, 6H) bf16 block-diag   bhh_ref: (1, 6H) f32
      out_ref : (T, B_pad, 2H)  time-major output, [fwd | bwd] halves
      hid_ref : (2, B_pad, H)   final hidden, PyTorch layout
      gi_sc   : (T*B_pad, 6H) bf16  precomputed input projections
      h_sc    : (B_pad, 2H) f32     persistent hidden state, [fwd | bwd]
    """
    T = msk_ref.shape[0]
    B_pad = msk_ref.shape[1]
    H = wihw_ref.shape[1] // 6

    # ---- stage 1: input projection for all timesteps & both directions, hoisted out of
    # the recurrence.  Columns [0:3H] = forward gates, [3H:6H] = backward gates, PyTorch
    # gate order [r, z, n] inside each half.  Stored bf16 to halve the resident scratch.
    gi = (jnp.dot(wrd_ref[...], wihw_ref[...], preferred_element_type=jnp.float32)
          + jnp.dot(pos_ref[...], wihp_ref[...], preferred_element_type=jnp.float32)
          + bih_ref[...])
    gi_sc[...] = gi.astype(gi_sc.dtype)

    wrec = wrec_ref[...]                     # (2H, 6H) bf16 block-diag(whh_f, whh_b)
    bhh = bhh_ref[...]                       # (1, 6H) f32
    h_sc[...] = jnp.zeros_like(h_sc)         # h0 = 0 for both directions

    def step(s, tb, m_f, m_b):
        """One recurrence step: forward handles t = s, backward handles t = tb = T-1-s."""
        rf = s * B_pad
        rb = tb * B_pad
        if not isinstance(rf, int):          # dynamic (pl.loop) path: alignment hints
            rf = pl.multiple_of(rf, B_pad)
            rb = pl.multiple_of(rb, B_pad)

        h_prev = h_sc[...]                   # (B_pad, 2H) f32, persistent across steps
        hf = h_prev[:, 0:H]
        hb = h_prev[:, H:2 * H]

        # one fused recurrent matmul for both directions (block-diagonal weights)
        # TODO(synk): for H >= 128 split into two (B,H)@(H,3H) matmuls (block-diag wastes
        #             half the MXU work once 2H/6H exceed a single MXU tile).
        gh = jnp.dot(h_prev.astype(wrec.dtype), wrec,
                     preferred_element_type=jnp.float32) + bhh       # (B_pad, 6H) f32

        gi_f = gi_sc[pl.ds(rf, B_pad), :]    # (B_pad, 6H) bf16 (promotes to f32 on add)
        gi_b = gi_sc[pl.ds(rb, B_pad), :]

        # forward direction (time index s)
        r_f = jax.nn.sigmoid(gi_f[:, 0:H] + gh[:, 0:H])
        z_f = jax.nn.sigmoid(gi_f[:, H:2 * H] + gh[:, H:2 * H])
        n_f = jnp.tanh(gi_f[:, 2 * H:3 * H] + r_f * gh[:, 2 * H:3 * H])
        hf_new = (1.0 - z_f) * n_f + z_f * hf
        o_f = m_f * hf_new                               # zero output past len
        h_sc[:, 0:H] = o_f + (1.0 - m_f) * hf            # freeze hidden past len

        # backward direction (time index tb = T-1-s)
        r_b = jax.nn.sigmoid(gi_b[:, 3 * H:4 * H] + gh[:, 3 * H:4 * H])
        z_b = jax.nn.sigmoid(gi_b[:, 4 * H:5 * H] + gh[:, 4 * H:5 * H])
        n_b = jnp.tanh(gi_b[:, 5 * H:6 * H] + r_b * gh[:, 5 * H:6 * H])
        hb_new = (1.0 - z_b) * n_b + z_b * hb
        o_b = m_b * hb_new
        h_sc[:, H:2 * H] = o_b + (1.0 - m_b) * hb

        # full-sublane (1, B_pad, H) stores into the time-major, VMEM-resident output
        out_ref[pl.ds(s, 1), :, 0:H] = o_f[None].astype(out_ref.dtype)
        out_ref[pl.ds(tb, 1), :, H:2 * H] = o_b[None].astype(out_ref.dtype)

    if T <= _MAX_UNROLL_T:
        # short sequences: full static unroll -> every slice / store is static
        for s in range(T):
            tb = T - 1 - s
            step(s, tb, msk_ref[s], msk_ref[tb])
    else:
        # long sequences: bounded live ranges via an in-kernel loop
        @pl.loop(0, T)
        def _(s):
            tb = (T - 1) - s
            step(s, tb, msk_ref[s], msk_ref[tb])

    # final hiddens, written once (PyTorch layout (num_directions, B, H))
    h_fin = h_sc[...]
    hid_ref[0:1, :, :] = h_fin[:, 0:H][None].astype(hid_ref.dtype)
    hid_ref[1:2, :, :] = h_fin[:, H:2 * H][None].astype(hid_ref.dtype)


def pack_gru_params(params, word_embedding_size):
    """Pack raw GRU parameters ONCE (outside the per-call forward path)."""
    We = word_embedding_size
    H = params["whh_f"].shape[0]

    wih = jnp.concatenate([params["wih_f"], params["wih_b"]], axis=1)       # (D, 6H)
    w_rec = jnp.zeros((2 * H, 6 * H), jnp.float32)
    w_rec = w_rec.at[:H, :3 * H].set(params["whh_f"])
    w_rec = w_rec.at[H:, 3 * H:].set(params["whh_b"])

    return {
        "wih_word": wih[:We].astype(jnp.bfloat16),                          # (We, 6H)
        "wih_pos":  wih[We:].astype(jnp.bfloat16),                          # (Pe, 6H)
        "bih": jnp.concatenate([params["bih_f"], params["bih_b"]], axis=1).astype(jnp.float32),
        "w_rec": w_rec.astype(jnp.bfloat16),                                # (2H, 6H)
        "bhh": jnp.concatenate([params["bhh_f"], params["bhh_b"]], axis=1).astype(jnp.float32),
    }


def _vmem_limit_bytes(raw_bytes):
    """Generation-aware VMEM budget: ~75% of physical cap, with a comfortable floor."""
    try:
        cap = int(pltpu.get_tpu_info().vmem_capacity_bytes)
    except Exception:
        cap = 64 * 1024 * 1024          # conservative fallback (v7x physical VMEM)
    return int(min(int(0.75 * cap), max(8 * 1024 * 1024, 4 * raw_bytes)))


def position_encoder_forward(word, position, len_x, packed, mode="labeled",
                             out_dtype=jnp.float32):
    """Forward pass of PositionEncoder (eval semantics: dropout is identity).

    `packed` comes from pack_gru_params().  `out_dtype=jnp.bfloat16` halves the output
    VMEM/HBM traffic if downstream consumers accept it.
    """
    B, T, _ = word.shape
    H = packed["w_rec"].shape[0] // 2
    B_pad = ((B + 7) // 8) * 8            # sublane-align the batch

    def prep(e):                          # (B, T, E) -> time-major, batch-padded bf16
        e = jnp.transpose(e, (1, 0, 2))
        if B_pad != B:
            e = jnp.pad(e, ((0, 0), (0, B_pad - B), (0, 0)))
        return e.reshape(T * B_pad, e.shape[-1]).astype(jnp.bfloat16)

    wrd_tm = prep(word)
    pos_tm = prep(position)

    # per-(t, b) validity masks; pad rows get 0 so they stay zero / frozen in the kernel
    lens = len_x.astype(jnp.int32).reshape(B)
    m_tab = (jnp.arange(T, dtype=jnp.int32)[:, None] < lens[None, :]).astype(jnp.float32)
    if B_pad != B:
        m_tab = jnp.pad(m_tab, ((0, 0), (0, B_pad - B)))
    m_tab = m_tab[:, :, None]                                   # (T, B_pad, 1)

    raw_bytes = ((wrd_tm.size + pos_tm.size + packed["wih_word"].size
                  + packed["wih_pos"].size + packed["w_rec"].size) * 2
                 + (packed["bih"].size + packed["bhh"].size + m_tab.size) * 4
                 + T * B_pad * 6 * H * 2                        # gi scratch (bf16)
                 + (T * B_pad * 2 * H + 2 * B_pad * H + B_pad * 2 * H) * 4)

    vmem_spec = pl.BlockSpec(memory_space=pltpu.MemorySpace.VMEM)

    out_tm, hid = pl.pallas_call(
        _bigru_kernel,
        out_shape=(
            jax.ShapeDtypeStruct((T, B_pad, 2 * H), out_dtype),   # time-major uni_out
            jax.ShapeDtypeStruct((2, B_pad, H), jnp.float32),     # uni_hidden
        ),
        in_specs=[vmem_spec] * 8,
        out_specs=(vmem_spec, vmem_spec),
        scratch_shapes=[
            pltpu.VMEM((T * B_pad, 6 * H), jnp.bfloat16),   # gi: precomputed projections
            pltpu.VMEM((B_pad, 2 * H), jnp.float32),        # persistent hidden state
        ],
        compiler_params=pltpu.CompilerParams(
            vmem_limit_bytes=_vmem_limit_bytes(raw_bytes)),
    )(m_tab, wrd_tm, pos_tm, packed["wih_word"], packed["wih_pos"],
      packed["bih"], packed["w_rec"], packed["bhh"])

    uni_out = jnp.transpose(out_tm[:, :B, :], (1, 0, 2))    # (B, T, 2H), batch_first
    uni_hidden = hid[:, :B, :]                              # (2, B, H)

    # Dropout(p=drop_lab / drop_unlab) is identity in eval/inference; `mode` only selects
    # which (identity) dropout would apply.
    # TODO(synk): training-mode stochastic dropout not implemented (eval semantics only).
    # TODO(synk): on v7x the two directions could be split across the two TensorCores
    #             (leading "parallel" grid axis of size 2 with direction-stacked weights);
    #             the fused single-core recurrence is kept since it is optimal on v5e/v6e.
    return uni_out, uni_hidden


# ---------------- pure-JAX reference (f32, HIGHEST precision) ----------------
def _gru_ref(x_bt, lens, params):
    B, T, D = x_bt.shape
    H = params["whh_f"].shape[0]

    def cell(x_t, h, wih, whh, bih, bhh):
        gi = jnp.dot(x_t, wih, precision=_PREC) + bih
        gh = jnp.dot(h, whh, precision=_PREC) + bhh
        r = jax.nn.sigmoid(gi[:, :H] + gh[:, :H])
        z = jax.nn.sigmoid(gi[:, H:2 * H] + gh[:, H:2 * H])
        n = jnp.tanh(gi[:, 2 * H:] + r * gh[:, 2 * H:])
        return (1.0 - z) * n + z * h

    xt = jnp.transpose(x_bt, (1, 0, 2))                                    # (T, B, D)
    mT = (jnp.arange(T)[:, None, None] < lens[None, :, None]).astype(jnp.float32)

    def fstep(h, inp):
        x_t, m = inp
        h_new = cell(x_t, h, params["wih_f"], params["whh_f"], params["bih_f"], params["bhh_f"])
        return m * h_new + (1.0 - m) * h, m * h_new

    hf, outf = jax.lax.scan(fstep, jnp.zeros((B, H), jnp.float32), (xt, mT))

    def bstep(h, inp):
        x_t, m = inp
        h_new = cell(x_t, h, params["wih_b"], params["whh_b"], params["bih_b"], params["bhh_b"])
        return m * h_new + (1.0 - m) * h, m * h_new

    hb, outb_rev = jax.lax.scan(bstep, jnp.zeros((B, H), jnp.float32), (xt[::-1], mT[::-1]))
    outb = outb_rev[::-1]

    out = jnp.concatenate([outf, outb], axis=-1)                           # (T, B, 2H)
    return jnp.transpose(out, (1, 0, 2)), jnp.stack([hf, hb], axis=0)


if __name__ == "__main__":
    key = jax.random.PRNGKey(0)
    B, T = 2, 8
    WORD_E, POS_E, H = 24, 8, 32          # word_embedding_size, position_embedding_size, encoder_hidden_size
    D = WORD_E + POS_E

    keys = jax.random.split(key, 10)
    bound = float(1.0 / (H ** 0.5))       # PyTorch nn.GRU init: U(-1/sqrt(H), 1/sqrt(H))

    def u(kk, shape):
        return jax.random.uniform(kk, shape, jnp.float32, -bound, bound)

    params = {
        "wih_f": u(keys[0], (D, 3 * H)), "whh_f": u(keys[1], (H, 3 * H)),
        "bih_f": u(keys[2], (1, 3 * H)), "bhh_f": u(keys[3], (1, 3 * H)),
        "wih_b": u(keys[4], (D, 3 * H)), "whh_b": u(keys[5], (H, 3 * H)),
        "bih_b": u(keys[6], (1, 3 * H)), "bhh_b": u(keys[7], (1, 3 * H)),
    }

    word = jax.random.normal(keys[8], (B, T, WORD_E), jnp.float32)
    position = jax.random.normal(keys[9], (B, T, POS_E), jnp.float32)
    len_x = jnp.array([T, 5], jnp.int32)

    packed = pack_gru_params(params, WORD_E)   # packed once, outside the forward path

    uni_out, uni_hidden = position_encoder_forward(word, position, len_x, packed, mode="labeled")
    jax.block_until_ready((uni_out, uni_hidden))

    assert uni_out.shape == (B, T, 2 * H)
    assert uni_hidden.shape == (2, B, H)

    x = jnp.concatenate([word, position], axis=-1)
    ref_out, ref_hidden = _gru_ref(x, len_x, params)
    # kernel uses bf16 matmuls / bf16 gi storage (f32 accumulation & f32 hidden carry);
    # compare to the f32 reference loosely
    assert jnp.allclose(uni_out, ref_out, atol=5e-2), "output mismatch vs reference"
    assert jnp.allclose(uni_hidden, ref_hidden, atol=5e-2), "hidden mismatch vs reference"

    print("KERNEL_OK")
</pallas_src>

<mosaic_0001>
module attributes {stable_mosaic.version = 11 : i64} {
  func.func @_bigru_kernel(%arg0: memref<8x8x1xf32, #tpu.memory_space<vmem>>, %arg1: memref<64x24xbf16, #tpu.memory_space<vmem>>, %arg2: memref<64x8xbf16, #tpu.memory_space<vmem>>, %arg3: memref<24x192xbf16, #tpu.memory_space<vmem>>, %arg4: memref<8x192xbf16, #tpu.memory_space<vmem>>, %arg5: memref<1x192xf32, #tpu.memory_space<vmem>>, %arg6: memref<64x192xbf16, #tpu.memory_space<vmem>>, %arg7: memref<1x192xf32, #tpu.memory_space<vmem>>, %arg8: memref<8x8x64xf32, #tpu.memory_space<vmem>>, %arg9: memref<2x8x32xf32, #tpu.memory_space<vmem>>, %arg10: memref<64x192xbf16, #tpu.memory_space<vmem>>, %arg11: memref<8x64xf32, #tpu.memory_space<vmem>>) attributes {dimension_semantics = [], scalar_prefetch = 0 : i64, scratch_operands = 2 : i64, tpu.core_type = #tpu.core_type<tc>} {
    %c0 = arith.constant 0 : index
    %c0_0 = arith.constant 0 : index
    %0 = vector.load %arg1[%c0, %c0_0] : memref<64x24xbf16, #tpu.memory_space<vmem>>, vector<64x24xbf16>
    %c0_1 = arith.constant 0 : index
    %c0_2 = arith.constant 0 : index
    %1 = vector.load %arg3[%c0_1, %c0_2] : memref<24x192xbf16, #tpu.memory_space<vmem>>, vector<24x192xbf16>
    %cst = arith.constant dense<0.000000e+00> : vector<64x192xf32>
    %2 = tpu.matmul %0, %1, %cst {dimension_numbers = #tpu.dot_dimension_numbers<[1], [0], [0], [1], [0, 0, 1, 1], [], []>} : vector<64x24xbf16>, vector<24x192xbf16>, vector<64x192xf32> -> vector<64x192xf32>
    %c0_3 = arith.constant 0 : index
    %c0_4 = arith.constant 0 : index
    %3 = vector.load %arg2[%c0_3, %c0_4] : memref<64x8xbf16, #tpu.memory_space<vmem>>, vector<64x8xbf16>
    %c0_5 = arith.constant 0 : index
    %c0_6 = arith.constant 0 : index
    %4 = vector.load %arg4[%c0_5, %c0_6] : memref<8x192xbf16, #tpu.memory_space<vmem>>, vector<8x192xbf16>
    %cst_7 = arith.constant dense<0.000000e+00> : vector<64x192xf32>
    %5 = tpu.matmul %3, %4, %cst_7 {dimension_numbers = #tpu.dot_dimension_numbers<[1], [0], [0], [1], [0, 0, 1, 1], [], []>} : vector<64x8xbf16>, vector<8x192xbf16>, vector<64x192xf32> -> vector<64x192xf32>
    %6 = arith.addf %2, %5 : vector<64x192xf32>
    %c0_8 = arith.constant 0 : index
    %c0_9 = arith.constant 0 : index
    %7 = vector.load %arg5[%c0_8, %c0_9] : memref<1x192xf32, #tpu.memory_space<vmem>>, vector<1x192xf32>
    %8 = vector.broadcast %7 : vector<1x192xf32> to vector<64x192xf32>
    %9 = arith.addf %6, %8 : vector<64x192xf32>
    %10 = arith.truncf %9 : vector<64x192xf32> to vector<64x192xbf16>
    %c0_10 = arith.constant 0 : index
    %c0_11 = arith.constant 0 : index
    %11 = vector.load %arg10[%c0_10, %c0_11] : memref<64x192xbf16, #tpu.memory_space<vmem>>, vector<64x192xbf16>
    tpu.vector_store %arg10[%c0_10, %c0_11], %10 {strides = array<i32>} : memref<64x192xbf16, #tpu.memory_space<vmem>>, vector<64x192xbf16>,
    %c0_12 = arith.constant 0 : index
    %c0_13 = arith.constant 0 : index
    %12 = vector.load %arg6[%c0_12, %c0_13] : memref<64x192xbf16, #tpu.memory_space<vmem>>, vector<64x192xbf16>
    %c0_14 = arith.constant 0 : index
    %c0_15 = arith.constant 0 : index
    %13 = vector.load %arg7[%c0_14, %c0_15] : memref<1x192xf32, #tpu.memory_space<vmem>>, vector<1x192xf32>
    %cst_16 = arith.constant 0.000000e+00 : f32
    %14 = vector.broadcast %cst_16 : f32 to vector<8x64xf32>
    %c0_17 = arith.constant 0 : index
    %c0_18 = arith.constant 0 : index
    %15 = vector.load %arg11[%c0_17, %c0_18] : memref<8x64xf32, #tpu.memory_space<vmem>>, vector<8x64xf32>
    tpu.vector_store %arg11[%c0_17, %c0_18], %14 {strides = array<i32>} : memref<8x64xf32, #tpu.memory_space<vmem>>, vector<8x64xf32>,
    %c0_19 = arith.constant 0 : index
    %c0_20 = arith.constant 0 : index
    %c0_21 = arith.constant 0 : index
    %16 = vector.load %arg0[%c0_19, %c0_20, %c0_21] : memref<8x8x1xf32, #tpu.memory_space<vmem>>, vector<1x8x1xf32>
    %17 = vector.shape_cast %16 : vector<1x8x1xf32> to vector<8x1xf32>
    %c7 = arith.constant 7 : index
    %c0_22 = arith.constant 0 : index
    %c0_23 = arith.constant 0 : index
    %18 = vector.load %arg0[%c7, %c0_22, %c0_23] : memref<8x8x1xf32, #tpu.memory_space<vmem>>, vector<1x8x1xf32>
    %19 = vector.shape_cast %18 : vector<1x8x1xf32> to vector<8x1xf32>
    %c0_24 = arith.constant 0 : index
    %c0_25 = arith.constant 0 : index
    %20 = vector.load %arg11[%c0_24, %c0_25] : memref<8x64xf32, #tpu.memory_space<vmem>>, vector<8x64xf32>
    %21 = vector.extract_strided_slice %20 {offsets = [0, 0], sizes = [8, 32], strides = [1, 1]} : vector<8x64xf32> to vector<8x32xf32>
    %22 = vector.extract_strided_slice %20 {offsets = [0, 32], sizes = [8, 32], strides = [1, 1]} : vector<8x64xf32> to vector<8x32xf32>
    %23 = arith.truncf %20 : vector<8x64xf32> to vector<8x64xbf16>
    %cst_26 = arith.constant dense<0.000000e+00> : vector<8x192xf32>
    %24 = tpu.matmul %23, %12, %cst_26 {dimension_numbers = #tpu.dot_dimension_numbers<[1], [0], [0], [1], [0, 0, 1, 1], [], []>} : vector<8x64xbf16>, vector<64x192xbf16>, vector<8x192xf32> -> vector<8x192xf32>
    %25 = vector.broadcast %13 : vector<1x192xf32> to vector<8x192xf32>
    %26 = arith.addf %24, %25 : vector<8x192xf32>
    %c0_27 = arith.constant 0 : index
    %c0_28 = arith.constant 0 : index
    %27 = vector.load %arg10[%c0_27, %c0_28] : memref<64x192xbf16, #tpu.memory_space<vmem>>, vector<8x192xbf16>
    %c56 = arith.constant 56 : index
    %c0_29 = arith.constant 0 : index
    %28 = vector.load %arg10[%c56, %c0_29] : memref<64x192xbf16, #tpu.memory_space<vmem>>, vector<8x192xbf16>
    %29 = vector.extract_strided_slice %27 {offsets = [0, 0], sizes = [8, 32], strides = [1, 1]} : vector<8x192xbf16> to vector<8x32xbf16>
    %30 = vector.extract_strided_slice %26 {offsets = [0, 0], sizes = [8, 32], strides = [1, 1]} : vector<8x192xf32> to vector<8x32xf32>
    %31 = arith.extf %29 : vector<8x32xbf16> to vector<8x32xf32>
    %32 = arith.addf %31, %30 : vector<8x32xf32>
    %33 = arith.negf %32 : vector<8x32xf32>
    %34 = math.exp %33 : vector<8x32xf32>
    %cst_30 = arith.constant 1.000000e+00 : f32
    %35 = vector.broadcast %cst_30 : f32 to vector<8x32xf32>
    %36 = arith.addf %35, %34 : vector<8x32xf32>
    %37 = arith.divf %35, %36 : vector<8x32xf32>
    %38 = vector.extract_strided_slice %27 {offsets = [0, 32], sizes = [8, 32], strides = [1, 1]} : vector<8x192xbf16> to vector<8x32xbf16>
    %39 = vector.extract_strided_slice %26 {offsets = [0, 32], sizes = [8, 32], strides = [1, 1]} : vector<8x192xf32> to vector<8x32xf32>
    %40 = arith.extf %38 : vector<8x32xbf16> to vector<8x32xf32>
    %41 = arith.addf %40, %39 : vector<8x32xf32>
    %42 = arith.negf %41 : vector<8x32xf32>
    %43 = math.exp %42 : vector<8x32xf32>
    %cst_31 = arith.constant 1.000000e+00 : f32
    %44 = vector.broadcast %cst_31 : f32 to vector<8x32xf32>
    %45 = arith.addf %44, %43 : vector<8x32xf32>
    %46 = arith.divf %44, %45 : vector<8x32xf32>
    %47 = vector.extract_strided_slice %27 {offsets = [0, 64], sizes = [8, 32], strides = [1, 1]} : vector<8x192xbf16> to vector<8x32xbf16>
    %48 = vector.extract_strided_slice %26 {offsets = [0, 64], sizes = [8, 32], strides = [1, 1]} : vector<8x192xf32> to vector<8x32xf32>
    %49 = arith.mulf %37, %48 : vector<8x32xf32>
    %50 = arith.extf %47 : vector<8x32xbf16> to vector<8x32xf32>
    %51 = arith.addf %50, %49 : vector<8x32xf32>
    %52 = math.tanh %51 : vector<8x32xf32>
    %cst_32 = arith.constant 1.000000e+00 : f32
    %53 = vector.broadcast %cst_32 : f32 to vector<8x32xf32>
    %54 = arith.subf %53, %46 : vector<8x32xf32>
    %55 = arith.mulf %54, %52 : vector<8x32xf32>
    %56 = arith.mulf %46, %21 : vector<8x32xf32>
    %57 = arith.addf %55, %56 : vector<8x32xf32>
    %58 = vector.broadcast %17 : vector<8x1xf32> to vector<8x32xf32>
    %59 = arith.mulf %58, %57 : vector<8x32xf32>
    %cst_33 = arith.constant 1.000000e+00 : f32
    %60 = vector.broadcast %cst_33 : f32 to vector<8x1xf32>
    %61 = arith.subf %60, %17 : vector<8x1xf32>
    %62 = vector.broadcast %61 : vector<8x1xf32> to vector<8x32xf32>
    %63 = arith.mulf %62, %21 : vector<8x32xf32>
    %64 = arith.addf %59, %63 : vector<8x32xf32>
    %c0_34 = arith.constant 0 : index
    %c0_35 = arith.constant 0 : index
    %65 = vector.load %arg11[%c0_34, %c0_35] : memref<8x64xf32, #tpu.memory_space<vmem>>, vector<8x32xf32>
    tpu.vector_store %arg11[%c0_34, %c0_35], %64 {strides = array<i32>} : memref<8x64xf32, #tpu.memory_space<vmem>>, vector<8x32xf32>,
    %66 = vector.extract_strided_slice %28 {offsets = [0, 96], sizes = [8, 32], strides = [1, 1]} : vector<8x192xbf16> to vector<8x32xbf16>
    %67 = vector.extract_strided_slice %26 {offsets = [0, 96], sizes = [8, 32], strides = [1, 1]} : vector<8x192xf32> to vector<8x32xf32>
    %68 = arith.extf %66 : vector<8x32xbf16> to vector<8x32xf32>
    %69 = arith.addf %68, %67 : vector<8x32xf32>
    %70 = arith.negf %69 : vector<8x32xf32>
    %71 = math.exp %70 : vector<8x32xf32>
    %cst_36 = arith.constant 1.000000e+00 : f32
    %72 = vector.broadcast %cst_36 : f32 to vector<8x32xf32>
    %73 = arith.addf %72, %71 : vector<8x32xf32>
    %74 = arith.divf %72, %73 : vector<8x32xf32>
    %75 = vector.extract_strided_slice %28 {offsets = [0, 128], sizes = [8, 32], strides = [1, 1]} : vector<8x192xbf16> to vector<8x32xbf16>
    %76 = vector.extract_strided_slice %26 {offsets = [0, 128], sizes = [8, 32], strides = [1, 1]} : vector<8x192xf32> to vector<8x32xf32>
    %77 = arith.extf %75 : vector<8x32xbf16> to vector<8x32xf32>
    %78 = arith.addf %77, %76 : vector<8x32xf32>
    %79 = arith.negf %78 : vector<8x32xf32>
    %80 = math.exp %79 : vector<8x32xf32>
    %cst_37 = arith.constant 1.000000e+00 : f32
    %81 = vector.broadcast %cst_37 : f32 to vector<8x32xf32>
    %82 = arith.addf %81, %80 : vector<8x32xf32>
    %83 = arith.divf %81, %82 : vector<8x32xf32>
    %84 = vector.extract_strided_slice %28 {offsets = [0, 160], sizes = [8, 32], strides = [1, 1]} : vector<8x192xbf16> to vector<8x32xbf16>
    %85 = vector.extract_strided_slice %26 {offsets = [0, 160], sizes = [8, 32], strides = [1, 1]} : vector<8x192xf32> to vector<8x32xf32>
    %86 = arith.mulf %74, %85 : vector<8x32xf32>
    %87 = arith.extf %84 : vector<8x32xbf16> to vector<8x32xf32>
    %88 = arith.addf %87, %86 : vector<8x32xf32>
    %89 = math.tanh %88 : vector<8x32xf32>
    %cst_38 = arith.constant 1.000000e+00 : f32
    %90 = vector.broadcast %cst_38 : f32 to vector<8x32xf32>
    %91 = arith.subf %90, %83 : vector<8x32xf32>
    %92 = arith.mulf %91, %89 : vector<8x32xf32>
    %93 = arith.mulf %83, %22 : vector<8x32xf32>
    %94 = arith.addf %92, %93 : vector<8x32xf32>
    %95 = vector.broadcast %19 : vector<8x1xf32> to vector<8x32xf32>
    %96 = arith.mulf %95, %94 : vector<8x32xf32>
    %cst_39 = arith.constant 1.000000e+00 : f32
    %97 = vector.broadcast %cst_39 : f32 to vector<8x1xf32>
    %98 = arith.subf %97, %19 : vector<8x1xf32>
    %99 = vector.broadcast %98 : vector<8x1xf32> to vector<8x32xf32>
    %100 = arith.mulf %99, %22 : vector<8x32xf32>
    %101 = arith.addf %96, %100 : vector<8x32xf32>
    %c0_40 = arith.constant 0 : index
    %c32 = arith.constant 32 : index
    %102 = vector.load %arg11[%c0_40, %c32] : memref<8x64xf32, #tpu.memory_space<vmem>>, vector<8x32xf32>
    tpu.vector_store %arg11[%c0_40, %c32], %101 {strides = array<i32>} : memref<8x64xf32, #tpu.memory_space<vmem>>, vector<8x32xf32>,
    %103 = vector.shape_cast %59 : vector<8x32xf32> to vector<1x8x32xf32>
    %c0_41 = arith.constant 0 : index
    %c0_42 = arith.constant 0 : index
    %c0_43 = arith.constant 0 : index
    %104 = vector.load %arg8[%c0_41, %c0_42, %c0_43] : memref<8x8x64xf32, #tpu.memory_space<vmem>>, vector<1x8x32xf32>
    tpu.vector_store %arg8[%c0_41, %c0_42, %c0_43], %103 {strides = array<i32>} : memref<8x8x64xf32, #tpu.memory_space<vmem>>, vector<1x8x32xf32>,
    %105 = vector.shape_cast %96 : vector<8x32xf32> to vector<1x8x32xf32>
    %c7_44 = arith.constant 7 : index
    %c0_45 = arith.constant 0 : index
    %c32_46 = arith.constant 32 : index
    %106 = vector.load %arg8[%c7_44, %c0_45, %c32_46] : memref<8x8x64xf32, #tpu.memory_space<vmem>>, vector<1x8x32xf32>
    tpu.vector_store %arg8[%c7_44, %c0_45, %c32_46], %105 {strides = array<i32>} : memref<8x8x64xf32, #tpu.memory_space<vmem>>, vector<1x8x32xf32>,
    %c1 = arith.constant 1 : index
    %c0_47 = arith.constant 0 : index
    %c0_48 = arith.constant 0 : index
    %107 = vector.load %arg0[%c1, %c0_47, %c0_48] : memref<8x8x1xf32, #tpu.memory_space<vmem>>, vector<1x8x1xf32>
    %108 = vector.shape_cast %107 : vector<1x8x1xf32> to vector<8x1xf32>
    %c6 = arith.constant 6 : index
    %c0_49 = arith.constant 0 : index
    %c0_50 = arith.constant 0 : index
    %109 = vector.load %arg0[%c6, %c0_49, %c0_50] : memref<8x8x1xf32, #tpu.memory_space<vmem>>, vector<1x8x1xf32>
    %110 = vector.shape_cast %109 : vector<1x8x1xf32> to vector<8x1xf32>
    %c0_51 = arith.constant 0 : index
    %c0_52 = arith.constant 0 : index
    %111 = vector.load %arg11[%c0_51, %c0_52] : memref<8x64xf32, #tpu.memory_space<vmem>>, vector<8x64xf32>
    %112 = vector.extract_strided_slice %111 {offsets = [0, 0], sizes = [8, 32], strides = [1, 1]} : vector<8x64xf32> to vector<8x32xf32>
    %113 = vector.extract_strided_slice %111 {offsets = [0, 32], sizes = [8, 32], strides = [1, 1]} : vector<8x64xf32> to vector<8x32xf32>
    %114 = arith.truncf %111 : vector<8x64xf32> to vector<8x64xbf16>
    %cst_53 = arith.constant dense<0.000000e+00> : vector<8x192xf32>
    %115 = tpu.matmul %114, %12, %cst_53 {dimension_numbers = #tpu.dot_dimension_numbers<[1], [0], [0], [1], [0, 0, 1, 1], [], []>} : vector<8x64xbf16>, vector<64x192xbf16>, vector<8x192xf32> -> vector<8x192xf32>
    %116 = vector.broadcast %13 : vector<1x192xf32> to vector<8x192xf32>
    %117 = arith.addf %115, %116 : vector<8x192xf32>
    %c8 = arith.constant 8 : index
    %c0_54 = arith.constant 0 : index
    %118 = vector.load %arg10[%c8, %c0_54] : memref<64x192xbf16, #tpu.memory_space<vmem>>, vector<8x192xbf16>
    %c48 = arith.constant 48 : index
    %c0_55 = arith.constant 0 : index
    %119 = vector.load %arg10[%c48, %c0_55] : memref<64x192xbf16, #tpu.memory_space<vmem>>, vector<8x192xbf16>
    %120 = vector.extract_strided_slice %118 {offsets = [0, 0], sizes = [8, 32], strides = [1, 1]} : vector<8x192xbf16> to vector<8x32xbf16>
    %121 = vector.extract_strided_slice %117 {offsets = [0, 0], sizes = [8, 32], strides = [1, 1]} : vector<8x192xf32> to vector<8x32xf32>
    %122 = arith.extf %120 : vector<8x32xbf16> to vector<8x32xf32>
    %123 = arith.addf %122, %121 : vector<8x32xf32>
    %124 = arith.negf %123 : vector<8x32xf32>
    %125 = math.exp %124 : vector<8x32xf32>
    %cst_56 = arith.constant 1.000000e+00 : f32
    %126 = vector.broadcast %cst_56 : f32 to vector<8x32xf32>
    %127 = arith.addf %126, %125 : vector<8x32xf32>
    %128 = arith.divf %126, %127 : vector<8x32xf32>
    %129 = vector.extract_strided_slice %118 {offsets = [0, 32], sizes = [8, 32], strides = [1, 1]} : vector<8x192xbf16> to vector<8x32xbf16>
    %130 = vector.extract_strided_slice %117 {offsets = [0, 32], sizes = [8, 32], strides = [1, 1]} : vector<8x192xf32> to vector<8x32xf32>
    %131 = arith.extf %129 : vector<8x32xbf16> to vector<8x32xf32>
    %132 = arith.addf %131, %130 : vector<8x32xf32>
    %133 = arith.negf %132 : vector<8x32xf32>
    %134 = math.exp %133 : vector<8x32xf32>
    %cst_57 = arith.constant 1.000000e+00 : f32
    %135 = vector.broadcast %cst_57 : f32 to vector<8x32xf32>
    %136 = arith.addf %135, %134 : vector<8x32xf32>
    %137 = arith.divf %135, %136 : vector<8x32xf32>
    %138 = vector.extract_strided_slice %118 {offsets = [0, 64], sizes = [8, 32], strides = [1, 1]} : vector<8x192xbf16> to vector<8x32xbf16>
    %139 = vector.extract_strided_slice %117 {offsets = [0, 64], sizes = [8, 32], strides = [1, 1]} : vector<8x192xf32> to vector<8x32xf32>
    %140 = arith.mulf %128, %139 : vector<8x32xf32>
    %141 = arith.extf %138 : vector<8x32xbf16> to vector<8x32xf32>
    %142 = arith.addf %141, %140 : vector<8x32xf32>
    %143 = math.tanh %142 : vector<8x32xf32>
    %cst_58 = arith.constant 1.000000e+00 : f32
    %144 = vector.broadcast %cst_58 : f32 to vector<8x32xf32>
    %145 = arith.subf %144, %137 : vector<8x32xf32>
    %146 = arith.mulf %145, %143 : vector<8x32xf32>
    %147 = arith.mulf %137, %112 : vector<8x32xf32>
    %148 = arith.addf %146, %147 : vector<8x32xf32>
    %149 = vector.broadcast %108 : vector<8x1xf32> to vector<8x32xf32>
    %150 = arith.mulf %149, %148 : vector<8x32xf32>
    %cst_59 = arith.constant 1.000000e+00 : f32
    %151 = vector.broadcast %cst_59 : f32 to vector<8x1xf32>
    %152 = arith.subf %151, %108 : vector<8x1xf32>
    %153 = vector.broadcast %152 : vector<8x1xf32> to vector<8x32xf32>
    %154 = arith.mulf %153, %112 : vector<8x32xf32>
    %155 = arith.addf %150, %154 : vector<8x32xf32>
    %c0_60 = arith.constant 0 : index
    %c0_61 = arith.constant 0 : index
    %156 = vector.load %arg11[%c0_60, %c0_61] : memref<8x64xf32, #tpu.memory_space<vmem>>, vector<8x32xf32>
    tpu.vector_store %arg11[%c0_60, %c0_61], %155 {strides = array<i32>} : memref<8x64xf32, #tpu.memory_space<vmem>>, vector<8x32xf32>,
    %157 = vector.extract_strided_slice %119 {offsets = [0, 96], sizes = [8, 32], strides = [1, 1]} : vector<8x192xbf16> to vector<8x32xbf16>
    %158 = vector.extract_strided_slice %117 {offsets = [0, 96], sizes = [8, 32], strides = [1, 1]} : vector<8x192xf32> to vector<8x32xf32>
    %159 = arith.extf %157 : vector<8x32xbf16> to vector<8x32xf32>
    %160 = arith.addf %159, %158 : vector<8x32xf32>
    %161 = arith.negf %160 : vector<8x32xf32>
    %162 = math.exp %161 : vector<8x32xf32>
    %cst_62 = arith.constant 1.000000e+00 : f32
    %163 = vector.broadcast %cst_62 : f32 to vector<8x32xf32>
    %164 = arith.addf %163, %162 : vector<8x32xf32>
    %165 = arith.divf %163, %164 : vector<8x32xf32>
    %166 = vector.extract_strided_slice %119 {offsets = [0, 128], sizes = [8, 32], strides = [1, 1]} : vector<8x192xbf16> to vector<8x32xbf16>
    %167 = vector.extract_strided_slice %117 {offsets = [0, 128], sizes = [8, 32], strides = [1, 1]} : vector<8x192xf32> to vector<8x32xf32>
    %168 = arith.extf %166 : vector<8x32xbf16> to vector<8x32xf32>
    %169 = arith.addf %168, %167 : vector<8x32xf32>
    %170 = arith.negf %169 : vector<8x32xf32>
    %171 = math.exp %170 : vector<8x32xf32>
    %cst_63 = arith.constant 1.000000e+00 : f32
    %172 = vector.broadcast %cst_63 : f32 to vector<8x32xf32>
    %173 = arith.addf %172, %171 : vector<8x32xf32>
    %174 = arith.divf %172, %173 : vector<8x32xf32>
    %175 = vector.extract_strided_slice %119 {offsets = [0, 160], sizes = [8, 32], strides = [1, 1]} : vector<8x192xbf16> to vector<8x32xbf16>
    %176 = vector.extract_strided_slice %117 {offsets = [0, 160], sizes = [8, 32], strides = [1, 1]} : vector<8x192xf32> to vector<8x32xf32>
    %177 = arith.mulf %165, %176 : vector<8x32xf32>
    %178 = arith.extf %175 : vector<8x32xbf16> to vector<8x32xf32>
    %179 = arith.addf %178, %177 : vector<8x32xf32>
    %180 = math.tanh %179 : vector<8x32xf32>
    %cst_64 = arith.constant 1.000000e+00 : f32
    %181 = vector.broadcast %cst_64 : f32 to vector<8x32xf32>
    %182 = arith.subf %181, %174 : vector<8x32xf32>
    %183 = arith.mulf %182, %180 : vector<8x32xf32>
    %184 = arith.mulf %174, %113 : vector<8x32xf32>
    %185 = arith.addf %183, %184 : vector<8x32xf32>
    %186 = vector.broadcast %110 : vector<8x1xf32> to vector<8x32xf32>
    %187 = arith.mulf %186, %185 : vector<8x32xf32>
    %cst_65 = arith.constant 1.000000e+00 : f32
    %188 = vector.broadcast %cst_65 : f32 to vector<8x1xf32>
    %189 = arith.subf %188, %110 : vector<8x1xf32>
    %190 = vector.broadcast %189 : vector<8x1xf32> to vector<8x32xf32>
    %191 = arith.mulf %190, %113 : vector<8x32xf32>
    %192 = arith.addf %187, %191 : vector<8x32xf32>
    %c0_66 = arith.constant 0 : index
    %c32_67 = arith.constant 32 : index
    %193 = vector.load %arg11[%c0_66, %c32_67] : memref<8x64xf32, #tpu.memory_space<vmem>>, vector<8x32xf32>
    tpu.vector_store %arg11[%c0_66, %c32_67], %192 {strides = array<i32>} : memref<8x64xf32, #tpu.memory_space<vmem>>, vector<8x32xf32>,
    %194 = vector.shape_cast %150 : vector<8x32xf32> to vector<1x8x32xf32>
    %c1_68 = arith.constant 1 : index
    %c0_69 = arith.constant 0 : index
    %c0_70 = arith.constant 0 : index
    %195 = vector.load %arg8[%c1_68, %c0_69, %c0_70] : memref<8x8x64xf32, #tpu.memory_space<vmem>>, vector<1x8x32xf32>
    tpu.vector_store %arg8[%c1_68, %c0_69, %c0_70], %194 {strides = array<i32>} : memref<8x8x64xf32, #tpu.memory_space<vmem>>, vector<1x8x32xf32>,
    %196 = vector.shape_cast %187 : vector<8x32xf32> to vector<1x8x32xf32>
    %c6_71 = arith.constant 6 : index
    %c0_72 = arith.constant 0 : index
    %c32_73 = arith.constant 32 : index
    %197 = vector.load %arg8[%c6_71, %c0_72, %c32_73] : memref<8x8x64xf32, #tpu.memory_space<vmem>>, vector<1x8x32xf32>
    tpu.vector_store %arg8[%c6_71, %c0_72, %c32_73], %196 {strides = array<i32>} : memref<8x8x64xf32, #tpu.memory_space<vmem>>, vector<1x8x32xf32>,
    %c2 = arith.constant 2 : index
    %c0_74 = arith.constant 0 : index
    %c0_75 = arith.constant 0 : index
    %198 = vector.load %arg0[%c2, %c0_74, %c0_75] : memref<8x8x1xf32, #tpu.memory_space<vmem>>, vector<1x8x1xf32>
    %199 = vector.shape_cast %198 : vector<1x8x1xf32> to vector<8x1xf32>
    %c5 = arith.constant 5 : index
    %c0_76 = arith.constant 0 : index
    %c0_77 = arith.constant 0 : index
    %200 = vector.load %arg0[%c5, %c0_76, %c0_77] : memref<8x8x1xf32, #tpu.memory_space<vmem>>, vector<1x8x1xf32>
    %201 = vector.shape_cast %200 : vector<1x8x1xf32> to vector<8x1xf32>
    %c0_78 = arith.constant 0 : index
    %c0_79 = arith.constant 0 : index
    %202 = vector.load %arg11[%c0_78, %c0_79] : memref<8x64xf32, #tpu.memory_space<vmem>>, vector<8x64xf32>
    %203 = vector.extract_strided_slice %202 {offsets = [0, 0], sizes = [8, 32], strides = [1, 1]} : vector<8x64xf32> to vector<8x32xf32>
    %204 = vector.extract_strided_slice %202 {offsets = [0, 32], sizes = [8, 32], strides = [1, 1]} : vector<8x64xf32> to vector<8x32xf32>
    %205 = arith.truncf %202 : vector<8x64xf32> to vector<8x64xbf16>
    %cst_80 = arith.constant dense<0.000000e+00> : vector<8x192xf32>
    %206 = tpu.matmul %205, %12, %cst_80 {dimension_numbers = #tpu.dot_dimension_numbers<[1], [0], [0], [1], [0, 0, 1, 1], [], []>} : vector<8x64xbf16>, vector<64x192xbf16>, vector<8x192xf32> -> vector<8x192xf32>
    %207 = vector.broadcast %13 : vector<1x192xf32> to vector<8x192xf32>
    %208 = arith.addf %206, %207 : vector<8x192xf32>
    %c16 = arith.constant 16 : index
    %c0_81 = arith.constant 0 : index
    %209 = vector.load %arg10[%c16, %c0_81] : memref<64x192xbf16, #tpu.memory_space<vmem>>, vector<8x192xbf16>
    %c40 = arith.constant 40 : index
    %c0_82 = arith.constant 0 : index
    %210 = vector.load %arg10[%c40, %c0_82] : memref<64x192xbf16, #tpu.memory_space<vmem>>, vector<8x192xbf16>
    %211 = vector.extract_strided_slice %209 {offsets = [0, 0], sizes = [8, 32], strides = [1, 1]} : vector<8x192xbf16> to vector<8x32xbf16>
    %212 = vector.extract_strided_slice %208 {offsets = [0, 0], sizes = [8, 32], strides = [1, 1]} : vector<8x192xf32> to vector<8x32xf32>
    %213 = arith.extf %211 : vector<8x32xbf16> to vector<8x32xf32>
    %214 = arith.addf %213, %212 : vector<8x32xf32>
    %215 = arith.negf %214 : vector<8x32xf32>
    %216 = math.exp %215 : vector<8x32xf32>
    %cst_83 = arith.constant 1.000000e+00 : f32
    %217 = vector.broadcast %cst_83 : f32 to vector<8x32xf32>
    %218 = arith.addf %217, %216 : vector<8x32xf32>
    %219 = arith.divf %217, %218 : vector<8x32xf32>
    %220 = vector.extract_strided_slice %209 {offsets = [0, 32], sizes = [8, 32], strides = [1, 1]} : vector<8x192xbf16> to vector<8x32xbf16>
    %221 = vector.extract_strided_slice %208 {offsets = [0, 32], sizes = [8, 32], strides = [1, 1]} : vector<8x192xf32> to vector<8x32xf32>
    %222 = arith.extf %220 : vector<8x32xbf16> to vector<8x32xf32>
    %223 = arith.addf %222, %221 : vector<8x32xf32>
    %224 = arith.negf %223 : vector<8x32xf32>
    %225 = math.exp %224 : vector<8x32xf32>
    %cst_84 = arith.constant 1.000000e+00 : f32
    %226 = vector.broadcast %cst_84 : f32 to vector<8x32xf32>
    %227 = arith.addf %226, %225 : vector<8x32xf32>
    %228 = arith.divf %226, %227 : vector<8x32xf32>
    %229 = vector.extract_strided_slice %209 {offsets = [0, 64], sizes = [8, 32], strides = [1, 1]} : vector<8x192xbf16> to vector<8x32xbf16>
    %230 = vector.extract_strided_slice %208 {offsets = [0, 64], sizes = [8, 32], strides = [1, 1]} : vector<8x192xf32> to vector<8x32xf32>
    %231 = arith.mulf %219, %230 : vector<8x32xf32>
    %232 = arith.extf %229 : vector<8x32xbf16> to vector<8x32xf32>
    %233 = arith.addf %232, %231 : vector<8x32xf32>
    %234 = math.tanh %233 : vector<8x32xf32>
    %cst_85 = arith.constant 1.000000e+00 : f32
    %235 = vector.broadcast %cst_85 : f32 to vector<8x32xf32>
    %236 = arith.subf %235, %228 : vector<8x32xf32>
    %237 = arith.mulf %236, %234 : vector<8x32xf32>
    %238 = arith.mulf %228, %203 : vector<8x32xf32>
    %239 = arith.addf %237, %238 : vector<8x32xf32>
    %240 = vector.broadcast %199 : vector<8x1xf32> to vector<8x32xf32>
    %241 = arith.mulf %240, %239 : vector<8x32xf32>
    %cst_86 = arith.constant 1.000000e+00 : f32
    %242 = vector.broadcast %cst_86 : f32 to vector<8x1xf32>
    %243 = arith.subf %242, %199 : vector<8x1xf32>
    %244 = vector.broadcast %243 : vector<8x1xf32> to vector<8x32xf32>
    %245 = arith.mulf %244, %203 : vector<8x32xf32>
    %246 = arith.addf %241, %245 : vector<8x32xf32>
    %c0_87 = arith.constant 0 : index
    %c0_88 = arith.constant 0 : index
    %247 = vector.load %arg11[%c0_87, %c0_88] : memref<8x64xf32, #tpu.memory_space<vmem>>, vector<8x32xf32>
    tpu.vector_store %arg11[%c0_87, %c0_88], %246 {strides = array<i32>} : memref<8x64xf32, #tpu.memory_space<vmem>>, vector<8x32xf32>,
    %248 = vector.extract_strided_slice %210 {offsets = [0, 96], sizes = [8, 32], strides = [1, 1]} : vector<8x192xbf16> to vector<8x32xbf16>
    %249 = vector.extract_strided_slice %208 {offsets = [0, 96], sizes = [8, 32], strides = [1, 1]} : vector<8x192xf32> to vector<8x32xf32>
    %250 = arith.extf %248 : vector<8x32xbf16> to vector<8x32xf32>
    %251 = arith.addf %250, %249 : vector<8x32xf32>
    %252 = arith.negf %251 : vector<8x32xf32>
    %253 = math.exp %252 : vector<8x32xf32>
    %cst_89 = arith.constant 1.000000e+00 : f32
    %254 = vector.broadcast %cst_89 : f32 to vector<8x32xf32>
    %255 = arith.addf %254, %253 : vector<8x32xf32>
    %256 = arith.divf %254, %255 : vector<8x32xf32>
    %257 = vector.extract_strided_slice %210 {offsets = [0, 128], sizes = [8, 32], strides = [1, 1]} : vector<8x192xbf16> to vector<8x32xbf16>
    %258 = vector.extract_strided_slice %208 {offsets = [0, 128], sizes = [8, 32], strides = [1, 1]} : vector<8x192xf32> to vector<8x32xf32>
    %259 = arith.extf %257 : vector<8x32xbf16> to vector<8x32xf32>
    %260 = arith.addf %259, %258 : vector<8x32xf32>
    %261 = arith.negf %260 : vector<8x32xf32>
    %262 = math.exp %261 : vector<8x32xf32>
    %cst_90 = arith.constant 1.000000e+00 : f32
    %263 = vector.broadcast %cst_90 : f32 to vector<8x32xf32>
    %264 = arith.addf %263, %262 : vector<8x32xf32>
    %265 = arith.divf %263, %264 : vector<8x32xf32>
    %266 = vector.extract_strided_slice %210 {offsets = [0, 160], sizes = [8, 32], strides = [1, 1]} : vector<8x192xbf16> to vector<8x32xbf16>
    %267 = vector.extract_strided_slice %208 {offsets = [0, 160], sizes = [8, 32], strides = [1, 1]} : vector<8x192xf32> to vector<8x32xf32>
    %268 = arith.mulf %256, %267 : vector<8x32xf32>
    %269 = arith.extf %266 : vector<8x32xbf16> to vector<8x32xf32>
    %270 = arith.addf %269, %268 : vector<8x32xf32>
    %271 = math.tanh %270 : vector<8x32xf32>
    %cst_91 = arith.constant 1.000000e+00 : f32
    %272 = vector.broadcast %cst_91 : f32 to vector<8x32xf32>
    %273 = arith.subf %272, %265 : vector<8x32xf32>
    %274 = arith.mulf %273, %271 : vector<8x32xf32>
    %275 = arith.mulf %265, %204 : vector<8x32xf32>
    %276 = arith.addf %274, %275 : vector<8x32xf32>
    %277 = vector.broadcast %201 : vector<8x1xf32> to vector<8x32xf32>
    %278 = arith.mulf %277, %276 : vector<8x32xf32>
    %cst_92 = arith.constant 1.000000e+00 : f32
    %279 = vector.broadcast %cst_92 : f32 to vector<8x1xf32>
    %280 = arith.subf %279, %201 : vector<8x1xf32>
    %281 = vector.broadcast %280 : vector<8x1xf32> to vector<8x32xf32>
    %282 = arith.mulf %281, %204 : vector<8x32xf32>
    %283 = arith.addf %278, %282 : vector<8x32xf32>
    %c0_93 = arith.constant 0 : index
    %c32_94 = arith.constant 32 : index
    %284 = vector.load %arg11[%c0_93, %c32_94] : memref<8x64xf32, #tpu.memory_space<vmem>>, vector<8x32xf32>
    tpu.vector_store %arg11[%c0_93, %c32_94], %283 {strides = array<i32>} : memref<8x64xf32, #tpu.memory_space<vmem>>, vector<8x32xf32>,
    %285 = vector.shape_cast %241 : vector<8x32xf32> to vector<1x8x32xf32>
    %c2_95 = arith.constant 2 : index
    %c0_96 = arith.constant 0 : index
    %c0_97 = arith.constant 0 : index
    %286 = vector.load %arg8[%c2_95, %c0_96, %c0_97] : memref<8x8x64xf32, #tpu.memory_space<vmem>>, vector<1x8x32xf32>
    tpu.vector_store %arg8[%c2_95, %c0_96, %c0_97], %285 {strides = array<i32>} : memref<8x8x64xf32, #tpu.memory_space<vmem>>, vector<1x8x32xf32>,
    %287 = vector.shape_cast %278 : vector<8x32xf32> to vector<1x8x32xf32>
    %c5_98 = arith.constant 5 : index
    %c0_99 = arith.constant 0 : index
    %c32_100 = arith.constant 32 : index
    %288 = vector.load %arg8[%c5_98, %c0_99, %c32_100] : memref<8x8x64xf32, #tpu.memory_space<vmem>>, vector<1x8x32xf32>
    tpu.vector_store %arg8[%c5_98, %c0_99, %c32_100], %287 {strides = array<i32>} : memref<8x8x64xf32, #tpu.memory_space<vmem>>, vector<1x8x32xf32>,
    %c3 = arith.constant 3 : index
    %c0_101 = arith.constant 0 : index
    %c0_102 = arith.constant 0 : index
    %289 = vector.load %arg0[%c3, %c0_101, %c0_102] : memref<8x8x1xf32, #tpu.memory_space<vmem>>, vector<1x8x1xf32>
    %290 = vector.shape_cast %289 : vector<1x8x1xf32> to vector<8x1xf32>
    %c4 = arith.constant 4 : index
    %c0_103 = arith.constant 0 : index
    %c0_104 = arith.constant 0 : index
    %291 = vector.load %arg0[%c4, %c0_103, %c0_104] : memref<8x8x1xf32, #tpu.memory_space<vmem>>, vector<1x8x1xf32>
    %292 = vector.shape_cast %291 : vector<1x8x1xf32> to vector<8x1xf32>
    %c0_105 = arith.constant 0 : index
    %c0_106 = arith.constant 0 : index
    %293 = vector.load %arg11[%c0_105, %c0_106] : memref<8x64xf32, #tpu.memory_space<vmem>>, vector<8x64xf32>
    %294 = vector.extract_strided_slice %293 {offsets = [0, 0], sizes = [8, 32], strides = [1, 1]} : vector<8x64xf32> to vector<8x32xf32>
    %295 = vector.extract_strided_slice %293 {offsets = [0, 32], sizes = [8, 32], strides = [1, 1]} : vector<8x64xf32> to vector<8x32xf32>
    %296 = arith.truncf %293 : vector<8x64xf32> to vector<8x64xbf16>
    %cst_107 = arith.constant dense<0.000000e+00> : vector<8x192xf32>
    %297 = tpu.matmul %296, %12, %cst_107 {dimension_numbers = #tpu.dot_dimension_numbers<[1], [0], [0], [1], [0, 0, 1, 1], [], []>} : vector<8x64xbf16>, vector<64x192xbf16>, vector<8x192xf32> -> vector<8x192xf32>
    %298 = vector.broadcast %13 : vector<1x192xf32> to vector<8x192xf32>
    %299 = arith.addf %297, %298 : vector<8x192xf32>
    %c24 = arith.constant 24 : index
    %c0_108 = arith.constant 0 : index
    %300 = vector.load %arg10[%c24, %c0_108] : memref<64x192xbf16, #tpu.memory_space<vmem>>, vector<8x192xbf16>
    %c32_109 = arith.constant 32 : index
    %c0_110 = arith.constant 0 : index
    %301 = vector.load %arg10[%c32_109, %c0_110] : memref<64x192xbf16, #tpu.memory_space<vmem>>, vector<8x192xbf16>
    %302 = vector.extract_strided_slice %300 {offsets = [0, 0], sizes = [8, 32], strides = [1, 1]} : vector<8x192xbf16> to vector<8x32xbf16>
    %303 = vector.extract_strided_slice %299 {offsets = [0, 0], sizes = [8, 32], strides = [1, 1]} : vector<8x192xf32> to vector<8x32xf32>
    %304 = arith.extf %302 : vector<8x32xbf16> to vector<8x32xf32>
    %305 = arith.addf %304, %303 : vector<8x32xf32>
    %306 = arith.negf %305 : vector<8x32xf32>
    %307 = math.exp %306 : vector<8x32xf32>
    %cst_111 = arith.constant 1.000000e+00 : f32
    %308 = vector.broadcast %cst_111 : f32 to vector<8x32xf32>
    %309 = arith.addf %308, %307 : vector<8x32xf32>
    %310 = arith.divf %308, %309 : vector<8x32xf32>
    %311 = vector.extract_strided_slice %300 {offsets = [0, 32], sizes = [8, 32], strides = [1, 1]} : vector<8x192xbf16> to vector<8x32xbf16>
    %312 = vector.extract_strided_slice %299 {offsets = [0, 32], sizes = [8, 32], strides = [1, 1]} : vector<8x192xf32> to vector<8x32xf32>
    %313 = arith.extf %311 : vector<8x32xbf16> to vector<8x32xf32>
    %314 = arith.addf %313, %312 : vector<8x32xf32>
    %315 = arith.negf %314 : vector<8x32xf32>
    %316 = math.exp %315 : vector<8x32xf32>
    %cst_112 = arith.constant 1.000000e+00 : f32
    %317 = vector.broadcast %cst_112 : f32 to vector<8x32xf32>
    %318 = arith.addf %317, %316 : vector<8x32xf32>
    %319 = arith.divf %317, %318 : vector<8x32xf32>
    %320 = vector.extract_strided_slice %300 {offsets = [0, 64], sizes = [8, 32], strides = [1, 1]} : vector<8x192xbf16> to vector<8x32xbf16>
    %321 = vector.extract_strided_slice %299 {offsets = [0, 64], sizes = [8, 32], strides = [1, 1]} : vector<8x192xf32> to vector<8x32xf32>
    %322 = arith.mulf %310, %321 : vector<8x32xf32>
    %323 = arith.extf %320 : vector<8x32xbf16> to vector<8x32xf32>
    %324 = arith.addf %323, %322 : vector<8x32xf32>
    %325 = math.tanh %324 : vector<8x32xf32>
    %cst_113 = arith.constant 1.000000e+00 : f32
    %326 = vector.broadcast %cst_113 : f32 to vector<8x32xf32>
    %327 = arith.subf %326, %319 : vector<8x32xf32>
    %328 = arith.mulf %327, %325 : vector<8x32xf32>
    %329 = arith.mulf %319, %294 : vector<8x32xf32>
    %330 = arith.addf %328, %329 : vector<8x32xf32>
    %331 = vector.broadcast %290 : vector<8x1xf32> to vector<8x32xf32>
    %332 = arith.mulf %331, %330 : vector<8x32xf32>
    %cst_114 = arith.constant 1.000000e+00 : f32
    %333 = vector.broadcast %cst_114 : f32 to vector<8x1xf32>
    %334 = arith.subf %333, %290 : vector<8x1xf32>
    %335 = vector.broadcast %334 : vector<8x1xf32> to vector<8x32xf32>
    %336 = arith.mulf %335, %294 : vector<8x32xf32>
    %337 = arith.addf %332, %336 : vector<8x32xf32>
    %c0_115 = arith.constant 0 : index
    %c0_116 = arith.constant 0 : index
    %338 = vector.load %arg11[%c0_115, %c0_116] : memref<8x64xf32, #tpu.memory_space<vmem>>, vector<8x32xf32>
    tpu.vector_store %arg11[%c0_115, %c0_116], %337 {strides = array<i32>} : memref<8x64xf32, #tpu.memory_space<vmem>>, vector<8x32xf32>,
    %339 = vector.extract_strided_slice %301 {offsets = [0, 96], sizes = [8, 32], strides = [1, 1]} : vector<8x192xbf16> to vector<8x32xbf16>
    %340 = vector.extract_strided_slice %299 {offsets = [0, 96], sizes = [8, 32], strides = [1, 1]} : vector<8x192xf32> to vector<8x32xf32>
    %341 = arith.extf %339 : vector<8x32xbf16> to vector<8x32xf32>
    %342 = arith.addf %341, %340 : vector<8x32xf32>
    %343 = arith.negf %342 : vector<8x32xf32>
    %344 = math.exp %343 : vector<8x32xf32>
    %cst_117 = arith.constant 1.000000e+00 : f32
    %345 = vector.broadcast %cst_117 : f32 to vector<8x32xf32>
    %346 = arith.addf %345, %344 : vector<8x32xf32>
    %347 = arith.divf %345, %346 : vector<8x32xf32>
    %348 = vector.extract_strided_slice %301 {offsets = [0, 128], sizes = [8, 32], strides = [1, 1]} : vector<8x192xbf16> to vector<8x32xbf16>
    %349 = vector.extract_strided_slice %299 {offsets = [0, 128], sizes = [8, 32], strides = [1, 1]} : vector<8x192xf32> to vector<8x32xf32>
    %350 = arith.extf %348 : vector<8x32xbf16> to vector<8x32xf32>
    %351 = arith.addf %350, %349 : vector<8x32xf32>
    %352 = arith.negf %351 : vector<8x32xf32>
    %353 = math.exp %352 : vector<8x32xf32>
    %cst_118 = arith.constant 1.000000e+00 : f32
    %354 = vector.broadcast %cst_118 : f32 to vector<8x32xf32>
    %355 = arith.addf %354, %353 : vector<8x32xf32>
    %356 = arith.divf %354, %355 : vector<8x32xf32>
    %357 = vector.extract_strided_slice %301 {offsets = [0, 160], sizes = [8, 32], strides = [1, 1]} : vector<8x192xbf16> to vector<8x32xbf16>
    %358 = vector.extract_strided_slice %299 {offsets = [0, 160], sizes = [8, 32], strides = [1, 1]} : vector<8x192xf32> to vector<8x32xf32>
    %359 = arith.mulf %347, %358 : vector<8x32xf32>
    %360 = arith.extf %357 : vector<8x32xbf16> to vector<8x32xf32>
    %361 = arith.addf %360, %359 : vector<8x32xf32>
    %362 = math.tanh %361 : vector<8x32xf32>
    %cst_119 = arith.constant 1.000000e+00 : f32
    %363 = vector.broadcast %cst_119 : f32 to vector<8x32xf32>
    %364 = arith.subf %363, %356 : vector<8x32xf32>
    %365 = arith.mulf %364, %362 : vector<8x32xf32>
    %366 = arith.mulf %356, %295 : vector<8x32xf32>
    %367 = arith.addf %365, %366 : vector<8x32xf32>
    %368 = vector.broadcast %292 : vector<8x1xf32> to vector<8x32xf32>
    %369 = arith.mulf %368, %367 : vector<8x32xf32>
    %cst_120 = arith.constant 1.000000e+00 : f32
    %370 = vector.broadcast %cst_120 : f32 to vector<8x1xf32>
    %371 = arith.subf %370, %292 : vector<8x1xf32>
    %372 = vector.broadcast %371 : vector<8x1xf32> to vector<8x32xf32>
    %373 = arith.mulf %372, %295 : vector<8x32xf32>
    %374 = arith.addf %369, %373 : vector<8x32xf32>
    %c0_121 = arith.constant 0 : index
    %c32_122 = arith.constant 32 : index
    %375 = vector.load %arg11[%c0_121, %c32_122] : memref<8x64xf32, #tpu.memory_space<vmem>>, vector<8x32xf32>
    tpu.vector_store %arg11[%c0_121, %c32_122], %374 {strides = array<i32>} : memref<8x64xf32, #tpu.memory_space<vmem>>, vector<8x32xf32>,
    %376 = vector.shape_cast %332 : vector<8x32xf32> to vector<1x8x32xf32>
    %c3_123 = arith.constant 3 : index
    %c0_124 = arith.constant 0 : index
    %c0_125 = arith.constant 0 : index
    %377 = vector.load %arg8[%c3_123, %c0_124, %c0_125] : memref<8x8x64xf32, #tpu.memory_space<vmem>>, vector<1x8x32xf32>
    tpu.vector_store %arg8[%c3_123, %c0_124, %c0_125], %376 {strides = array<i32>} : memref<8x8x64xf32, #tpu.memory_space<vmem>>, vector<1x8x32xf32>,
    %378 = vector.shape_cast %369 : vector<8x32xf32> to vector<1x8x32xf32>
    %c4_126 = arith.constant 4 : index
    %c0_127 = arith.constant 0 : index
    %c32_128 = arith.constant 32 : index
    %379 = vector.load %arg8[%c4_126, %c0_127, %c32_128] : memref<8x8x64xf32, #tpu.memory_space<vmem>>, vector<1x8x32xf32>
    tpu.vector_store %arg8[%c4_126, %c0_127, %c32_128], %378 {strides = array<i32>} : memref<8x8x64xf32, #tpu.memory_space<vmem>>, vector<1x8x32xf32>,
    %c4_129 = arith.constant 4 : index
    %c0_130 = arith.constant 0 : index
    %c0_131 = arith.constant 0 : index
    %380 = vector.load %arg0[%c4_129, %c0_130, %c0_131] : memref<8x8x1xf32, #tpu.memory_space<vmem>>, vector<1x8x1xf32>
    %381 = vector.shape_cast %380 : vector<1x8x1xf32> to vector<8x1xf32>
    %c3_132 = arith.constant 3 : index
    %c0_133 = arith.constant 0 : index
    %c0_134 = arith.constant 0 : index
    %382 = vector.load %arg0[%c3_132, %c0_133, %c0_134] : memref<8x8x1xf32, #tpu.memory_space<vmem>>, vector<1x8x1xf32>
    %383 = vector.shape_cast %382 : vector<1x8x1xf32> to vector<8x1xf32>
    %c0_135 = arith.constant 0 : index
    %c0_136 = arith.constant 0 : index
    %384 = vector.load %arg11[%c0_135, %c0_136] : memref<8x64xf32, #tpu.memory_space<vmem>>, vector<8x64xf32>
    %385 = vector.extract_strided_slice %384 {offsets = [0, 0], sizes = [8, 32], strides = [1, 1]} : vector<8x64xf32> to vector<8x32xf32>
    %386 = vector.extract_strided_slice %384 {offsets = [0, 32], sizes = [8, 32], strides = [1, 1]} : vector<8x64xf32> to vector<8x32xf32>
    %387 = arith.truncf %384 : vector<8x64xf32> to vector<8x64xbf16>
    %cst_137 = arith.constant dense<0.000000e+00> : vector<8x192xf32>
    %388 = tpu.matmul %387, %12, %cst_137 {dimension_numbers = #tpu.dot_dimension_numbers<[1], [0], [0], [1], [0, 0, 1, 1], [], []>} : vector<8x64xbf16>, vector<64x192xbf16>, vector<8x192xf32> -> vector<8x192xf32>
    %389 = vector.broadcast %13 : vector<1x192xf32> to vector<8x192xf32>
    %390 = arith.addf %388, %389 : vector<8x192xf32>
    %c32_138 = arith.constant 32 : index
    %c0_139 = arith.constant 0 : index
    %391 = vector.load %arg10[%c32_138, %c0_139] : memref<64x192xbf16, #tpu.memory_space<vmem>>, vector<8x192xbf16>
    %c24_140 = arith.constant 24 : index
    %c0_141 = arith.constant 0 : index
    %392 = vector.load %arg10[%c24_140, %c0_141] : memref<64x192xbf16, #tpu.memory_space<vmem>>, vector<8x192xbf16>
    %393 = vector.extract_strided_slice %391 {offsets = [0, 0], sizes = [8, 32], strides = [1, 1]} : vector<8x192xbf16> to vector<8x32xbf16>
    %394 = vector.extract_strided_slice %390 {offsets = [0, 0], sizes = [8, 32], strides = [1, 1]} : vector<8x192xf32> to vector<8x32xf32>
    %395 = arith.extf %393 : vector<8x32xbf16> to vector<8x32xf32>
    %396 = arith.addf %395, %394 : vector<8x32xf32>
    %397 = arith.negf %396 : vector<8x32xf32>
    %398 = math.exp %397 : vector<8x32xf32>
    %cst_142 = arith.constant 1.000000e+00 : f32
    %399 = vector.broadcast %cst_142 : f32 to vector<8x32xf32>
    %400 = arith.addf %399, %398 : vector<8x32xf32>
    %401 = arith.divf %399, %400 : vector<8x32xf32>
    %402 = vector.extract_strided_slice %391 {offsets = [0, 32], sizes = [8, 32], strides = [1, 1]} : vector<8x192xbf16> to vector<8x32xbf16>
    %403 = vector.extract_strided_slice %390 {offsets = [0, 32], sizes = [8, 32], strides = [1, 1]} : vector<8x192xf32> to vector<8x32xf32>
    %404 = arith.extf %402 : vector<8x32xbf16> to vector<8x32xf32>
    %405 = arith.addf %404, %403 : vector<8x32xf32>
    %406 = arith.negf %405 : vector<8x32xf32>
    %407 = math.exp %406 : vector<8x32xf32>
    %cst_143 = arith.constant 1.000000e+00 : f32
    %408 = vector.broadcast %cst_143 : f32 to vector<8x32xf32>
    %409 = arith.addf %408, %407 : vector<8x32xf32>
    %410 = arith.divf %408, %409 : vector<8x32xf32>
    %411 = vector.extract_strided_slice %391 {offsets = [0, 64], sizes = [8, 32], strides = [1, 1]} : vector<8x192xbf16> to vector<8x32xbf16>
    %412 = vector.extract_strided_slice %390 {offsets = [0, 64], sizes = [8, 32], strides = [1, 1]} : vector<8x192xf32> to vector<8x32xf32>
    %413 = arith.mulf %401, %412 : vector<8x32xf32>
    %414 = arith.extf %411 : vector<8x32xbf16> to vector<8x32xf32>
    %415 = arith.addf %414, %413 : vector<8x32xf32>
    %416 = math.tanh %415 : vector<8x32xf32>
    %cst_144 = arith.constant 1.000000e+00 : f32
    %417 = vector.broadcast %cst_144 : f32 to vector<8x32xf32>
    %418 = arith.subf %417, %410 : vector<8x32xf32>
    %419 = arith.mulf %418, %416 : vector<8x32xf32>
    %420 = arith.mulf %410, %385 : vector<8x32xf32>
    %421 = arith.addf %419, %420 : vector<8x32xf32>
    %422 = vector.broadcast %381 : vector<8x1xf32> to vector<8x32xf32>
    %423 = arith.mulf %422, %421 : vector<8x32xf32>
    %cst_145 = arith.constant 1.000000e+00 : f32
    %424 = vector.broadcast %cst_145 : f32 to vector<8x1xf32>
    %425 = arith.subf %424, %381 : vector<8x1xf32>
    %426 = vector.broadcast %425 : vector<8x1xf32> to vector<8x32xf32>
    %427 = arith.mulf %426, %385 : vector<8x32xf32>
    %428 = arith.addf %423, %427 : vector<8x32xf32>
    %c0_146 = arith.constant 0 : index
    %c0_147 = arith.constant 0 : index
    %429 = vector.load %arg11[%c0_146, %c0_147] : memref<8x64xf32, #tpu.memory_space<vmem>>, vector<8x32xf32>
    tpu.vector_store %arg11[%c0_146, %c0_147], %428 {strides = array<i32>} : memref<8x64xf32, #tpu.memory_space<vmem>>, vector<8x32xf32>,
    %430 = vector.extract_strided_slice %392 {offsets = [0, 96], sizes = [8, 32], strides = [1, 1]} : vector<8x192xbf16> to vector<8x32xbf16>
    %431 = vector.extract_strided_slice %390 {offsets = [0, 96], sizes = [8, 32], strides = [1, 1]} : vector<8x192xf32> to vector<8x32xf32>
    %432 = arith.extf %430 : vector<8x32xbf16> to vector<8x32xf32>
    %433 = arith.addf %432, %431 : vector<8x32xf32>
    %434 = arith.negf %433 : vector<8x32xf32>
    %435 = math.exp %434 : vector<8x32xf32>
    %cst_148 = arith.constant 1.000000e+00 : f32
    %436 = vector.broadcast %cst_148 : f32 to vector<8x32xf32>
    %437 = arith.addf %436, %435 : vector<8x32xf32>
    %438 = arith.divf %436, %437 : vector<8x32xf32>
    %439 = vector.extract_strided_slice %392 {offsets = [0, 128], sizes = [8, 32], strides = [1, 1]} : vector<8x192xbf16> to vector<8x32xbf16>
    %440 = vector.extract_strided_slice %390 {offsets = [0, 128], sizes = [8, 32], strides = [1, 1]} : vector<8x192xf32> to vector<8x32xf32>
    %441 = arith.extf %439 : vector<8x32xbf16> to vector<8x32xf32>
    %442 = arith.addf %441, %440 : vector<8x32xf32>
    %443 = arith.negf %442 : vector<8x32xf32>
    %444 = math.exp %443 : vector<8x32xf32>
    %cst_149 = arith.constant 1.000000e+00 : f32
    %445 = vector.broadcast %cst_149 : f32 to vector<8x32xf32>
    %446 = arith.addf %445, %444 : vector<8x32xf32>
    %447 = arith.divf %445, %446 : vector<8x32xf32>
    %448 = vector.extract_strided_slice %392 {offsets = [0, 160], sizes = [8, 32], strides = [1, 1]} : vector<8x192xbf16> to vector<8x32xbf16>
    %449 = vector.extract_strided_slice %390 {offsets = [0, 160], sizes = [8, 32], strides = [1, 1]} : vector<8x192xf32> to vector<8x32xf32>
    %450 = arith.mulf %438, %449 : vector<8x32xf32>
    %451 = arith.extf %448 : vector<8x32xbf16> to vector<8x32xf32>
    %452 = arith.addf %451, %450 : vector<8x32xf32>
    %453 = math.tanh %452 : vector<8x32xf32>
    %cst_150 = arith.constant 1.000000e+00 : f32
    %454 = vector.broadcast %cst_150 : f32 to vector<8x32xf32>
    %455 = arith.subf %454, %447 : vector<8x32xf32>
    %456 = arith.mulf %455, %453 : vector<8x32xf32>
    %457 = arith.mulf %447, %386 : vector<8x32xf32>
    %458 = arith.addf %456, %457 : vector<8x32xf32>
    %459 = vector.broadcast %383 : vector<8x1xf32> to vector<8x32xf32>
    %460 = arith.mulf %459, %458 : vector<8x32xf32>
    %cst_151 = arith.constant 1.000000e+00 : f32
    %461 = vector.broadcast %cst_151 : f32 to vector<8x1xf32>
    %462 = arith.subf %461, %383 : vector<8x1xf32>
    %463 = vector.broadcast %462 : vector<8x1xf32> to vector<8x32xf32>
    %464 = arith.mulf %463, %386 : vector<8x32xf32>
    %465 = arith.addf %460, %464 : vector<8x32xf32>
    %c0_152 = arith.constant 0 : index
    %c32_153 = arith.constant 32 : index
    %466 = vector.load %arg11[%c0_152, %c32_153] : memref<8x64xf32, #tpu.memory_space<vmem>>, vector<8x32xf32>
    tpu.vector_store %arg11[%c0_152, %c32_153], %465 {strides = array<i32>} : memref<8x64xf32, #tpu.memory_space<vmem>>, vector<8x32xf32>,
    %467 = vector.shape_cast %423 : vector<8x32xf32> to vector<1x8x32xf32>
    %c4_154 = arith.constant 4 : index
    %c0_155 = arith.constant 0 : index
    %c0_156 = arith.constant 0 : index
    %468 = vector.load %arg8[%c4_154, %c0_155, %c0_156] : memref<8x8x64xf32, #tpu.memory_space<vmem>>, vector<1x8x32xf32>
    tpu.vector_store %arg8[%c4_154, %c0_155, %c0_156], %467 {strides = array<i32>} : memref<8x8x64xf32, #tpu.memory_space<vmem>>, vector<1x8x32xf32>,
    %469 = vector.shape_cast %460 : vector<8x32xf32> to vector<1x8x32xf32>
    %c3_157 = arith.constant 3 : index
    %c0_158 = arith.constant 0 : index
    %c32_159 = arith.constant 32 : index
    %470 = vector.load %arg8[%c3_157, %c0_158, %c32_159] : memref<8x8x64xf32, #tpu.memory_space<vmem>>, vector<1x8x32xf32>
    tpu.vector_store %arg8[%c3_157, %c0_158, %c32_159], %469 {strides = array<i32>} : memref<8x8x64xf32, #tpu.memory_space<vmem>>, vector<1x8x32xf32>,
    %c5_160 = arith.constant 5 : index
    %c0_161 = arith.constant 0 : index
    %c0_162 = arith.constant 0 : index
    %471 = vector.load %arg0[%c5_160, %c0_161, %c0_162] : memref<8x8x1xf32, #tpu.memory_space<vmem>>, vector<1x8x1xf32>
    %472 = vector.shape_cast %471 : vector<1x8x1xf32> to vector<8x1xf32>
    %c2_163 = arith.constant 2 : index
    %c0_164 = arith.constant 0 : index
    %c0_165 = arith.constant 0 : index
    %473 = vector.load %arg0[%c2_163, %c0_164, %c0_165] : memref<8x8x1xf32, #tpu.memory_space<vmem>>, vector<1x8x1xf32>
    %474 = vector.shape_cast %473 : vector<1x8x1xf32> to vector<8x1xf32>
    %c0_166 = arith.constant 0 : index
    %c0_167 = arith.constant 0 : index
    %475 = vector.load %arg11[%c0_166, %c0_167] : memref<8x64xf32, #tpu.memory_space<vmem>>, vector<8x64xf32>
    %476 = vector.extract_strided_slice %475 {offsets = [0, 0], sizes = [8, 32], strides = [1, 1]} : vector<8x64xf32> to vector<8x32xf32>
    %477 = vector.extract_strided_slice %475 {offsets = [0, 32], sizes = [8, 32], strides = [1, 1]} : vector<8x64xf32> to vector<8x32xf32>
    %478 = arith.truncf %475 : vector<8x64xf32> to vector<8x64xbf16>
    %cst_168 = arith.constant dense<0.000000e+00> : vector<8x192xf32>
    %479 = tpu.matmul %478, %12, %cst_168 {dimension_numbers = #tpu.dot_dimension_numbers<[1], [0], [0], [1], [0, 0, 1, 1], [], []>} : vector<8x64xbf16>, vector<64x192xbf16>, vector<8x192xf32> -> vector<8x192xf32>
    %480 = vector.broadcast %13 : vector<1x192xf32> to vector<8x192xf32>
    %481 = arith.addf %479, %480 : vector<8x192xf32>
    %c40_169 = arith.constant 40 : index
    %c0_170 = arith.constant 0 : index
    %482 = vector.load %arg10[%c40_169, %c0_170] : memref<64x192xbf16, #tpu.memory_space<vmem>>, vector<8x192xbf16>
    %c16_171 = arith.constant 16 : index
    %c0_172 = arith.constant 0 : index
    %483 = vector.load %arg10[%c16_171, %c0_172] : memref<64x192xbf16, #tpu.memory_space<vmem>>, vector<8x192xbf16>
    %484 = vector.extract_strided_slice %482 {offsets = [0, 0], sizes = [8, 32], strides = [1, 1]} : vector<8x192xbf16> to vector<8x32xbf16>
    %485 = vector.extract_strided_slice %481 {offsets = [0, 0], sizes = [8, 32], strides = [1, 1]} : vector<8x192xf32> to vector<8x32xf32>
    %486 = arith.extf %484 : vector<8x32xbf16> to vector<8x32xf32>
    %487 = arith.addf %486, %485 : vector<8x32xf32>
    %488 = arith.negf %487 : vector<8x32xf32>
    %489 = math.exp %488 : vector<8x32xf32>
    %cst_173 = arith.constant 1.000000e+00 : f32
    %490 = vector.broadcast %cst_173 : f32 to vector<8x32xf32>
    %491 = arith.addf %490, %489 : vector<8x32xf32>
    %492 = arith.divf %490, %491 : vector<8x32xf32>
    %493 = vector.extract_strided_slice %482 {offsets = [0, 32], sizes = [8, 32], strides = [1, 1]} : vector<8x192xbf16> to vector<8x32xbf16>
    %494 = vector.extract_strided_slice %481 {offsets = [0, 32], sizes = [8, 32], strides = [1, 1]} : vector<8x192xf32> to vector<8x32xf32>
    %495 = arith.extf %493 : vector<8x32xbf16> to vector<8x32xf32>
    %496 = arith.addf %495, %494 : vector<8x32xf32>
    %497 = arith.negf %496 : vector<8x32xf32>
    %498 = math.exp %497 : vector<8x32xf32>
    %cst_174 = arith.constant 1.000000e+00 : f32
    %499 = vector.broadcast %cst_174 : f32 to vector<8x32xf32>
    %500 = arith.addf %499, %498 : vector<8x32xf32>
    %501 = arith.divf %499, %500 : vector<8x32xf32>
    %502 = vector.extract_strided_slice %482 {offsets = [0, 64], sizes = [8, 32], strides = [1, 1]} : vector<8x192xbf16> to vector<8x32xbf16>
    %503 = vector.extract_strided_slice %481 {offsets = [0, 64], sizes = [8, 32], strides = [1, 1]} : vector<8x192xf32> to vector<8x32xf32>
    %504 = arith.mulf %492, %503 : vector<8x32xf32>
    %505 = arith.extf %502 : vector<8x32xbf16> to vector<8x32xf32>
    %506 = arith.addf %505, %504 : vector<8x32xf32>
    %507 = math.tanh %506 : vector<8x32xf32>
    %cst_175 = arith.constant 1.000000e+00 : f32
    %508 = vector.broadcast %cst_175 : f32 to vector<8x32xf32>
    %509 = arith.subf %508, %501 : vector<8x32xf32>
    %510 = arith.mulf %509, %507 : vector<8x32xf32>
    %511 = arith.mulf %501, %476 : vector<8x32xf32>
    %512 = arith.addf %510, %511 : vector<8x32xf32>
    %513 = vector.broadcast %472 : vector<8x1xf32> to vector<8x32xf32>
    %514 = arith.mulf %513, %512 : vector<8x32xf32>
    %cst_176 = arith.constant 1.000000e+00 : f32
    %515 = vector.broadcast %cst_176 : f32 to vector<8x1xf32>
    %516 = arith.subf %515, %472 : vector<8x1xf32>
    %517 = vector.broadcast %516 : vector<8x1xf32> to vector<8x32xf32>
    %518 = arith.mulf %517, %476 : vector<8x32xf32>
    %519 = arith.addf %514, %518 : vector<8x32xf32>
    %c0_177 = arith.constant 0 : index
    %c0_178 = arith.constant 0 : index
    %520 = vector.load %arg11[%c0_177, %c0_178] : memref<8x64xf32, #tpu.memory_space<vmem>>, vector<8x32xf32>
    tpu.vector_store %arg11[%c0_177, %c0_178], %519 {strides = array<i32>} : memref<8x64xf32, #tpu.memory_space<vmem>>, vector<8x32xf32>,
    %521 = vector.extract_strided_slice %483 {offsets = [0, 96], sizes = [8, 32], strides = [1, 1]} : vector<8x192xbf16> to vector<8x32xbf16>
    %522 = vector.extract_strided_slice %481 {offsets = [0, 96], sizes = [8, 32], strides = [1, 1]} : vector<8x192xf32> to vector<8x32xf32>
    %523 = arith.extf %521 : vector<8x32xbf16> to vector<8x32xf32>
    %524 = arith.addf %523, %522 : vector<8x32xf32>
    %525 = arith.negf %524 : vector<8x32xf32>
    %526 = math.exp %525 : vector<8x32xf32>
    %cst_179 = arith.constant 1.000000e+00 : f32
    %527 = vector.broadcast %cst_179 : f32 to vector<8x32xf32>
    %528 = arith.addf %527, %526 : vector<8x32xf32>
    %529 = arith.divf %527, %528 : vector<8x32xf32>
    %530 = vector.extract_strided_slice %483 {offsets = [0, 128], sizes = [8, 32], strides = [1, 1]} : vector<8x192xbf16> to vector<8x32xbf16>
    %531 = vector.extract_strided_slice %481 {offsets = [0, 128], sizes = [8, 32], strides = [1, 1]} : vector<8x192xf32> to vector<8x32xf32>
    %532 = arith.extf %530 : vector<8x32xbf16> to vector<8x32xf32>
    %533 = arith.addf %532, %531 : vector<8x32xf32>
    %534 = arith.negf %533 : vector<8x32xf32>
    %535 = math.exp %534 : vector<8x32xf32>
    %cst_180 = arith.constant 1.000000e+00 : f32
    %536 = vector.broadcast %cst_180 : f32 to vector<8x32xf32>
    %537 = arith.addf %536, %535 : vector<8x32xf32>
    %538 = arith.divf %536, %537 : vector<8x32xf32>
    %539 = vector.extract_strided_slice %483 {offsets = [0, 160], sizes = [8, 32], strides = [1, 1]} : vector<8x192xbf16> to vector<8x32xbf16>
    %540 = vector.extract_strided_slice %481 {offsets = [0, 160], sizes = [8, 32], strides = [1, 1]} : vector<8x192xf32> to vector<8x32xf32>
    %541 = arith.mulf %529, %540 : vector<8x32xf32>
    %542 = arith.extf %539 : vector<8x32xbf16> to vector<8x32xf32>
    %543 = arith.addf %542, %541 : vector<8x32xf32>
    %544 = math.tanh %543 : vector<8x32xf32>
    %cst_181 = arith.constant 1.000000e+00 : f32
    %545 = vector.broadcast %cst_181 : f32 to vector<8x32xf32>
    %546 = arith.subf %545, %538 : vector<8x32xf32>
    %547 = arith.mulf %546, %544 : vector<8x32xf32>
    %548 = arith.mulf %538, %477 : vector<8x32xf32>
    %549 = arith.addf %547, %548 : vector<8x32xf32>
    %550 = vector.broadcast %474 : vector<8x1xf32> to vector<8x32xf32>
    %551 = arith.mulf %550, %549 : vector<8x32xf32>
    %cst_182 = arith.constant 1.000000e+00 : f32
    %552 = vector.broadcast %cst_182 : f32 to vector<8x1xf32>
    %553 = arith.subf %552, %474 : vector<8x1xf32>
    %554 = vector.broadcast %553 : vector<8x1xf32> to vector<8x32xf32>
    %555 = arith.mulf %554, %477 : vector<8x32xf32>
    %556 = arith.addf %551, %555 : vector<8x32xf32>
    %c0_183 = arith.constant 0 : index
    %c32_184 = arith.constant 32 : index
    %557 = vector.load %arg11[%c0_183, %c32_184] : memref<8x64xf32, #tpu.memory_space<vmem>>, vector<8x32xf32>
    tpu.vector_store %arg11[%c0_183, %c32_184], %556 {strides = array<i32>} : memref<8x64xf32, #tpu.memory_space<vmem>>, vector<8x32xf32>,
    %558 = vector.shape_cast %514 : vector<8x32xf32> to vector<1x8x32xf32>
    %c5_185 = arith.constant 5 : index
    %c0_186 = arith.constant 0 : index
    %c0_187 = arith.constant 0 : index
    %559 = vector.load %arg8[%c5_185, %c0_186, %c0_187] : memref<8x8x64xf32, #tpu.memory_space<vmem>>, vector<1x8x32xf32>
    tpu.vector_store %arg8[%c5_185, %c0_186, %c0_187], %558 {strides = array<i32>} : memref<8x8x64xf32, #tpu.memory_space<vmem>>, vector<1x8x32xf32>,
    %560 = vector.shape_cast %551 : vector<8x32xf32> to vector<1x8x32xf32>
    %c2_188 = arith.constant 2 : index
    %c0_189 = arith.constant 0 : index
    %c32_190 = arith.constant 32 : index
    %561 = vector.load %arg8[%c2_188, %c0_189, %c32_190] : memref<8x8x64xf32, #tpu.memory_space<vmem>>, vector<1x8x32xf32>
    tpu.vector_store %arg8[%c2_188, %c0_189, %c32_190], %560 {strides = array<i32>} : memref<8x8x64xf32, #tpu.memory_space<vmem>>, vector<1x8x32xf32>,
    %c6_191 = arith.constant 6 : index
    %c0_192 = arith.constant 0 : index
    %c0_193 = arith.constant 0 : index
    %562 = vector.load %arg0[%c6_191, %c0_192, %c0_193] : memref<8x8x1xf32, #tpu.memory_space<vmem>>, vector<1x8x1xf32>
    %563 = vector.shape_cast %562 : vector<1x8x1xf32> to vector<8x1xf32>
    %c1_194 = arith.constant 1 : index
    %c0_195 = arith.constant 0 : index
    %c0_196 = arith.constant 0 : index
    %564 = vector.load %arg0[%c1_194, %c0_195, %c0_196] : memref<8x8x1xf32, #tpu.memory_space<vmem>>, vector<1x8x1xf32>
    %565 = vector.shape_cast %564 : vector<1x8x1xf32> to vector<8x1xf32>
    %c0_197 = arith.constant 0 : index
    %c0_198 = arith.constant 0 : index
    %566 = vector.load %arg11[%c0_197, %c0_198] : memref<8x64xf32, #tpu.memory_space<vmem>>, vector<8x64xf32>
    %567 = vector.extract_strided_slice %566 {offsets = [0, 0], sizes = [8, 32], strides = [1, 1]} : vector<8x64xf32> to vector<8x32xf32>
    %568 = vector.extract_strided_slice %566 {offsets = [0, 32], sizes = [8, 32], strides = [1, 1]} : vector<8x64xf32> to vector<8x32xf32>
    %569 = arith.truncf %566 : vector<8x64xf32> to vector<8x64xbf16>
    %cst_199 = arith.constant dense<0.000000e+00> : vector<8x192xf32>
    %570 = tpu.matmul %569, %12, %cst_199 {dimension_numbers = #tpu.dot_dimension_numbers<[1], [0], [0], [1], [0, 0, 1, 1], [], []>} : vector<8x64xbf16>, vector<64x192xbf16>, vector<8x192xf32> -> vector<8x192xf32>
    %571 = vector.broadcast %13 : vector<1x192xf32> to vector<8x192xf32>
    %572 = arith.addf %570, %571 : vector<8x192xf32>
    %c48_200 = arith.constant 48 : index
    %c0_201 = arith.constant 0 : index
    %573 = vector.load %arg10[%c48_200, %c0_201] : memref<64x192xbf16, #tpu.memory_space<vmem>>, vector<8x192xbf16>
    %c8_202 = arith.constant 8 : index
    %c0_203 = arith.constant 0 : index
    %574 = vector.load %arg10[%c8_202, %c0_203] : memref<64x192xbf16, #tpu.memory_space<vmem>>, vector<8x192xbf16>
    %575 = vector.extract_strided_slice %573 {offsets = [0, 0], sizes = [8, 32], strides = [1, 1]} : vector<8x192xbf16> to vector<8x32xbf16>
    %576 = vector.extract_strided_slice %572 {offsets = [0, 0], sizes = [8, 32], strides = [1, 1]} : vector<8x192xf32> to vector<8x32xf32>
    %577 = arith.extf %575 : vector<8x32xbf16> to vector<8x32xf32>
    %578 = arith.addf %577, %576 : vector<8x32xf32>
    %579 = arith.negf %578 : vector<8x32xf32>
    %580 = math.exp %579 : vector<8x32xf32>
    %cst_204 = arith.constant 1.000000e+00 : f32
    %581 = vector.broadcast %cst_204 : f32 to vector<8x32xf32>
    %582 = arith.addf %581, %580 : vector<8x32xf32>
    %583 = arith.divf %581, %582 : vector<8x32xf32>
    %584 = vector.extract_strided_slice %573 {offsets = [0, 32], sizes = [8, 32], strides = [1, 1]} : vector<8x192xbf16> to vector<8x32xbf16>
    %585 = vector.extract_strided_slice %572 {offsets = [0, 32], sizes = [8, 32], strides = [1, 1]} : vector<8x192xf32> to vector<8x32xf32>
    %586 = arith.extf %584 : vector<8x32xbf16> to vector<8x32xf32>
    %587 = arith.addf %586, %585 : vector<8x32xf32>
    %588 = arith.negf %587 : vector<8x32xf32>
    %589 = math.exp %588 : vector<8x32xf32>
    %cst_205 = arith.constant 1.000000e+00 : f32
    %590 = vector.broadcast %cst_205 : f32 to vector<8x32xf32>
    %591 = arith.addf %590, %589 : vector<8x32xf32>
    %592 = arith.divf %590, %591 : vector<8x32xf32>
    %593 = vector.extract_strided_slice %573 {offsets = [0, 64], sizes = [8, 32], strides = [1, 1]} : vector<8x192xbf16> to vector<8x32xbf16>
    %594 = vector.extract_strided_slice %572 {offsets = [0, 64], sizes = [8, 32], strides = [1, 1]} : vector<8x192xf32> to vector<8x32xf32>
    %595 = arith.mulf %583, %594 : vector<8x32xf32>
    %596 = arith.extf %593 : vector<8x32xbf16> to vector<8x32xf32>
    %597 = arith.addf %596, %595 : vector<8x32xf32>
    %598 = math.tanh %597 : vector<8x32xf32>
    %cst_206 = arith.constant 1.000000e+00 : f32
    %599 = vector.broadcast %cst_206 : f32 to vector<8x32xf32>
    %600 = arith.subf %599, %592 : vector<8x32xf32>
    %601 = arith.mulf %600, %598 : vector<8x32xf32>
    %602 = arith.mulf %592, %567 : vector<8x32xf32>
    %603 = arith.addf %601, %602 : vector<8x32xf32>
    %604 = vector.broadcast %563 : vector<8x1xf32> to vector<8x32xf32>
    %605 = arith.mulf %604, %603 : vector<8x32xf32>
    %cst_207 = arith.constant 1.000000e+00 : f32
    %606 = vector.broadcast %cst_207 : f32 to vector<8x1xf32>
    %607 = arith.subf %606, %563 : vector<8x1xf32>
    %608 = vector.broadcast %607 : vector<8x1xf32> to vector<8x32xf32>
    %609 = arith.mulf %608, %567 : vector<8x32xf32>
    %610 = arith.addf %605, %609 : vector<8x32xf32>
    %c0_208 = arith.constant 0 : index
    %c0_209 = arith.constant 0 : index
    %611 = vector.load %arg11[%c0_208, %c0_209] : memref<8x64xf32, #tpu.memory_space<vmem>>, vector<8x32xf32>
    tpu.vector_store %arg11[%c0_208, %c0_209], %610 {strides = array<i32>} : memref<8x64xf32, #tpu.memory_space<vmem>>, vector<8x32xf32>,
    %612 = vector.extract_strided_slice %574 {offsets = [0, 96], sizes = [8, 32], strides = [1, 1]} : vector<8x192xbf16> to vector<8x32xbf16>
    %613 = vector.extract_strided_slice %572 {offsets = [0, 96], sizes = [8, 32], strides = [1, 1]} : vector<8x192xf32> to vector<8x32xf32>
    %614 = arith.extf %612 : vector<8x32xbf16> to vector<8x32xf32>
    %615 = arith.addf %614, %613 : vector<8x32xf32>
    %616 = arith.negf %615 : vector<8x32xf32>
    %617 = math.exp %616 : vector<8x32xf32>
    %cst_210 = arith.constant 1.000000e+00 : f32
    %618 = vector.broadcast %cst_210 : f32 to vector<8x32xf32>
    %619 = arith.addf %618, %617 : vector<8x32xf32>
    %620 = arith.divf %618, %619 : vector<8x32xf32>
    %621 = vector.extract_strided_slice %574 {offsets = [0, 128], sizes = [8, 32], strides = [1, 1]} : vector<8x192xbf16> to vector<8x32xbf16>
    %622 = vector.extract_strided_slice %572 {offsets = [0, 128], sizes = [8, 32], strides = [1, 1]} : vector<8x192xf32> to vector<8x32xf32>
    %623 = arith.extf %621 : vector<8x32xbf16> to vector<8x32xf32>
    %624 = arith.addf %623, %622 : vector<8x32xf32>
    %625 = arith.negf %624 : vector<8x32xf32>
    %626 = math.exp %625 : vector<8x32xf32>
    %cst_211 = arith.constant 1.000000e+00 : f32
    %627 = vector.broadcast %cst_211 : f32 to vector<8x32xf32>
    %628 = arith.addf %627, %626 : vector<8x32xf32>
    %629 = arith.divf %627, %628 : vector<8x32xf32>
    %630 = vector.extract_strided_slice %574 {offsets = [0, 160], sizes = [8, 32], strides = [1, 1]} : vector<8x192xbf16> to vector<8x32xbf16>
    %631 = vector.extract_strided_slice %572 {offsets = [0, 160], sizes = [8, 32], strides = [1, 1]} : vector<8x192xf32> to vector<8x32xf32>
    %632 = arith.mulf %620, %631 : vector<8x32xf32>
    %633 = arith.extf %630 : vector<8x32xbf16> to vector<8x32xf32>
    %634 = arith.addf %633, %632 : vector<8x32xf32>
    %635 = math.tanh %634 : vector<8x32xf32>
    %cst_212 = arith.constant 1.000000e+00 : f32
    %636 = vector.broadcast %cst_212 : f32 to vector<8x32xf32>
    %637 = arith.subf %636, %629 : vector<8x32xf32>
    %638 = arith.mulf %637, %635 : vector<8x32xf32>
    %639 = arith.mulf %629, %568 : vector<8x32xf32>
    %640 = arith.addf %638, %639 : vector<8x32xf32>
    %641 = vector.broadcast %565 : vector<8x1xf32> to vector<8x32xf32>
    %642 = arith.mulf %641, %640 : vector<8x32xf32>
    %cst_213 = arith.constant 1.000000e+00 : f32
    %643 = vector.broadcast %cst_213 : f32 to vector<8x1xf32>
    %644 = arith.subf %643, %565 : vector<8x1xf32>
    %645 = vector.broadcast %644 : vector<8x1xf32> to vector<8x32xf32>
    %646 = arith.mulf %645, %568 : vector<8x32xf32>
    %647 = arith.addf %642, %646 : vector<8x32xf32>
    %c0_214 = arith.constant 0 : index
    %c32_215 = arith.constant 32 : index
    %648 = vector.load %arg11[%c0_214, %c32_215] : memref<8x64xf32, #tpu.memory_space<vmem>>, vector<8x32xf32>
    tpu.vector_store %arg11[%c0_214, %c32_215], %647 {strides = array<i32>} : memref<8x64xf32, #tpu.memory_space<vmem>>, vector<8x32xf32>,
    %649 = vector.shape_cast %605 : vector<8x32xf32> to vector<1x8x32xf32>
    %c6_216 = arith.constant 6 : index
    %c0_217 = arith.constant 0 : index
    %c0_218 = arith.constant 0 : index
    %650 = vector.load %arg8[%c6_216, %c0_217, %c0_218] : memref<8x8x64xf32, #tpu.memory_space<vmem>>, vector<1x8x32xf32>
    tpu.vector_store %arg8[%c6_216, %c0_217, %c0_218], %649 {strides = array<i32>} : memref<8x8x64xf32, #tpu.memory_space<vmem>>, vector<1x8x32xf32>,
    %651 = vector.shape_cast %642 : vector<8x32xf32> to vector<1x8x32xf32>
    %c1_219 = arith.constant 1 : index
    %c0_220 = arith.constant 0 : index
    %c32_221 = arith.constant 32 : index
    %652 = vector.load %arg8[%c1_219, %c0_220, %c32_221] : memref<8x8x64xf32, #tpu.memory_space<vmem>>, vector<1x8x32xf32>
    tpu.vector_store %arg8[%c1_219, %c0_220, %c32_221], %651 {strides = array<i32>} : memref<8x8x64xf32, #tpu.memory_space<vmem>>, vector<1x8x32xf32>,
    %c7_222 = arith.constant 7 : index
    %c0_223 = arith.constant 0 : index
    %c0_224 = arith.constant 0 : index
    %653 = vector.load %arg0[%c7_222, %c0_223, %c0_224] : memref<8x8x1xf32, #tpu.memory_space<vmem>>, vector<1x8x1xf32>
    %654 = vector.shape_cast %653 : vector<1x8x1xf32> to vector<8x1xf32>
    %c0_225 = arith.constant 0 : index
    %c0_226 = arith.constant 0 : index
    %c0_227 = arith.constant 0 : index
    %655 = vector.load %arg0[%c0_225, %c0_226, %c0_227] : memref<8x8x1xf32, #tpu.memory_space<vmem>>, vector<1x8x1xf32>
    %656 = vector.shape_cast %655 : vector<1x8x1xf32> to vector<8x1xf32>
    %c0_228 = arith.constant 0 : index
    %c0_229 = arith.constant 0 : index
    %657 = vector.load %arg11[%c0_228, %c0_229] : memref<8x64xf32, #tpu.memory_space<vmem>>, vector<8x64xf32>
    %658 = vector.extract_strided_slice %657 {offsets = [0, 0], sizes = [8, 32], strides = [1, 1]} : vector<8x64xf32> to vector<8x32xf32>
    %659 = vector.extract_strided_slice %657 {offsets = [0, 32], sizes = [8, 32], strides = [1, 1]} : vector<8x64xf32> to vector<8x32xf32>
    %660 = arith.truncf %657 : vector<8x64xf32> to vector<8x64xbf16>
    %cst_230 = arith.constant dense<0.000000e+00> : vector<8x192xf32>
    %661 = tpu.matmul %660, %12, %cst_230 {dimension_numbers = #tpu.dot_dimension_numbers<[1], [0], [0], [1], [0, 0, 1, 1], [], []>} : vector<8x64xbf16>, vector<64x192xbf16>, vector<8x192xf32> -> vector<8x192xf32>
    %662 = vector.broadcast %13 : vector<1x192xf32> to vector<8x192xf32>
    %663 = arith.addf %661, %662 : vector<8x192xf32>
    %c56_231 = arith.constant 56 : index
    %c0_232 = arith.constant 0 : index
    %664 = vector.load %arg10[%c56_231, %c0_232] : memref<64x192xbf16, #tpu.memory_space<vmem>>, vector<8x192xbf16>
    %c0_233 = arith.constant 0 : index
    %c0_234 = arith.constant 0 : index
    %665 = vector.load %arg10[%c0_233, %c0_234] : memref<64x192xbf16, #tpu.memory_space<vmem>>, vector<8x192xbf16>
    %666 = vector.extract_strided_slice %664 {offsets = [0, 0], sizes = [8, 32], strides = [1, 1]} : vector<8x192xbf16> to vector<8x32xbf16>
    %667 = vector.extract_strided_slice %663 {offsets = [0, 0], sizes = [8, 32], strides = [1, 1]} : vector<8x192xf32> to vector<8x32xf32>
    %668 = arith.extf %666 : vector<8x32xbf16> to vector<8x32xf32>
    %669 = arith.addf %668, %667 : vector<8x32xf32>
    %670 = arith.negf %669 : vector<8x32xf32>
    %671 = math.exp %670 : vector<8x32xf32>
    %cst_235 = arith.constant 1.000000e+00 : f32
    %672 = vector.broadcast %cst_235 : f32 to vector<8x32xf32>
    %673 = arith.addf %672, %671 : vector<8x32xf32>
    %674 = arith.divf %672, %673 : vector<8x32xf32>
    %675 = vector.extract_strided_slice %664 {offsets = [0, 32], sizes = [8, 32], strides = [1, 1]} : vector<8x192xbf16> to vector<8x32xbf16>
    %676 = vector.extract_strided_slice %663 {offsets = [0, 32], sizes = [8, 32], strides = [1, 1]} : vector<8x192xf32> to vector<8x32xf32>
    %677 = arith.extf %675 : vector<8x32xbf16> to vector<8x32xf32>
    %678 = arith.addf %677, %676 : vector<8x32xf32>
    %679 = arith.negf %678 : vector<8x32xf32>
    %680 = math.exp %679 : vector<8x32xf32>
    %cst_236 = arith.constant 1.000000e+00 : f32
    %681 = vector.broadcast %cst_236 : f32 to vector<8x32xf32>
    %682 = arith.addf %681, %680 : vector<8x32xf32>
    %683 = arith.divf %681, %682 : vector<8x32xf32>
    %684 = vector.extract_strided_slice %664 {offsets = [0, 64], sizes = [8, 32], strides = [1, 1]} : vector<8x192xbf16> to vector<8x32xbf16>
    %685 = vector.extract_strided_slice %663 {offsets = [0, 64], sizes = [8, 32], strides = [1, 1]} : vector<8x192xf32> to vector<8x32xf32>
    %686 = arith.mulf %674, %685 : vector<8x32xf32>
    %687 = arith.extf %684 : vector<8x32xbf16> to vector<8x32xf32>
    %688 = arith.addf %687, %686 : vector<8x32xf32>
    %689 = math.tanh %688 : vector<8x32xf32>
    %cst_237 = arith.constant 1.000000e+00 : f32
    %690 = vector.broadcast %cst_237 : f32 to vector<8x32xf32>
    %691 = arith.subf %690, %683 : vector<8x32xf32>
    %692 = arith.mulf %691, %689 : vector<8x32xf32>
    %693 = arith.mulf %683, %658 : vector<8x32xf32>
    %694 = arith.addf %692, %693 : vector<8x32xf32>
    %695 = vector.broadcast %654 : vector<8x1xf32> to vector<8x32xf32>
    %696 = arith.mulf %695, %694 : vector<8x32xf32>
    %cst_238 = arith.constant 1.000000e+00 : f32
    %697 = vector.broadcast %cst_238 : f32 to vector<8x1xf32>
    %698 = arith.subf %697, %654 : vector<8x1xf32>
    %699 = vector.broadcast %698 : vector<8x1xf32> to vector<8x32xf32>
    %700 = arith.mulf %699, %658 : vector<8x32xf32>
    %701 = arith.addf %696, %700 : vector<8x32xf32>
    %c0_239 = arith.constant 0 : index
    %c0_240 = arith.constant 0 : index
    %702 = vector.load %arg11[%c0_239, %c0_240] : memref<8x64xf32, #tpu.memory_space<vmem>>, vector<8x32xf32>
    tpu.vector_store %arg11[%c0_239, %c0_240], %701 {strides = array<i32>} : memref<8x64xf32, #tpu.memory_space<vmem>>, vector<8x32xf32>,
    %703 = vector.extract_strided_slice %665 {offsets = [0, 96], sizes = [8, 32], strides = [1, 1]} : vector<8x192xbf16> to vector<8x32xbf16>
    %704 = vector.extract_strided_slice %663 {offsets = [0, 96], sizes = [8, 32], strides = [1, 1]} : vector<8x192xf32> to vector<8x32xf32>
    %705 = arith.extf %703 : vector<8x32xbf16> to vector<8x32xf32>
    %706 = arith.addf %705, %704 : vector<8x32xf32>
    %707 = arith.negf %706 : vector<8x32xf32>
    %708 = math.exp %707 : vector<8x32xf32>
    %cst_241 = arith.constant 1.000000e+00 : f32
    %709 = vector.broadcast %cst_241 : f32 to vector<8x32xf32>
    %710 = arith.addf %709, %708 : vector<8x32xf32>
    %711 = arith.divf %709, %710 : vector<8x32xf32>
    %712 = vector.extract_strided_slice %665 {offsets = [0, 128], sizes = [8, 32], strides = [1, 1]} : vector<8x192xbf16> to vector<8x32xbf16>
    %713 = vector.extract_strided_slice %663 {offsets = [0, 128], sizes = [8, 32], strides = [1, 1]} : vector<8x192xf32> to vector<8x32xf32>
    %714 = arith.extf %712 : vector<8x32xbf16> to vector<8x32xf32>
    %715 = arith.addf %714, %713 : vector<8x32xf32>
    %716 = arith.negf %715 : vector<8x32xf32>
    %717 = math.exp %716 : vector<8x32xf32>
    %cst_242 = arith.constant 1.000000e+00 : f32
    %718 = vector.broadcast %cst_242 : f32 to vector<8x32xf32>
    %719 = arith.addf %718, %717 : vector<8x32xf32>
    %720 = arith.divf %718, %719 : vector<8x32xf32>
    %721 = vector.extract_strided_slice %665 {offsets = [0, 160], sizes = [8, 32], strides = [1, 1]} : vector<8x192xbf16> to vector<8x32xbf16>
    %722 = vector.extract_strided_slice %663 {offsets = [0, 160], sizes = [8, 32], strides = [1, 1]} : vector<8x192xf32> to vector<8x32xf32>
    %723 = arith.mulf %711, %722 : vector<8x32xf32>
    %724 = arith.extf %721 : vector<8x32xbf16> to vector<8x32xf32>
    %725 = arith.addf %724, %723 : vector<8x32xf32>
    %726 = math.tanh %725 : vector<8x32xf32>
    %cst_243 = arith.constant 1.000000e+00 : f32
    %727 = vector.broadcast %cst_243 : f32 to vector<8x32xf32>
    %728 = arith.subf %727, %720 : vector<8x32xf32>
    %729 = arith.mulf %728, %726 : vector<8x32xf32>
    %730 = arith.mulf %720, %659 : vector<8x32xf32>
    %731 = arith.addf %729, %730 : vector<8x32xf32>
    %732 = vector.broadcast %656 : vector<8x1xf32> to vector<8x32xf32>
    %733 = arith.mulf %732, %731 : vector<8x32xf32>
    %cst_244 = arith.constant 1.000000e+00 : f32
    %734 = vector.broadcast %cst_244 : f32 to vector<8x1xf32>
    %735 = arith.subf %734, %656 : vector<8x1xf32>
    %736 = vector.broadcast %735 : vector<8x1xf32> to vector<8x32xf32>
    %737 = arith.mulf %736, %659 : vector<8x32xf32>
    %738 = arith.addf %733, %737 : vector<8x32xf32>
    %c0_245 = arith.constant 0 : index
    %c32_246 = arith.constant 32 : index
    %739 = vector.load %arg11[%c0_245, %c32_246] : memref<8x64xf32, #tpu.memory_space<vmem>>, vector<8x32xf32>
    tpu.vector_store %arg11[%c0_245, %c32_246], %738 {strides = array<i32>} : memref<8x64xf32, #tpu.memory_space<vmem>>, vector<8x32xf32>,
    %740 = vector.shape_cast %696 : vector<8x32xf32> to vector<1x8x32xf32>
    %c7_247 = arith.constant 7 : index
    %c0_248 = arith.constant 0 : index
    %c0_249 = arith.constant 0 : index
    %741 = vector.load %arg8[%c7_247, %c0_248, %c0_249] : memref<8x8x64xf32, #tpu.memory_space<vmem>>, vector<1x8x32xf32>
    tpu.vector_store %arg8[%c7_247, %c0_248, %c0_249], %740 {strides = array<i32>} : memref<8x8x64xf32, #tpu.memory_space<vmem>>, vector<1x8x32xf32>,
    %742 = vector.shape_cast %733 : vector<8x32xf32> to vector<1x8x32xf32>
    %c0_250 = arith.constant 0 : index
    %c0_251 = arith.constant 0 : index
    %c32_252 = arith.constant 32 : index
    %743 = vector.load %arg8[%c0_250, %c0_251, %c32_252] : memref<8x8x64xf32, #tpu.memory_space<vmem>>, vector<1x8x32xf32>
    tpu.vector_store %arg8[%c0_250, %c0_251, %c32_252], %742 {strides = array<i32>} : memref<8x8x64xf32, #tpu.memory_space<vmem>>, vector<1x8x32xf32>,
    %c0_253 = arith.constant 0 : index
    %c0_254 = arith.constant 0 : index
    %744 = vector.load %arg11[%c0_253, %c0_254] : memref<8x64xf32, #tpu.memory_space<vmem>>, vector<8x64xf32>
    %745 = vector.extract_strided_slice %744 {offsets = [0, 0], sizes = [8, 32], strides = [1, 1]} : vector<8x64xf32> to vector<8x32xf32>
    %746 = vector.shape_cast %745 : vector<8x32xf32> to vector<1x8x32xf32>
    %c0_255 = arith.constant 0 : index
    %c0_256 = arith.constant 0 : index
    %c0_257 = arith.constant 0 : index
    %747 = vector.load %arg9[%c0_255, %c0_256, %c0_257] : memref<2x8x32xf32, #tpu.memory_space<vmem>>, vector<1x8x32xf32>
    tpu.vector_store %arg9[%c0_255, %c0_256, %c0_257], %746 {strides = array<i32>} : memref<2x8x32xf32, #tpu.memory_space<vmem>>, vector<1x8x32xf32>,
    %748 = vector.extract_strided_slice %744 {offsets = [0, 32], sizes = [8, 32], strides = [1, 1]} : vector<8x64xf32> to vector<8x32xf32>
    %749 = vector.shape_cast %748 : vector<8x32xf32> to vector<1x8x32xf32>
    %c1_258 = arith.constant 1 : index
    %c0_259 = arith.constant 0 : index
    %c0_260 = arith.constant 0 : index
    %750 = vector.load %arg9[%c1_258, %c0_259, %c0_260] : memref<2x8x32xf32, #tpu.memory_space<vmem>>, vector<1x8x32xf32>
    tpu.vector_store %arg9[%c1_258, %c0_259, %c0_260], %749 {strides = array<i32>} : memref<2x8x32xf32, #tpu.memory_space<vmem>>, vector<1x8x32xf32>,
    return
  }
}

</mosaic_0001>

<llo_original>
// kernel: tpu_custom_call.1
$region0: #{tpu_custom_call.1}
  #allocation0 [shape = 'u32[]', space=smem, size = 0x4, offset = 0x4, fixed_abs, tag = 'smem constant byte address 0x4 - core index']
  #allocation1 [shape = 'u32[144,128]{1,0:T(1,128)}', space=vmem, size = 0x12000, scoped, tag = 'internal scratch']
  #allocation2 [shape = 'bf16[64,192]{1,0:T(8,128)(2,1)}', space=vmem, size = 0x8000, scoped, tag = 'scratch operand']
  #allocation3 [shape = 'f32[8,64]{1,0:T(8,128)}', space=vmem, size = 0x1000, scoped, tag = 'scratch operand']
  %s0 = inlined_call_operand.vmem [shape: f32[8,8,1], index: 0, kind: input, shape index: {}]
  %s1 = inlined_call_operand.vmem [shape: bf16[64,24], index: 1, kind: input, shape index: {}]
  %s2 = inlined_call_operand.vmem [shape: bf16[64,8], index: 2, kind: input, shape index: {}]
  %s3 = inlined_call_operand.vmem [shape: bf16[24,192], index: 3, kind: input, shape index: {}]
  %s4 = inlined_call_operand.vmem [shape: bf16[8,192], index: 4, kind: input, shape index: {}]
  %s5 = inlined_call_operand.vmem [shape: f32[1,192], index: 5, kind: input, shape index: {}]
  %s6 = inlined_call_operand.vmem [shape: bf16[64,192], index: 6, kind: input, shape index: {}]
  %s7 = inlined_call_operand.vmem [shape: f32[1,192], index: 7, kind: input, shape index: {}]
  %s8 = inlined_call_operand.hbm [shape: f32[8,8,64], index: 8, kind: output, shape index: {0}]
  %s9 = inlined_call_operand.hbm [shape: f32[2,8,32], index: 9, kind: output, shape index: {1}]
  %10 = xla_tuple %s8, %s9
  %s11 = sld [smem:[#allocation0]]
  $region50: #{tpu_custom_call.1} parent=0
    _
  %s13 = ssub.s32 1, %s11
  %s14 = scalar_select 0, %s13, %s11
  $region1: #{tpu_custom_call.1} parent=0
    #allocation4 [shape = 'u8[32768]{0}', space=vmem, size = 0x8000, scoped, tag = 'output window, operand 0, single buffered']
    #allocation5 [shape = 's32[1]{0}', space=sflag, size = 0x4, scoped, tag = 'scoped memory for tpu_custom_call.1']
    #allocation6 [shape = 'u8[8192]{0}', space=vmem, size = 0x2000, scoped, tag = 'output window, operand 1, single buffered']
    #allocation7 [shape = 's32[1]{0}', space=sflag, size = 0x4, scoped, tag = 'scoped memory for tpu_custom_call.1']
    %15 = vsyncpa [#allocation5], 0
    %16 = vsyncpa [#allocation7], 0
    // Predicated region
    $region2: #{tpu_custom_call.1} parent=1 // pred_check
      _
    $region3: #{tpu_custom_call.1} parent=1 // pred_check_branch
      %18 = sbr.rel (0) target = $region5
    $region4: #{tpu_custom_call.1} parent=1 // pred_region
      _
    $region5: #{tpu_custom_call.1} parent=1 // pred_fallthru
      _
    // Predicated region
    $region6: #{tpu_custom_call.1} parent=1 // pred_check
      _
    $region7: #{tpu_custom_call.1} parent=1 // pred_check_branch
      %20 = sbr.rel (0) target = $region9
    $region8: #{tpu_custom_call.1} parent=1 // pred_region
      _
    $region9: #{tpu_custom_call.1} parent=1 // pred_fallthru
      _
    // Predicated region
    $region10: #{tpu_custom_call.1} parent=1 // pred_check
      _
    $region11: #{tpu_custom_call.1} parent=1 // pred_check_branch
      %22 = sbr.rel (0) target = $region13
    $region12: #{tpu_custom_call.1} parent=1 // pred_region
      _
    $region13: #{tpu_custom_call.1} parent=1 // pred_fallthru
      _
    // Predicated region
    $region14: #{tpu_custom_call.1} parent=1 // pred_check
      _
    $region15: #{tpu_custom_call.1} parent=1 // pred_check_branch
      %24 = sbr.rel (0) target = $region17
    $region16: #{tpu_custom_call.1} parent=1 // pred_region
      _
    $region17: #{tpu_custom_call.1} parent=1 // pred_fallthru
      _
    // Predicated region
    $region18: #{tpu_custom_call.1} parent=1 // pred_check
      _
    $region19: #{tpu_custom_call.1} parent=1 // pred_check_branch
      %26 = sbr.rel (0) target = $region21
    $region20: #{tpu_custom_call.1} parent=1 // pred_region
      _
    $region21: #{tpu_custom_call.1} parent=1 // pred_fallthru
      _
    // Predicated region
    $region22: #{tpu_custom_call.1} parent=1 // pred_check
      _
    $region23: #{tpu_custom_call.1} parent=1 // pred_check_branch
      %28 = sbr.rel (0) target = $region25
    $region24: #{tpu_custom_call.1} parent=1 // pred_region
      _
    $region25: #{tpu_custom_call.1} parent=1 // pred_fallthru
      _
    // Predicated region
    $region26: #{tpu_custom_call.1} parent=1 // pred_check
      _
    $region27: #{tpu_custom_call.1} parent=1 // pred_check_branch
      %30 = sbr.rel (0) target = $region29
    $region28: #{tpu_custom_call.1} parent=1 // pred_region
      _
    $region29: #{tpu_custom_call.1} parent=1 // pred_fallthru
      _
    // Predicated region
    $region30: #{tpu_custom_call.1} parent=1 // pred_check
      _
    $region31: #{tpu_custom_call.1} parent=1 // pred_check_branch
      %32 = sbr.rel (0) target = $region33
    $region32: #{tpu_custom_call.1} parent=1 // pred_region
      _
    $region33: #{tpu_custom_call.1} parent=1 // pred_fallthru
      _
    %v34 = vld [vmem:[%s1] sm:$0xf]
    %v35 = vld [vmem:[%s1 + $0x4] sm:$0xf]
    %v36 = vld [vmem:[%s1 + $0x8] sm:$0xf]
    %v37 = vld [vmem:[%s1 + $0xc] sm:$0xf]
    %v38 = vld [vmem:[%s1 + $0x10] sm:$0xf]
    %v39 = vld [vmem:[%s1 + $0x14] sm:$0xf]
    %v40 = vld [vmem:[%s1 + $0x18] sm:$0xf]
    %v41 = vld [vmem:[%s1 + $0x1c] sm:$0xf]
    %v42 = vld [vmem:[%s3] sm:$0xff]
    %v43 = vld [vmem:[%s3 + $0x8] sm:$0xff]
    %v44 = vld [vmem:[%s3 + $0x10] sm:$0xff]
    %v45 = vld [vmem:[%s2] sm:$0xf]
    %v46 = vld [vmem:[%s2 + $0x4] sm:$0xf]
    %v47 = vld [vmem:[%s2 + $0x8] sm:$0xf]
    %v48 = vld [vmem:[%s2 + $0xc] sm:$0xf]
    %v49 = vld [vmem:[%s2 + $0x10] sm:$0xf]
    %v50 = vld [vmem:[%s2 + $0x14] sm:$0xf]
    %v51 = vld [vmem:[%s2 + $0x18] sm:$0xf]
    %v52 = vld [vmem:[%s2 + $0x1c] sm:$0xf]
    %v53 = vld [vmem:[%s4] sm:$0xff]
    %v62 = vunpack.c.l.b16 %v45
    %v63 = vunpack.c.l.b16 %v46
    %v64 = vunpack.c.l.b16 %v47
    %v65 = vunpack.c.l.b16 %v48
    %v66 = vunpack.c.l.b16 %v49
    %v67 = vunpack.c.l.b16 %v50
    %v68 = vunpack.c.l.b16 %v51
    %v69 = vunpack.c.l.b16 %v52
    %v70 = vpack.c.b16 %v63, %v62
    %v71 = vpack.c.b16 %v65, %v64
    %v72 = vpack.c.b16 %v67, %v66
    %v73 = vpack.c.b16 %v69, %v68
    %v75 = vunpack.c.l.b16 %v53
    %v76 = vunpack.c.h.b16 %v53
    %v77 = vpack.c.b16 %v75, %v75
    %v78 = vpack.c.b16 %v76, %v76
    %vm79 = vcmask 64512
    %v81 = vsel %vm79, %v70, 0
    %v84 = vsel %vm79, %v71, 0
    %v87 = vsel %vm79, %v72, 0
    %v90 = vsel %vm79, %v73, 0
    %vm92 = vcmask 1043456
    %v94 = vsel %vm92, %v77, 0
    %v97 = vsel %vm92, %v78, 0
    %99 = vmatprep.subr.bf16.mxu0 0
    %100 = vmatpush1.bf16.msra.mxu0 0
    %101 = vmatprep.subr.bf16.mxu0 0
    %102 = vmatpush1.bf16.msra.mxu0 0
    %103 = vmatprep.subr.bf16.mxu0 0
    %104 = vmatpush1.bf16.msra.mxu0 0
    %105 = vmatprep.subr.bf16.mxu0 0
    %106 = vmatpush1.bf16.msra.mxu0 0
    %107 = vmatprep.subr.bf16.mxu0 0
    %108 = vmatpush1.bf16.msra.mxu0 0
    %109 = vmatprep.subr.bf16.mxu0 0
    %110 = vmatpush1.bf16.msra.mxu0 0
    %111 = vmatprep.subr.bf16.mxu0 0
    %112 = vmatpush1.bf16.msra.mxu0 0
    %113 = vmatprep.subr.bf16.mxu0 %v97
    %114 = vmatpush1.bf16.msra.mxu0 %v94
    %115 = vmatprep.subr.bf16.mxu0 0
    %116 = vmatpush2.bf16.msra.mxu0 0
    %117 = vmatprep.subr.bf16.mxu0 0
    %118 = vmatpush2.bf16.msra.mxu0 0
    %119 = vmatprep.subr.bf16.mxu0 0
    %120 = vmatpush2.bf16.msra.mxu0 0
    %121 = vmatprep.subr.bf16.mxu0 0
    %122 = vmatpush2.bf16.msra.mxu0 0
    %123 = vmatprep.subr.bf16.mxu0 0
    %124 = vmatpush2.bf16.msra.mxu0 0
    %125 = vmatprep.subr.bf16.mxu0 0
    %126 = vmatpush2.bf16.msra.mxu0 0
    %127 = vmatprep.subr.bf16.mxu0 0
    %128 = vmatpush2.bf16.msra.mxu0 0
    %129 = vmatprep.subr.bf16.mxu0 0
    %130 = vmatpush2.bf16.msra.mxu0 0
    %131 = vmatprep.mubr.bf16.mxu0 0
    %132 = vmatmul.mubr.bf16.gmra.mxu0 %v81
    %v133 = vpop.f32.mrf.mxu0
    %v134 = vadd.f32 0.0, %v133
    %v135 = vpop.f32.mrf.mxu0
    %v136 = vadd.f32 0.0, %v135
    %v137 = vpop.f32.mrf.mxu0
    %v138 = vadd.f32 0.0, %v137
    %v139 = vpop.f32.mrf.mxu0
    %v140 = vadd.f32 0.0, %v139
    %141 = vmatprep.mubr.bf16.mxu0 0
    %142 = vmatmul.mubr.bf16.gmra.mxu0 %v84
    %v143 = vpop.f32.mrf.mxu0
    %v144 = vadd.f32 0.0, %v143
    %v145 = vpop.f32.mrf.mxu0
    %v146 = vadd.f32 0.0, %v145
    %v147 = vpop.f32.mrf.mxu0
    %v148 = vadd.f32 0.0, %v147
    %v149 = vpop.f32.mrf.mxu0
    %v150 = vadd.f32 0.0, %v149
    %151 = vmatprep.mubr.bf16.mxu0 0
    %152 = vmatmul.mubr.bf16.gmra.mxu0 %v87
    %v153 = vpop.f32.mrf.mxu0
    %v154 = vadd.f32 0.0, %v153
    %v155 = vpop.f32.mrf.mxu0
    %v156 = vadd.f32 0.0, %v155
    %v157 = vpop.f32.mrf.mxu0
    %v158 = vadd.f32 0.0, %v157
    %v159 = vpop.f32.mrf.mxu0
    %v160 = vadd.f32 0.0, %v159
    %161 = vmatprep.mubr.bf16.mxu0 0
    %162 = vmatmul.mubr.bf16.gmra.mxu0 %v90
    %v163 = vpop.f32.mrf.mxu0
    %v164 = vadd.f32 0.0, %v163
    %v165 = vpop.f32.mrf.mxu0
    %v166 = vadd.f32 0.0, %v165
    %v167 = vpop.f32.mrf.mxu0
    %v168 = vadd.f32 0.0, %v167
    %v169 = vpop.f32.mrf.mxu0
    %v170 = vadd.f32 0.0, %v169
    %171 = vdwg.mxu0
    %v180 = vunpack.c.l.b16 %v34
    %v181 = vunpack.c.l.b16 %v35
    %v182 = vunpack.c.l.b16 %v36
    %v183 = vunpack.c.l.b16 %v37
    %v184 = vunpack.c.l.b16 %v38
    %v185 = vunpack.c.l.b16 %v39
    %v186 = vunpack.c.l.b16 %v40
    %v187 = vunpack.c.l.b16 %v41
    %v188 = vpack.c.b16 %v181, %v180
    %v189 = vpack.c.b16 %v183, %v182
    %v190 = vpack.c.b16 %v185, %v184
    %v191 = vpack.c.b16 %v187, %v186
    %v195 = vunpack.c.l.b16 %v42
    %v196 = vunpack.c.h.b16 %v42
    %v197 = vunpack.c.l.b16 %v43
    %v198 = vunpack.c.h.b16 %v43
    %v199 = vunpack.c.l.b16 %v44
    %v200 = vunpack.c.h.b16 %v44
    %v201 = vpack.c.b16 %v197, %v195
    %v202 = vpack.c.b16 %v198, %v196
    %v203 = vpack.c.b16 %v199, %v199
    %v204 = vpack.c.b16 %v200, %v200
    %vm207 = vcmask 195584
    %v209 = vsel %vm207, %v188, 0
    %v212 = vsel %vm207, %v189, 0
    %v215 = vsel %vm207, %v190, 0
    %v218 = vsel %vm207, %v191, 0
    %v221 = vsel %vm92, %v203, 0
    %v224 = vsel %vm92, %v204, 0
    %226 = vmatprep.subr.bf16.mxu0 0
    %227 = vmatpush1.bf16.msra.mxu0 0
    %228 = vmatprep.subr.bf16.mxu0 0
    %229 = vmatpush1.bf16.msra.mxu0 0
    %230 = vmatprep.subr.bf16.mxu0 0
    %231 = vmatpush1.bf16.msra.mxu0 0
    %232 = vmatprep.subr.bf16.mxu0 0
    %233 = vmatpush1.bf16.msra.mxu0 0
    %234 = vmatprep.subr.bf16.mxu0 0
    %235 = vmatpush1.bf16.msra.mxu0 0
    %236 = vmatprep.subr.bf16.mxu0 0
    %237 = vmatpush1.bf16.msra.mxu0 0
    %238 = vmatprep.subr.bf16.mxu0 %v224
    %239 = vmatpush1.bf16.msra.mxu0 %v221
    %240 = vmatprep.subr.bf16.mxu0 %v202
    %241 = vmatpush1.bf16.msra.mxu0 %v201
    %242 = vmatprep.subr.bf16.mxu0 0
    %243 = vmatpush2.bf16.msra.mxu0 0
    %244 = vmatprep.subr.bf16.mxu0 0
    %245 = vmatpush2.bf16.msra.mxu0 0
    %246 = vmatprep.subr.bf16.mxu0 0
    %247 = vmatpush2.bf16.msra.mxu0 0
    %248 = vmatprep.subr.bf16.mxu0 0
    %249 = vmatpush2.bf16.msra.mxu0 0
    %250 = vmatprep.subr.bf16.mxu0 0
    %251 = vmatpush2.bf16.msra.mxu0 0
    %252 = vmatprep.subr.bf16.mxu0 0
    %253 = vmatpush2.bf16.msra.mxu0 0
    %254 = vmatprep.subr.bf16.mxu0 0
    %255 = vmatpush2.bf16.msra.mxu0 0
    %256 = vmatprep.subr.bf16.mxu0 0
    %257 = vmatpush2.bf16.msra.mxu0 0
    %258 = vmatprep.mubr.bf16.mxu0 0
    %259 = vmatmul.mubr.bf16.gmra.mxu0 %v209
    %v260 = vpop.f32.mrf.mxu0
    %v261 = vadd.f32 %v134, %v260
    %v262 = vpop.f32.mrf.mxu0
    %v263 = vadd.f32 %v136, %v262
    %v264 = vpop.f32.mrf.mxu0
    %v265 = vadd.f32 %v138, %v264
    %v266 = vpop.f32.mrf.mxu0
    %v267 = vadd.f32 %v140, %v266
    %268 = vmatprep.mubr.bf16.mxu0 0
    %269 = vmatmul.mubr.bf16.gmra.mxu0 %v212
    %v270 = vpop.f32.mrf.mxu0
    %v271 = vadd.f32 %v144, %v270
    %v272 = vpop.f32.mrf.mxu0
    %v273 = vadd.f32 %v146, %v272
    %v274 = vpop.f32.mrf.mxu0
    %v275 = vadd.f32 %v148, %v274
    %v276 = vpop.f32.mrf.mxu0
    %v277 = vadd.f32 %v150, %v276
    %278 = vmatprep.mubr.bf16.mxu0 0
    %279 = vmatmul.mubr.bf16.gmra.mxu0 %v215
    %v280 = vpop.f32.mrf.mxu0
    %v281 = vadd.f32 %v154, %v280
    %v282 = vpop.f32.mrf.mxu0
    %v283 = vadd.f32 %v156, %v282
    %v284 = vpop.f32.mrf.mxu0
    %v285 = vadd.f32 %v158, %v284
    %v286 = vpop.f32.mrf.mxu0
    %v287 = vadd.f32 %v160, %v286
    %288 = vmatprep.mubr.bf16.mxu0 0
    %289 = vmatmul.mubr.bf16.gmra.mxu0 %v218
    %v290 = vpop.f32.mrf.mxu0
    %v291 = vadd.f32 %v164, %v290
    %v292 = vpop.f32.mrf.mxu0
    %v293 = vadd.f32 %v166, %v292
    %v294 = vpop.f32.mrf.mxu0
    %v295 = vadd.f32 %v168, %v294
    %v296 = vpop.f32.mrf.mxu0
    %v297 = vadd.f32 %v170, %v296
    %298 = vdwg.mxu0
    %v299 = vld [vmem:[%s5] sm:$0x3]
    %v301 = vlaneseq
    %v302 = vshrl.u32 %v301, 7
    %v303 = vsub.s32 0, %v302
    %v304 = vrot.slane %v299, %v303
    %v305 = vlaneseq
    %v306 = vshrl.u32 %v305, 7
    %v307 = vsub.s32 1, %v306
    %v308 = vrot.slane %v299, %v307
    %v311 = vadd.f32 %v261, %v304
    %v312 = vadd.f32 %v263, %v308
    %v313 = vadd.f32 %v265, %v304
    %v314 = vadd.f32 %v267, %v308
    %v315 = vadd.f32 %v271, %v304
    %v316 = vadd.f32 %v273, %v308
    %v317 = vadd.f32 %v275, %v304
    %v318 = vadd.f32 %v277, %v308
    %v319 = vadd.f32 %v281, %v304
    %v320 = vadd.f32 %v283, %v308
    %v321 = vadd.f32 %v285, %v304
    %v322 = vadd.f32 %v287, %v308
    %v323 = vadd.f32 %v291, %v304
    %v324 = vadd.f32 %v293, %v308
    %v325 = vadd.f32 %v295, %v304
    %v326 = vadd.f32 %v297, %v308
    %v327 = vpack.c.bf16 %v313, %v311
    %v328 = vpack.c.bf16 %v314, %v312
    %v329 = vpack.c.bf16 %v317, %v315
    %v330 = vpack.c.bf16 %v318, %v316
    %v331 = vpack.c.bf16 %v321, %v319
    %v332 = vpack.c.bf16 %v322, %v320
    %v333 = vpack.c.bf16 %v325, %v323
    %v334 = vpack.c.bf16 %v326, %v324
    %v343 = vunpack.c.l.b16 %v327
    %v344 = vunpack.c.l.b16 %v328
    %v345 = vunpack.c.h.b16 %v327
    %v346 = vunpack.c.h.b16 %v328
    %v347 = vunpack.c.l.b16 %v329
    %v348 = vunpack.c.l.b16 %v330
    %v349 = vunpack.c.h.b16 %v329
    %v350 = vunpack.c.h.b16 %v330
    %v351 = vunpack.c.l.b16 %v331
    %v352 = vunpack.c.l.b16 %v332
    %v353 = vunpack.c.h.b16 %v331
    %v354 = vunpack.c.h.b16 %v332
    %v355 = vunpack.c.l.b16 %v333
    %v356 = vunpack.c.l.b16 %v334
    %v357 = vunpack.c.h.b16 %v333
    %v358 = vunpack.c.h.b16 %v334
    %v359 = vpack.c.b16 %v344, %v343
    %v360 = vpack.c.b16 %v346, %v345
    %v361 = vpack.c.b16 %v348, %v347
    %v362 = vpack.c.b16 %v350, %v349
    %v363 = vpack.c.b16 %v352, %v351
    %v364 = vpack.c.b16 %v354, %v353
    %v365 = vpack.c.b16 %v356, %v355
    %v366 = vpack.c.b16 %v358, %v357
    %vm375 = vcmask 523268
    %vm376 = vmor %vm375, %vm92
    %377 = vst.msk [vmem:[#allocation2] sm:$0xff] %vm376, %v359
    %378 = vst.msk [vmem:[#allocation2 + $0x8] sm:$0xff] %vm376, %v360
    %379 = vst.msk [vmem:[#allocation2 + $0x10] sm:$0xff] %vm376, %v361
    %380 = vst.msk [vmem:[#allocation2 + $0x18] sm:$0xff] %vm376, %v362
    %381 = vst.msk [vmem:[#allocation2 + $0x20] sm:$0xff] %vm376, %v363
    %382 = vst.msk [vmem:[#allocation2 + $0x28] sm:$0xff] %vm376, %v364
    %383 = vst.msk [vmem:[#allocation2 + $0x30] sm:$0xff] %vm376, %v365
    %384 = vst.msk [vmem:[#allocation2 + $0x38] sm:$0xff] %vm376, %v366
    %v385 = vld [vmem:[%s6] sm:$0xff]
    %v386 = vld [vmem:[%s6 + $0x8] sm:$0xff]
    %v387 = vld [vmem:[%s6 + $0x10] sm:$0xff]
    %v388 = vld [vmem:[%s6 + $0x18] sm:$0xff]
    %v389 = vld [vmem:[%s6 + $0x20] sm:$0xff]
    %v390 = vld [vmem:[%s6 + $0x28] sm:$0xff]
    %v391 = vld [vmem:[%s6 + $0x30] sm:$0xff]
    %v392 = vld [vmem:[%s6 + $0x38] sm:$0xff]
    %v393 = vld [vmem:[%s7] sm:$0x3]
    %vm394 = vcmask 523264
    %395 = vst.msk [vmem:[#allocation3] sm:$0xff] %vm394, 0.0
    %v396 = vld [vmem:[%s0] sm:$0xff]
    %s397 = scalar_lea.vmem %s0, 56
    %v398 = vld [vmem:[%s397] sm:$0xff]
    %v399 = vld [vmem:[#allocation3] sm:$0xff]
    %v400 = vpack.c.bf16 %v399, %v399
    %v402 = vlaneseq
    %v403 = vshrl.u32 %v402, 7
    %v404 = vsub.s32 0, %v403
    %v405 = vrot.slane %v393, %v404
    %v406 = vlaneseq
    %v407 = vshrl.u32 %v406, 7
    %v408 = vsub.s32 1, %v407
    %v409 = vrot.slane %v393, %v408
    %v420 = vunpack.c.l.b16 %v385
    %v421 = vunpack.c.h.b16 %v385
    %v422 = vunpack.c.l.b16 %v386
    %v423 = vunpack.c.h.b16 %v386
    %v424 = vunpack.c.l.b16 %v387
    %v425 = vunpack.c.h.b16 %v387
    %v426 = vunpack.c.l.b16 %v388
    %v427 = vunpack.c.h.b16 %v388
    %v428 = vunpack.c.l.b16 %v389
    %v429 = vunpack.c.h.b16 %v389
    %v430 = vunpack.c.l.b16 %v390
    %v431 = vunpack.c.h.b16 %v390
    %v432 = vunpack.c.l.b16 %v391
    %v433 = vunpack.c.h.b16 %v391
    %v434 = vunpack.c.l.b16 %v392
    %v435 = vunpack.c.h.b16 %v392
    %v436 = vpack.c.b16 %v422, %v420
    %v437 = vpack.c.b16 %v423, %v421
    %v438 = vpack.c.b16 %v426, %v424
    %v439 = vpack.c.b16 %v427, %v425
    %v440 = vpack.c.b16 %v430, %v428
    %v441 = vpack.c.b16 %v431, %v429
    %v442 = vpack.c.b16 %v434, %v432
    %v443 = vpack.c.b16 %v435, %v433
    %v453 = vsel %vm394, %v400, 0
    %455 = vmatprep.subr.bf16.mxu0 0
    %456 = vmatpush1.bf16.msra.mxu0 0
    %457 = vmatprep.subr.bf16.mxu0 0
    %458 = vmatpush1.bf16.msra.mxu0 0
    %459 = vmatprep.subr.bf16.mxu0 0
    %460 = vmatpush1.bf16.msra.mxu0 0
    %461 = vmatprep.subr.bf16.mxu0 0
    %462 = vmatpush1.bf16.msra.mxu0 0
    %463 = vmatprep.subr.bf16.mxu0 %v443
    %464 = vmatpush1.bf16.msra.mxu0 %v442
    %465 = vmatprep.subr.bf16.mxu0 %v441
    %466 = vmatpush1.bf16.msra.mxu0 %v440
    %467 = vmatprep.subr.bf16.mxu0 %v439
    %468 = vmatpush1.bf16.msra.mxu0 %v438
    %469 = vmatprep.subr.bf16.mxu0 %v437
    %470 = vmatpush1.bf16.msra.mxu0 %v436
    %471 = vmatprep.subr.bf16.mxu0 0
    %472 = vmatpush2.bf16.msra.mxu0 0
    %473 = vmatprep.subr.bf16.mxu0 0
    %474 = vmatpush2.bf16.msra.mxu0 0
    %475 = vmatprep.subr.bf16.mxu0 0
    %476 = vmatpush2.bf16.msra.mxu0 0
    %477 = vmatprep.subr.bf16.mxu0 0
    %478 = vmatpush2.bf16.msra.mxu0 0
    %479 = vmatprep.subr.bf16.mxu0 0
    %480 = vmatpush2.bf16.msra.mxu0 0
    %481 = vmatprep.subr.bf16.mxu0 0
    %482 = vmatpush2.bf16.msra.mxu0 0
    %483 = vmatprep.subr.bf16.mxu0 0
    %484 = vmatpush2.bf16.msra.mxu0 0
    %485 = vmatprep.subr.bf16.mxu0 0
    %486 = vmatpush2.bf16.msra.mxu0 0
    %487 = vmatprep.mubr.bf16.mxu0 0
    %488 = vmatmul.mubr.bf16.gmra.mxu0 %v453
    %v489 = vpop.f32.mrf.mxu0
    %v490 = vadd.f32 %v405, %v489
    %v491 = vpop.f32.mrf.mxu0
    %v492 = vadd.f32 %v409, %v491
    %v493 = vpop.f32.mrf.mxu0
    %v494 = vpop.f32.mrf.mxu0
    %495 = vdwg.mxu0
    %v496 = vld [vmem:[#allocation2] sm:$0xff]
    %v497 = vld [vmem:[#allocation2 + $0x38] sm:$0xff]
    %v498 = vunpack.c.l.bf16 %v496
    %v499 = vadd.f32 %v498, %v490
    %v500 = vxor.u32 %v499, 2147483648
    %v501 = vmul.f32 %v500, 1.442695
    %v502 = vpow.pop %v501
    %v503 = vadd.f32 %v502, 1.0
    %v504 = vrcp.pop %v503
    %v505 = vmul.f32 1.0, %v504
    %507 = vrot.lane.b32.xlu0 %v490, 64
    %v508 = vpop.permute.xlu0 %507
    %v510 = vmul.f32 %v505, %v508
    %512 = vrot.lane.b32.xlu0 %v510, 64
    %v513 = vpop.permute.xlu0 %512
    %v515 = vadd.f32 %v498, %v513
    %v516 = vtanh.pop %v515
    %v517 = vsub.f32 1.0, %v505
    %519 = vrot.lane.b32.xlu0 %v516, 96
    %v520 = vpop.permute.xlu0 %519
    %v522 = vmul.f32 %v517, %v520
    %524 = vrot.lane.b32.xlu0 %v399, 32
    %v525 = vpop.permute.xlu0 %524
    %v527 = vmul.f32 %v505, %v525
    %v528 = vadd.f32 %v522, %v527
    %530 = vset.pattern.permute.xlu0 0
    %531 = vperm.xlu0 %530, %v396
    %v532 = vpop.permute.xlu0 %531
    %v534 = vmul.f32 %v532, %v528
    %v535 = vsub.f32 1.0, %v396
    %537 = vset.pattern.permute.xlu0 0
    %538 = vperm.xlu0 %537, %v535
    %v539 = vpop.permute.xlu0 %538
    %v541 = vmul.f32 %v539, %v399
    %543 = vrot.lane.b32.xlu0 %v541, 32
    %v544 = vpop.permute.xlu0 %543
    %v546 = vadd.f32 %v534, %v544
    %548 = vrot.lane.b32.xlu0 %v546, 96
    %v549 = vpop.permute.xlu0 %548
    %vm551 = vcmask 261120
    %552 = vst.msk [vmem:[#allocation3] sm:$0xff] %vm551, %v549
    %v553 = vunpack.c.l.bf16 %v497
    %v554 = vadd.f32 %v553, %v490
    %v555 = vxor.u32 %v554, 2147483648
    %v556 = vmul.f32 %v555, 1.442695
    %v557 = vpow.pop %v556
    %v558 = vadd.f32 %v557, 1.0
    %v559 = vrcp.pop %v558
    %v560 = vmul.f32 1.0, %v559
    %v562 = vrot.slane %v497, 4
    %v564 = vunpack.c.l.bf16 %v562
    %v565 = vadd.f32 %v564, %v492
    %v566 = vxor.u32 %v565, 2147483648
    %v567 = vmul.f32 %v566, 1.442695
    %v568 = vpow.pop %v567
    %v569 = vadd.f32 %v568, 1.0
    %v570 = vrcp.pop %v569
    %v571 = vmul.f32 1.0, %v570
    %573 = vrot.lane.b32.xlu0 %v492, 64
    %v574 = vpop.permute.xlu0 %573
    %v576 = vmul.f32 %v560, %v574
    %577 = vrot.lane.b32.xlu0 %v497, 96
    %v578 = vpop.permute.xlu0 %577
    %v579 = vrot.slane %v578, 4
    %v581 = vunpack.c.l.bf16 %v579
    %583 = vrot.lane.b32.xlu0 %v576, 32
    %v584 = vpop.permute.xlu0 %583
    %v586 = vadd.f32 %v581, %v584
    %v587 = vtanh.pop %v586
    %v588 = vsub.f32 1.0, %v571
    %v589 = vmul.f32 %v588, %v587
    %590 = vrot.lane.b32.xlu0 %v399, 96
    %v591 = vpop.permute.xlu0 %590
    %v593 = vmul.f32 %v571, %v591
    %v594 = vadd.f32 %v589, %v593
    %596 = vset.pattern.permute.xlu0 0
    %597 = vperm.xlu0 %596, %v398
    %v598 = vpop.permute.xlu0 %597
    %v600 = vmul.f32 %v598, %v594
    %v601 = vsub.f32 1.0, %v398
    %603 = vset.pattern.permute.xlu0 0
    %604 = vperm.xlu0 %603, %v601
    %v605 = vpop.permute.xlu0 %604
    %v607 = vmul.f32 %v605, %v399
    %609 = vrot.lane.b32.xlu0 %v607, 96
    %v610 = vpop.permute.xlu0 %609
    %v612 = vadd.f32 %v600, %v610
    %614 = vrot.lane.b32.xlu0 %v612, 32
    %v615 = vpop.permute.xlu0 %614
    %vm617 = vcmask 523520
    %618 = vst.msk [vmem:[#allocation3] sm:$0xff] %vm617, %v615
    %620 = vrot.lane.b32.xlu0 %v534, 96
    %v621 = vpop.permute.xlu0 %620
    %623 = vst.msk [vmem:[#allocation4] sm:$0xff] %vm551, %v621
    %625 = vrot.lane.b32.xlu0 %v600, 32
    %v626 = vpop.permute.xlu0 %625
    %s628 = scalar_lea.vmem [#allocation4], 56
    %629 = vst.msk [vmem:[%s628] sm:$0xff] %vm617, %v626
    %s630 = scalar_lea.vmem %s0, 8
    %v631 = vld [vmem:[%s630] sm:$0xff]
    %s632 = scalar_lea.vmem %s0, 48
    %v633 = vld [vmem:[%s632] sm:$0xff]
    %v634 = vld [vmem:[#allocation3] sm:$0xff]
    %v635 = vpack.c.bf16 %v634, %v634
    %v637 = vsel %vm394, %v635, 0
    %639 = vmatprep.subr.bf16.mxu0 0
    %640 = vmatpush1.bf16.msra.mxu0 0
    %641 = vmatprep.subr.bf16.mxu0 0
    %642 = vmatpush1.bf16.msra.mxu0 0
    %643 = vmatprep.subr.bf16.mxu0 0
    %644 = vmatpush1.bf16.msra.mxu0 0
    %645 = vmatprep.subr.bf16.mxu0 0
    %646 = vmatpush1.bf16.msra.mxu0 0
    %647 = vmatprep.subr.bf16.mxu0 %v443
    %648 = vmatpush1.bf16.msra.mxu0 %v442
    %649 = vmatprep.subr.bf16.mxu0 %v441
    %650 = vmatpush1.bf16.msra.mxu0 %v440
    %651 = vmatprep.subr.bf16.mxu0 %v439
    %652 = vmatpush1.bf16.msra.mxu0 %v438
    %653 = vmatprep.subr.bf16.mxu0 %v437
    %654 = vmatpush1.bf16.msra.mxu0 %v436
    %655 = vmatprep.subr.bf16.mxu0 0
    %656 = vmatpush2.bf16.msra.mxu0 0
    %657 = vmatprep.subr.bf16.mxu0 0
    %658 = vmatpush2.bf16.msra.mxu0 0
    %659 = vmatprep.subr.bf16.mxu0 0
    %660 = vmatpush2.bf16.msra.mxu0 0
    %661 = vmatprep.subr.bf16.mxu0 0
    %662 = vmatpush2.bf16.msra.mxu0 0
    %663 = vmatprep.subr.bf16.mxu0 0
    %664 = vmatpush2.bf16.msra.mxu0 0
    %665 = vmatprep.subr.bf16.mxu0 0
    %666 = vmatpush2.bf16.msra.mxu0 0
    %667 = vmatprep.subr.bf16.mxu0 0
    %668 = vmatpush2.bf16.msra.mxu0 0
    %669 = vmatprep.subr.bf16.mxu0 0
    %670 = vmatpush2.bf16.msra.mxu0 0
    %671 = vmatprep.mubr.bf16.mxu0 0
    %672 = vmatmul.mubr.bf16.gmra.mxu0 %v637
    %v673 = vpop.f32.mrf.mxu0
    %v674 = vadd.f32 %v405, %v673
    %v675 = vpop.f32.mrf.mxu0
    %v676 = vadd.f32 %v409, %v675
    %v677 = vpop.f32.mrf.mxu0
    %v678 = vpop.f32.mrf.mxu0
    %679 = vdwg.mxu0
    %v680 = vld [vmem:[#allocation2 + $0x8] sm:$0xff]
    %v681 = vld [vmem:[#allocation2 + $0x30] sm:$0xff]
    %v682 = vunpack.c.l.bf16 %v680
    %v683 = vadd.f32 %v682, %v674
    %v684 = vxor.u32 %v683, 2147483648
    %v685 = vmul.f32 %v684, 1.442695
    %v686 = vpow.pop %v685
    %v687 = vadd.f32 %v686, 1.0
    %v688 = vrcp.pop %v687
    %v689 = vmul.f32 1.0, %v688
    %691 = vrot.lane.b32.xlu0 %v674, 64
    %v692 = vpop.permute.xlu0 %691
    %v694 = vmul.f32 %v689, %v692
    %696 = vrot.lane.b32.xlu0 %v694, 64
    %v697 = vpop.permute.xlu0 %696
    %v699 = vadd.f32 %v682, %v697
    %v700 = vtanh.pop %v699
    %v701 = vsub.f32 1.0, %v689
    %703 = vrot.lane.b32.xlu0 %v700, 96
    %v704 = vpop.permute.xlu0 %703
    %v706 = vmul.f32 %v701, %v704
    %708 = vrot.lane.b32.xlu0 %v634, 32
    %v709 = vpop.permute.xlu0 %708
    %v711 = vmul.f32 %v689, %v709
    %v712 = vadd.f32 %v706, %v711
    %714 = vset.pattern.permute.xlu0 0
    %715 = vperm.xlu0 %714, %v631
    %v716 = vpop.permute.xlu0 %715
    %v718 = vmul.f32 %v716, %v712
    %v719 = vsub.f32 1.0, %v631
    %721 = vset.pattern.permute.xlu0 0
    %722 = vperm.xlu0 %721, %v719
    %v723 = vpop.permute.xlu0 %722
    %v725 = vmul.f32 %v723, %v634
    %727 = vrot.lane.b32.xlu0 %v725, 32
    %v728 = vpop.permute.xlu0 %727
    %v730 = vadd.f32 %v718, %v728
    %732 = vrot.lane.b32.xlu0 %v730, 96
    %v733 = vpop.permute.xlu0 %732
    %735 = vst.msk [vmem:[#allocation3] sm:$0xff] %vm551, %v733
    %v736 = vunpack.c.l.bf16 %v681
    %v737 = vadd.f32 %v736, %v674
    %v738 = vxor.u32 %v737, 2147483648
    %v739 = vmul.f32 %v738, 1.442695
    %v740 = vpow.pop %v739
    %v741 = vadd.f32 %v740, 1.0
    %v742 = vrcp.pop %v741
    %v743 = vmul.f32 1.0, %v742
    %v745 = vrot.slane %v681, 4
    %v747 = vunpack.c.l.bf16 %v745
    %v748 = vadd.f32 %v747, %v676
    %v749 = vxor.u32 %v748, 2147483648
    %v750 = vmul.f32 %v749, 1.442695
    %v751 = vpow.pop %v750
    %v752 = vadd.f32 %v751, 1.0
    %v753 = vrcp.pop %v752
    %v754 = vmul.f32 1.0, %v753
    %756 = vrot.lane.b32.xlu0 %v676, 64
    %v757 = vpop.permute.xlu0 %756
    %v759 = vmul.f32 %v743, %v757
    %760 = vrot.lane.b32.xlu0 %v681, 96
    %v761 = vpop.permute.xlu0 %760
    %v762 = vrot.slane %v761, 4
    %v764 = vunpack.c.l.bf16 %v762
    %766 = vrot.lane.b32.xlu0 %v759, 32
    %v767 = vpop.permute.xlu0 %766
    %v769 = vadd.f32 %v764, %v767
    %v770 = vtanh.pop %v769
    %v771 = vsub.f32 1.0, %v754
    %v772 = vmul.f32 %v771, %v770
    %773 = vrot.lane.b32.xlu0 %v634, 96
    %v774 = vpop.permute.xlu0 %773
    %v776 = vmul.f32 %v754, %v774
    %v777 = vadd.f32 %v772, %v776
    %779 = vset.pattern.permute.xlu0 0
    %780 = vperm.xlu0 %779, %v633
    %v781 = vpop.permute.xlu0 %780
    %v783 = vmul.f32 %v781, %v777
    %v784 = vsub.f32 1.0, %v633
    %786 = vset.pattern.permute.xlu0 0
    %787 = vperm.xlu0 %786, %v784
    %v788 = vpop.permute.xlu0 %787
    %v790 = vmul.f32 %v788, %v634
    %792 = vrot.lane.b32.xlu0 %v790, 96
    %v793 = vpop.permute.xlu0 %792
    %v795 = vadd.f32 %v783, %v793
    %797 = vrot.lane.b32.xlu0 %v795, 32
    %v798 = vpop.permute.xlu0 %797
    %800 = vst.msk [vmem:[#allocation3] sm:$0xff] %vm617, %v798
    %802 = vrot.lane.b32.xlu0 %v718, 96
    %v803 = vpop.permute.xlu0 %802
    %s805 = scalar_lea.vmem [#allocation4], 8
    %806 = vst.msk [vmem:[%s805] sm:$0xff] %vm551, %v803
    %808 = vrot.lane.b32.xlu0 %v783, 32
    %v809 = vpop.permute.xlu0 %808
    %s811 = scalar_lea.vmem [#allocation4], 48
    %812 = vst.msk [vmem:[%s811] sm:$0xff] %vm617, %v809
    %s813 = scalar_lea.vmem %s0, 16
    %v814 = vld [vmem:[%s813] sm:$0xff]
    %s815 = scalar_lea.vmem %s0, 40
    %v816 = vld [vmem:[%s815] sm:$0xff]
    %v817 = vld [vmem:[#allocation3] sm:$0xff]
    %v818 = vpack.c.bf16 %v817, %v817
    %v820 = vsel %vm394, %v818, 0
    %822 = vmatprep.subr.bf16.mxu0 0
    %823 = vmatpush1.bf16.msra.mxu0 0
    %824 = vmatprep.subr.bf16.mxu0 0
    %825 = vmatpush1.bf16.msra.mxu0 0
    %826 = vmatprep.subr.bf16.mxu0 0
    %827 = vmatpush1.bf16.msra.mxu0 0
    %828 = vmatprep.subr.bf16.mxu0 0
    %829 = vmatpush1.bf16.msra.mxu0 0
    %830 = vmatprep.subr.bf16.mxu0 %v443
    %831 = vmatpush1.bf16.msra.mxu0 %v442
    %832 = vmatprep.subr.bf16.mxu0 %v441
    %833 = vmatpush1.bf16.msra.mxu0 %v440
    %834 = vmatprep.subr.bf16.mxu0 %v439
    %835 = vmatpush1.bf16.msra.mxu0 %v438
    %836 = vmatprep.subr.bf16.mxu0 %v437
    %837 = vmatpush1.bf16.msra.mxu0 %v436
    %838 = vmatprep.subr.bf16.mxu0 0
    %839 = vmatpush2.bf16.msra.mxu0 0
    %840 = vmatprep.subr.bf16.mxu0 0
    %841 = vmatpush2.bf16.msra.mxu0 0
    %842 = vmatprep.subr.bf16.mxu0 0
    %843 = vmatpush2.bf16.msra.mxu0 0
    %844 = vmatprep.subr.bf16.mxu0 0
    %845 = vmatpush2.bf16.msra.mxu0 0
    %846 = vmatprep.subr.bf16.mxu0 0
    %847 = vmatpush2.bf16.msra.mxu0 0
    %848 = vmatprep.subr.bf16.mxu0 0
    %849 = vmatpush2.bf16.msra.mxu0 0
    %850 = vmatprep.subr.bf16.mxu0 0
    %851 = vmatpush2.bf16.msra.mxu0 0
    %852 = vmatprep.subr.bf16.mxu0 0
    %853 = vmatpush2.bf16.msra.mxu0 0
    %854 = vmatprep.mubr.bf16.mxu0 0
    %855 = vmatmul.mubr.bf16.gmra.mxu0 %v820
    %v856 = vpop.f32.mrf.mxu0
    %v857 = vadd.f32 %v405, %v856
    %v858 = vpop.f32.mrf.mxu0
    %v859 = vadd.f32 %v409, %v858
    %v860 = vpop.f32.mrf.mxu0
    %v861 = vpop.f32.mrf.mxu0
    %862 = vdwg.mxu0
    %v863 = vld [vmem:[#allocation2 + $0x10] sm:$0xff]
    %v864 = vld [vmem:[#allocation2 + $0x28] sm:$0xff]
    %v865 = vunpack.c.l.bf16 %v863
    %v866 = vadd.f32 %v865, %v857
    %v867 = vxor.u32 %v866, 2147483648
    %v868 = vmul.f32 %v867, 1.442695
    %v869 = vpow.pop %v868
    %v870 = vadd.f32 %v869, 1.0
    %v871 = vrcp.pop %v870
    %v872 = vmul.f32 1.0, %v871
    %874 = vrot.lane.b32.xlu0 %v857, 64
    %v875 = vpop.permute.xlu0 %874
    %v877 = vmul.f32 %v872, %v875
    %879 = vrot.lane.b32.xlu0 %v877, 64
    %v880 = vpop.permute.xlu0 %879
    %v882 = vadd.f32 %v865, %v880
    %v883 = vtanh.pop %v882
    %v884 = vsub.f32 1.0, %v872
    %886 = vrot.lane.b32.xlu0 %v883, 96
    %v887 = vpop.permute.xlu0 %886
    %v889 = vmul.f32 %v884, %v887
    %891 = vrot.lane.b32.xlu0 %v817, 32
    %v892 = vpop.permute.xlu0 %891
    %v894 = vmul.f32 %v872, %v892
    %v895 = vadd.f32 %v889, %v894
    %897 = vset.pattern.permute.xlu0 0
    %898 = vperm.xlu0 %897, %v814
    %v899 = vpop.permute.xlu0 %898
    %v901 = vmul.f32 %v899, %v895
    %v902 = vsub.f32 1.0, %v814
    %904 = vset.pattern.permute.xlu0 0
    %905 = vperm.xlu0 %904, %v902
    %v906 = vpop.permute.xlu0 %905
    %v908 = vmul.f32 %v906, %v817
    %910 = vrot.lane.b32.xlu0 %v908, 32
    %v911 = vpop.permute.xlu0 %910
    %v913 = vadd.f32 %v901, %v911
    %915 = vrot.lane.b32.xlu0 %v913, 96
    %v916 = vpop.permute.xlu0 %915
    %918 = vst.msk [vmem:[#allocation3] sm:$0xff] %vm551, %v916
    %v919 = vunpack.c.l.bf16 %v864
    %v920 = vadd.f32 %v919, %v857
    %v921 = vxor.u32 %v920, 2147483648
    %v922 = vmul.f32 %v921, 1.442695
    %v923 = vpow.pop %v922
    %v924 = vadd.f32 %v923, 1.0
    %v925 = vrcp.pop %v924
    %v926 = vmul.f32 1.0, %v925
    %v928 = vrot.slane %v864, 4
    %v930 = vunpack.c.l.bf16 %v928
    %v931 = vadd.f32 %v930, %v859
    %v932 = vxor.u32 %v931, 2147483648
    %v933 = vmul.f32 %v932, 1.442695
    %v934 = vpow.pop %v933
    %v935 = vadd.f32 %v934, 1.0
    %v936 = vrcp.pop %v935
    %v937 = vmul.f32 1.0, %v936
    %939 = vrot.lane.b32.xlu0 %v859, 64
    %v940 = vpop.permute.xlu0 %939
    %v942 = vmul.f32 %v926, %v940
    %943 = vrot.lane.b32.xlu0 %v864, 96
    %v944 = vpop.permute.xlu0 %943
    %v945 = vrot.slane %v944, 4
    %v947 = vunpack.c.l.bf16 %v945
    %949 = vrot.lane.b32.xlu0 %v942, 32
    %v950 = vpop.permute.xlu0 %949
    %v952 = vadd.f32 %v947, %v950
    %v953 = vtanh.pop %v952
    %v954 = vsub.f32 1.0, %v937
    %v955 = vmul.f32 %v954, %v953
    %956 = vrot.lane.b32.xlu0 %v817, 96
    %v957 = vpop.permute.xlu0 %956
    %v959 = vmul.f32 %v937, %v957
    %v960 = vadd.f32 %v955, %v959
    %962 = vset.pattern.permute.xlu0 0
    %963 = vperm.xlu0 %962, %v816
    %v964 = vpop.permute.xlu0 %963
    %v966 = vmul.f32 %v964, %v960
    %v967 = vsub.f32 1.0, %v816
    %969 = vset.pattern.permute.xlu0 0
    %970 = vperm.xlu0 %969, %v967
    %v971 = vpop.permute.xlu0 %970
    %v973 = vmul.f32 %v971, %v817
    %975 = vrot.lane.b32.xlu0 %v973, 96
    %v976 = vpop.permute.xlu0 %975
    %v978 = vadd.f32 %v966, %v976
    %980 = vrot.lane.b32.xlu0 %v978, 32
    %v981 = vpop.permute.xlu0 %980
    %983 = vst.msk [vmem:[#allocation3] sm:$0xff] %vm617, %v981
    %985 = vrot.lane.b32.xlu0 %v901, 96
    %v986 = vpop.permute.xlu0 %985
    %s988 = scalar_lea.vmem [#allocation4], 16
    %989 = vst.msk [vmem:[%s988] sm:$0xff] %vm551, %v986
    %991 = vrot.lane.b32.xlu0 %v966, 32
    %v992 = vpop.permute.xlu0 %991
    %s994 = scalar_lea.vmem [#allocation4], 40
    %995 = vst.msk [vmem:[%s994] sm:$0xff] %vm617, %v992
    %s996 = scalar_lea.vmem %s0, 24
    %v997 = vld [vmem:[%s996] sm:$0xff]
    %s998 = scalar_lea.vmem %s0, 32
    %v999 = vld [vmem:[%s998] sm:$0xff]
    %v1000 = vld [vmem:[#allocation3] sm:$0xff]
    %v1001 = vpack.c.bf16 %v1000, %v1000
    %v1003 = vsel %vm394, %v1001, 0
    %1005 = vmatprep.subr.bf16.mxu0 0
    %1006 = vmatpush1.bf16.msra.mxu0 0
    %1007 = vmatprep.subr.bf16.mxu0 0
    %1008 = vmatpush1.bf16.msra.mxu0 0
    %1009 = vmatprep.subr.bf16.mxu0 0
    %1010 = vmatpush1.bf16.msra.mxu0 0
    %1011 = vmatprep.subr.bf16.mxu0 0
    %1012 = vmatpush1.bf16.msra.mxu0 0
    %1013 = vmatprep.subr.bf16.mxu0 %v443
    %1014 = vmatpush1.bf16.msra.mxu0 %v442
    %1015 = vmatprep.subr.bf16.mxu0 %v441
    %1016 = vmatpush1.bf16.msra.mxu0 %v440
    %1017 = vmatprep.subr.bf16.mxu0 %v439
    %1018 = vmatpush1.bf16.msra.mxu0 %v438
    %1019 = vmatprep.subr.bf16.mxu0 %v437
    %1020 = vmatpush1.bf16.msra.mxu0 %v436
    %1021 = vmatprep.subr.bf16.mxu0 0
    %1022 = vmatpush2.bf16.msra.mxu0 0
    %1023 = vmatprep.subr.bf16.mxu0 0
    %1024 = vmatpush2.bf16.msra.mxu0 0
    %1025 = vmatprep.subr.bf16.mxu0 0
    %1026 = vmatpush2.bf16.msra.mxu0 0
    %1027 = vmatprep.subr.bf16.mxu0 0
    %1028 = vmatpush2.bf16.msra.mxu0 0
    %1029 = vmatprep.subr.bf16.mxu0 0
    %1030 = vmatpush2.bf16.msra.mxu0 0
    %1031 = vmatprep.subr.bf16.mxu0 0
    %1032 = vmatpush2.bf16.msra.mxu0 0
    %1033 = vmatprep.subr.bf16.mxu0 0
    %1034 = vmatpush2.bf16.msra.mxu0 0
    %1035 = vmatprep.subr.bf16.mxu0 0
    %1036 = vmatpush2.bf16.msra.mxu0 0
    %1037 = vmatprep.mubr.bf16.mxu0 0
    %1038 = vmatmul.mubr.bf16.gmra.mxu0 %v1003
    %v1039 = vpop.f32.mrf.mxu0
    %v1040 = vadd.f32 %v405, %v1039
    %v1041 = vpop.f32.mrf.mxu0
    %v1042 = vadd.f32 %v409, %v1041
    %v1043 = vpop.f32.mrf.mxu0
    %v1044 = vpop.f32.mrf.mxu0
    %1045 = vdwg.mxu0
    %v1046 = vld [vmem:[#allocation2 + $0x18] sm:$0xff]
    %v1047 = vld [vmem:[#allocation2 + $0x20] sm:$0xff]
    %v1048 = vunpack.c.l.bf16 %v1046
    %v1049 = vadd.f32 %v1048, %v1040
    %v1050 = vxor.u32 %v1049, 2147483648
    %v1051 = vmul.f32 %v1050, 1.442695
    %v1052 = vpow.pop %v1051
    %v1053 = vadd.f32 %v1052, 1.0
    %v1054 = vrcp.pop %v1053
    %v1055 = vmul.f32 1.0, %v1054
    %1057 = vrot.lane.b32.xlu0 %v1040, 64
    %v1058 = vpop.permute.xlu0 %1057
    %v1060 = vmul.f32 %v1055, %v1058
    %1062 = vrot.lane.b32.xlu0 %v1060, 64
    %v1063 = vpop.permute.xlu0 %1062
    %v1065 = vadd.f32 %v1048, %v1063
    %v1066 = vtanh.pop %v1065
    %v1067 = vsub.f32 1.0, %v1055
    %1069 = vrot.lane.b32.xlu0 %v1066, 96
    %v1070 = vpop.permute.xlu0 %1069
    %v1072 = vmul.f32 %v1067, %v1070
    %1074 = vrot.lane.b32.xlu0 %v1000, 32
    %v1075 = vpop.permute.xlu0 %1074
    %v1077 = vmul.f32 %v1055, %v1075
    %v1078 = vadd.f32 %v1072, %v1077
    %1080 = vset.pattern.permute.xlu0 0
    %1081 = vperm.xlu0 %1080, %v997
    %v1082 = vpop.permute.xlu0 %1081
    %v1084 = vmul.f32 %v1082, %v1078
    %v1085 = vsub.f32 1.0, %v997
    %1087 = vset.pattern.permute.xlu0 0
    %1088 = vperm.xlu0 %1087, %v1085
    %v1089 = vpop.permute.xlu0 %1088
    %v1091 = vmul.f32 %v1089, %v1000
    %1093 = vrot.lane.b32.xlu0 %v1091, 32
    %v1094 = vpop.permute.xlu0 %1093
    %v1096 = vadd.f32 %v1084, %v1094
    %1098 = vrot.lane.b32.xlu0 %v1096, 96
    %v1099 = vpop.permute.xlu0 %1098
    %1101 = vst.msk [vmem:[#allocation3] sm:$0xff] %vm551, %v1099
    %v1102 = vunpack.c.l.bf16 %v1047
    %v1103 = vadd.f32 %v1102, %v1040
    %v1104 = vxor.u32 %v1103, 2147483648
    %v1105 = vmul.f32 %v1104, 1.442695
    %v1106 = vpow.pop %v1105
    %v1107 = vadd.f32 %v1106, 1.0
    %v1108 = vrcp.pop %v1107
    %v1109 = vmul.f32 1.0, %v1108
    %v1111 = vrot.slane %v1047, 4
    %v1113 = vunpack.c.l.bf16 %v1111
    %v1114 = vadd.f32 %v1113, %v1042
    %v1115 = vxor.u32 %v1114, 2147483648
    %v1116 = vmul.f32 %v1115, 1.442695
    %v1117 = vpow.pop %v1116
    %v1118 = vadd.f32 %v1117, 1.0
    %v1119 = vrcp.pop %v1118
    %v1120 = vmul.f32 1.0, %v1119
    %1122 = vrot.lane.b32.xlu0 %v1042, 64
    %v1123 = vpop.permute.xlu0 %1122
    %v1125 = vmul.f32 %v1109, %v1123
    %1126 = vrot.lane.b32.xlu0 %v1047, 96
    %v1127 = vpop.permute.xlu0 %1126
    %v1128 = vrot.slane %v1127, 4
    %v1130 = vunpack.c.l.bf16 %v1128
    %1132 = vrot.lane.b32.xlu0 %v1125, 32
    %v1133 = vpop.permute.xlu0 %1132
    %v1135 = vadd.f32 %v1130, %v1133
    %v1136 = vtanh.pop %v1135
    %v1137 = vsub.f32 1.0, %v1120
    %v1138 = vmul.f32 %v1137, %v1136
    %1139 = vrot.lane.b32.xlu0 %v1000, 96
    %v1140 = vpop.permute.xlu0 %1139
    %v1142 = vmul.f32 %v1120, %v1140
    %v1143 = vadd.f32 %v1138, %v1142
    %1145 = vset.pattern.permute.xlu0 0
    %1146 = vperm.xlu0 %1145, %v999
    %v1147 = vpop.permute.xlu0 %1146
    %v1149 = vmul.f32 %v1147, %v1143
    %v1150 = vsub.f32 1.0, %v999
    %1152 = vset.pattern.permute.xlu0 0
    %1153 = vperm.xlu0 %1152, %v1150
    %v1154 = vpop.permute.xlu0 %1153
    %v1156 = vmul.f32 %v1154, %v1000
    %1158 = vrot.lane.b32.xlu0 %v1156, 96
    %v1159 = vpop.permute.xlu0 %1158
    %v1161 = vadd.f32 %v1149, %v1159
    %1163 = vrot.lane.b32.xlu0 %v1161, 32
    %v1164 = vpop.permute.xlu0 %1163
    %1166 = vst.msk [vmem:[#allocation3] sm:$0xff] %vm617, %v1164
    %1168 = vrot.lane.b32.xlu0 %v1084, 96
    %v1169 = vpop.permute.xlu0 %1168
    %s1171 = scalar_lea.vmem [#allocation4], 24
    %1172 = vst.msk [vmem:[%s1171] sm:$0xff] %vm551, %v1169
    %1174 = vrot.lane.b32.xlu0 %v1149, 32
    %v1175 = vpop.permute.xlu0 %1174
    %s1177 = scalar_lea.vmem [#allocation4], 32
    %1178 = vst.msk [vmem:[%s1177] sm:$0xff] %vm617, %v1175
    %v1179 = vld [vmem:[%s998] sm:$0xff]
    %v1180 = vld [vmem:[%s996] sm:$0xff]
    %v1181 = vld [vmem:[#allocation3] sm:$0xff]
    %v1182 = vpack.c.bf16 %v1181, %v1181
    %v1184 = vsel %vm394, %v1182, 0
    %1186 = vmatprep.subr.bf16.mxu0 0
    %1187 = vmatpush1.bf16.msra.mxu0 0
    %1188 = vmatprep.subr.bf16.mxu0 0
    %1189 = vmatpush1.bf16.msra.mxu0 0
    %1190 = vmatprep.subr.bf16.mxu0 0
    %1191 = vmatpush1.bf16.msra.mxu0 0
    %1192 = vmatprep.subr.bf16.mxu0 0
    %1193 = vmatpush1.bf16.msra.mxu0 0
    %1194 = vmatprep.subr.bf16.mxu0 %v443
    %1195 = vmatpush1.bf16.msra.mxu0 %v442
    %1196 = vmatprep.subr.bf16.mxu0 %v441
    %1197 = vmatpush1.bf16.msra.mxu0 %v440
    %1198 = vmatprep.subr.bf16.mxu0 %v439
    %1199 = vmatpush1.bf16.msra.mxu0 %v438
    %1200 = vmatprep.subr.bf16.mxu0 %v437
    %1201 = vmatpush1.bf16.msra.mxu0 %v436
    %1202 = vmatprep.subr.bf16.mxu0 0
    %1203 = vmatpush2.bf16.msra.mxu0 0
    %1204 = vmatprep.subr.bf16.mxu0 0
    %1205 = vmatpush2.bf16.msra.mxu0 0
    %1206 = vmatprep.subr.bf16.mxu0 0
    %1207 = vmatpush2.bf16.msra.mxu0 0
    %1208 = vmatprep.subr.bf16.mxu0 0
    %1209 = vmatpush2.bf16.msra.mxu0 0
    %1210 = vmatprep.subr.bf16.mxu0 0
    %1211 = vmatpush2.bf16.msra.mxu0 0
    %1212 = vmatprep.subr.bf16.mxu0 0
    %1213 = vmatpush2.bf16.msra.mxu0 0
    %1214 = vmatprep.subr.bf16.mxu0 0
    %1215 = vmatpush2.bf16.msra.mxu0 0
    %1216 = vmatprep.subr.bf16.mxu0 0
    %1217 = vmatpush2.bf16.msra.mxu0 0
    %1218 = vmatprep.mubr.bf16.mxu0 0
    %1219 = vmatmul.mubr.bf16.gmra.mxu0 %v1184
    %v1220 = vpop.f32.mrf.mxu0
    %v1221 = vadd.f32 %v405, %v1220
    %v1222 = vpop.f32.mrf.mxu0
    %v1223 = vadd.f32 %v409, %v1222
    %v1224 = vpop.f32.mrf.mxu0
    %v1225 = vpop.f32.mrf.mxu0
    %1226 = vdwg.mxu0
    %v1227 = vld [vmem:[#allocation2 + $0x20] sm:$0xff]
    %v1228 = vld [vmem:[#allocation2 + $0x18] sm:$0xff]
    %v1229 = vunpack.c.l.bf16 %v1227
    %v1230 = vadd.f32 %v1229, %v1221
    %v1231 = vxor.u32 %v1230, 2147483648
    %v1232 = vmul.f32 %v1231, 1.442695
    %v1233 = vpow.pop %v1232
    %v1234 = vadd.f32 %v1233, 1.0
    %v1235 = vrcp.pop %v1234
    %v1236 = vmul.f32 1.0, %v1235
    %1238 = vrot.lane.b32.xlu0 %v1221, 64
    %v1239 = vpop.permute.xlu0 %1238
    %v1241 = vmul.f32 %v1236, %v1239
    %1243 = vrot.lane.b32.xlu0 %v1241, 64
    %v1244 = vpop.permute.xlu0 %1243
    %v1246 = vadd.f32 %v1229, %v1244
    %v1247 = vtanh.pop %v1246
    %v1248 = vsub.f32 1.0, %v1236
    %1250 = vrot.lane.b32.xlu0 %v1247, 96
    %v1251 = vpop.permute.xlu0 %1250
    %v1253 = vmul.f32 %v1248, %v1251
    %1255 = vrot.lane.b32.xlu0 %v1181, 32
    %v1256 = vpop.permute.xlu0 %1255
    %v1258 = vmul.f32 %v1236, %v1256
    %v1259 = vadd.f32 %v1253, %v1258
    %1261 = vset.pattern.permute.xlu0 0
    %1262 = vperm.xlu0 %1261, %v1179
    %v1263 = vpop.permute.xlu0 %1262
    %v1265 = vmul.f32 %v1263, %v1259
    %v1266 = vsub.f32 1.0, %v1179
    %1268 = vset.pattern.permute.xlu0 0
    %1269 = vperm.xlu0 %1268, %v1266
    %v1270 = vpop.permute.xlu0 %1269
    %v1272 = vmul.f32 %v1270, %v1181
    %1274 = vrot.lane.b32.xlu0 %v1272, 32
    %v1275 = vpop.permute.xlu0 %1274
    %v1277 = vadd.f32 %v1265, %v1275
    %1279 = vrot.lane.b32.xlu0 %v1277, 96
    %v1280 = vpop.permute.xlu0 %1279
    %1282 = vst.msk [vmem:[#allocation3] sm:$0xff] %vm551, %v1280
    %v1283 = vunpack.c.l.bf16 %v1228
    %v1284 = vadd.f32 %v1283, %v1221
    %v1285 = vxor.u32 %v1284, 2147483648
    %v1286 = vmul.f32 %v1285, 1.442695
    %v1287 = vpow.pop %v1286
    %v1288 = vadd.f32 %v1287, 1.0
    %v1289 = vrcp.pop %v1288
    %v1290 = vmul.f32 1.0, %v1289
    %v1292 = vrot.slane %v1228, 4
    %v1294 = vunpack.c.l.bf16 %v1292
    %v1295 = vadd.f32 %v1294, %v1223
    %v1296 = vxor.u32 %v1295, 2147483648
    %v1297 = vmul.f32 %v1296, 1.442695
    %v1298 = vpow.pop %v1297
    %v1299 = vadd.f32 %v1298, 1.0
    %v1300 = vrcp.pop %v1299
    %v1301 = vmul.f32 1.0, %v1300
    %1303 = vrot.lane.b32.xlu0 %v1223, 64
    %v1304 = vpop.permute.xlu0 %1303
    %v1306 = vmul.f32 %v1290, %v1304
    %1307 = vrot.lane.b32.xlu0 %v1228, 96
    %v1308 = vpop.permute.xlu0 %1307
    %v1309 = vrot.slane %v1308, 4
    %v1311 = vunpack.c.l.bf16 %v1309
    %1313 = vrot.lane.b32.xlu0 %v1306, 32
    %v1314 = vpop.permute.xlu0 %1313
    %v1316 = vadd.f32 %v1311, %v1314
    %v1317 = vtanh.pop %v1316
    %v1318 = vsub.f32 1.0, %v1301
    %v1319 = vmul.f32 %v1318, %v1317
    %1320 = vrot.lane.b32.xlu0 %v1181, 96
    %v1321 = vpop.permute.xlu0 %1320
    %v1323 = vmul.f32 %v1301, %v1321
    %v1324 = vadd.f32 %v1319, %v1323
    %1326 = vset.pattern.permute.xlu0 0
    %1327 = vperm.xlu0 %1326, %v1180
    %v1328 = vpop.permute.xlu0 %1327
    %v1330 = vmul.f32 %v1328, %v1324
    %v1331 = vsub.f32 1.0, %v1180
    %1333 = vset.pattern.permute.xlu0 0
    %1334 = vperm.xlu0 %1333, %v1331
    %v1335 = vpop.permute.xlu0 %1334
    %v1337 = vmul.f32 %v1335, %v1181
    %1339 = vrot.lane.b32.xlu0 %v1337, 96
    %v1340 = vpop.permute.xlu0 %1339
    %v1342 = vadd.f32 %v1330, %v1340
    %1344 = vrot.lane.b32.xlu0 %v1342, 32
    %v1345 = vpop.permute.xlu0 %1344
    %1347 = vst.msk [vmem:[#allocation3] sm:$0xff] %vm617, %v1345
    %1349 = vrot.lane.b32.xlu0 %v1265, 96
    %v1350 = vpop.permute.xlu0 %1349
    %1352 = vst.msk [vmem:[%s1177] sm:$0xff] %vm551, %v1350
    %1354 = vrot.lane.b32.xlu0 %v1330, 32
    %v1355 = vpop.permute.xlu0 %1354
    %1357 = vst.msk [vmem:[%s1171] sm:$0xff] %vm617, %v1355
    %v1358 = vld [vmem:[%s815] sm:$0xff]
    %v1359 = vld [vmem:[%s813] sm:$0xff]
    %v1360 = vld [vmem:[#allocation3] sm:$0xff]
    %v1361 = vpack.c.bf16 %v1360, %v1360
    %v1363 = vsel %vm394, %v1361, 0
    %1365 = vmatprep.subr.bf16.mxu0 0
    %1366 = vmatpush1.bf16.msra.mxu0 0
    %1367 = vmatprep.subr.bf16.mxu0 0
    %1368 = vmatpush1.bf16.msra.mxu0 0
    %1369 = vmatprep.subr.bf16.mxu0 0
    %1370 = vmatpush1.bf16.msra.mxu0 0
    %1371 = vmatprep.subr.bf16.mxu0 0
    %1372 = vmatpush1.bf16.msra.mxu0 0
    %1373 = vmatprep.subr.bf16.mxu0 %v443
    %1374 = vmatpush1.bf16.msra.mxu0 %v442
    %1375 = vmatprep.subr.bf16.mxu0 %v441
    %1376 = vmatpush1.bf16.msra.mxu0 %v440
    %1377 = vmatprep.subr.bf16.mxu0 %v439
    %1378 = vmatpush1.bf16.msra.mxu0 %v438
    %1379 = vmatprep.subr.bf16.mxu0 %v437
    %1380 = vmatpush1.bf16.msra.mxu0 %v436
    %1381 = vmatprep.subr.bf16.mxu0 0
    %1382 = vmatpush2.bf16.msra.mxu0 0
    %1383 = vmatprep.subr.bf16.mxu0 0
    %1384 = vmatpush2.bf16.msra.mxu0 0
    %1385 = vmatprep.subr.bf16.mxu0 0
    %1386 = vmatpush2.bf16.msra.mxu0 0
    %1387 = vmatprep.subr.bf16.mxu0 0
    %1388 = vmatpush2.bf16.msra.mxu0 0
    %1389 = vmatprep.subr.bf16.mxu0 0
    %1390 = vmatpush2.bf16.msra.mxu0 0
    %1391 = vmatprep.subr.bf16.mxu0 0
    %1392 = vmatpush2.bf16.msra.mxu0 0
    %1393 = vmatprep.subr.bf16.mxu0 0
    %1394 = vmatpush2.bf16.msra.mxu0 0
    %1395 = vmatprep.subr.bf16.mxu0 0
    %1396 = vmatpush2.bf16.msra.mxu0 0
    %1397 = vmatprep.mubr.bf16.mxu0 0
    %1398 = vmatmul.mubr.bf16.gmra.mxu0 %v1363
    %v1399 = vpop.f32.mrf.mxu0
    %v1400 = vadd.f32 %v405, %v1399
    %v1401 = vpop.f32.mrf.mxu0
    %v1402 = vadd.f32 %v409, %v1401
    %v1403 = vpop.f32.mrf.mxu0
    %v1404 = vpop.f32.mrf.mxu0
    %1405 = vdwg.mxu0
    %v1406 = vld [vmem:[#allocation2 + $0x28] sm:$0xff]
    %v1407 = vld [vmem:[#allocation2 + $0x10] sm:$0xff]
    %v1408 = vunpack.c.l.bf16 %v1406
    %v1409 = vadd.f32 %v1408, %v1400
    %v1410 = vxor.u32 %v1409, 2147483648
    %v1411 = vmul.f32 %v1410, 1.442695
    %v1412 = vpow.pop %v1411
    %v1413 = vadd.f32 %v1412, 1.0
    %v1414 = vrcp.pop %v1413
    %v1415 = vmul.f32 1.0, %v1414
    %1417 = vrot.lane.b32.xlu0 %v1400, 64
    %v1418 = vpop.permute.xlu0 %1417
    %v1420 = vmul.f32 %v1415, %v1418
    %1422 = vrot.lane.b32.xlu0 %v1420, 64
    %v1423 = vpop.permute.xlu0 %1422
    %v1425 = vadd.f32 %v1408, %v1423
    %v1426 = vtanh.pop %v1425
    %v1427 = vsub.f32 1.0, %v1415
    %1429 = vrot.lane.b32.xlu0 %v1426, 96
    %v1430 = vpop.permute.xlu0 %1429
    %v1432 = vmul.f32 %v1427, %v1430
    %1434 = vrot.lane.b32.xlu0 %v1360, 32
    %v1435 = vpop.permute.xlu0 %1434
    %v1437 = vmul.f32 %v1415, %v1435
    %v1438 = vadd.f32 %v1432, %v1437
    %1440 = vset.pattern.permute.xlu0 0
    %1441 = vperm.xlu0 %1440, %v1358
    %v1442 = vpop.permute.xlu0 %1441
    %v1444 = vmul.f32 %v1442, %v1438
    %v1445 = vsub.f32 1.0, %v1358
    %1447 = vset.pattern.permute.xlu0 0
    %1448 = vperm.xlu0 %1447, %v1445
    %v1449 = vpop.permute.xlu0 %1448
    %v1451 = vmul.f32 %v1449, %v1360
    %1453 = vrot.lane.b32.xlu0 %v1451, 32
    %v1454 = vpop.permute.xlu0 %1453
    %v1456 = vadd.f32 %v1444, %v1454
    %1458 = vrot.lane.b32.xlu0 %v1456, 96
    %v1459 = vpop.permute.xlu0 %1458
    %1461 = vst.msk [vmem:[#allocation3] sm:$0xff] %vm551, %v1459
    %v1462 = vunpack.c.l.bf16 %v1407
    %v1463 = vadd.f32 %v1462, %v1400
    %v1464 = vxor.u32 %v1463, 2147483648
    %v1465 = vmul.f32 %v1464, 1.442695
    %v1466 = vpow.pop %v1465
    %v1467 = vadd.f32 %v1466, 1.0
    %v1468 = vrcp.pop %v1467
    %v1469 = vmul.f32 1.0, %v1468
    %v1471 = vrot.slane %v1407, 4
    %v1473 = vunpack.c.l.bf16 %v1471
    %v1474 = vadd.f32 %v1473, %v1402
    %v1475 = vxor.u32 %v1474, 2147483648
    %v1476 = vmul.f32 %v1475, 1.442695
    %v1477 = vpow.pop %v1476
    %v1478 = vadd.f32 %v1477, 1.0
    %v1479 = vrcp.pop %v1478
    %v1480 = vmul.f32 1.0, %v1479
    %1482 = vrot.lane.b32.xlu0 %v1402, 64
    %v1483 = vpop.permute.xlu0 %1482
    %v1485 = vmul.f32 %v1469, %v1483
    %1486 = vrot.lane.b32.xlu0 %v1407, 96
    %v1487 = vpop.permute.xlu0 %1486
    %v1488 = vrot.slane %v1487, 4
    %v1490 = vunpack.c.l.bf16 %v1488
    %1492 = vrot.lane.b32.xlu0 %v1485, 32
    %v1493 = vpop.permute.xlu0 %1492
    %v1495 = vadd.f32 %v1490, %v1493
    %v1496 = vtanh.pop %v1495
    %v1497 = vsub.f32 1.0, %v1480
    %v1498 = vmul.f32 %v1497, %v1496
    %1499 = vrot.lane.b32.xlu0 %v1360, 96
    %v1500 = vpop.permute.xlu0 %1499
    %v1502 = vmul.f32 %v1480, %v1500
    %v1503 = vadd.f32 %v1498, %v1502
    %1505 = vset.pattern.permute.xlu0 0
    %1506 = vperm.xlu0 %1505, %v1359
    %v1507 = vpop.permute.xlu0 %1506
    %v1509 = vmul.f32 %v1507, %v1503
    %v1510 = vsub.f32 1.0, %v1359
    %1512 = vset.pattern.permute.xlu0 0
    %1513 = vperm.xlu0 %1512, %v1510
    %v1514 = vpop.permute.xlu0 %1513
    %v1516 = vmul.f32 %v1514, %v1360
    %1518 = vrot.lane.b32.xlu0 %v1516, 96
    %v1519 = vpop.permute.xlu0 %1518
    %v1521 = vadd.f32 %v1509, %v1519
    %1523 = vrot.lane.b32.xlu0 %v1521, 32
    %v1524 = vpop.permute.xlu0 %1523
    %1526 = vst.msk [vmem:[#allocation3] sm:$0xff] %vm617, %v1524
    %1528 = vrot.lane.b32.xlu0 %v1444, 96
    %v1529 = vpop.permute.xlu0 %1528
    %1531 = vst.msk [vmem:[%s994] sm:$0xff] %vm551, %v1529
    %1533 = vrot.lane.b32.xlu0 %v1509, 32
    %v1534 = vpop.permute.xlu0 %1533
    %1536 = vst.msk [vmem:[%s988] sm:$0xff] %vm617, %v1534
    %v1537 = vld [vmem:[%s632] sm:$0xff]
    %v1538 = vld [vmem:[%s630] sm:$0xff]
    %v1539 = vld [vmem:[#allocation3] sm:$0xff]
    %v1540 = vpack.c.bf16 %v1539, %v1539
    %v1542 = vsel %vm394, %v1540, 0
    %1544 = vmatprep.subr.bf16.mxu0 0
    %1545 = vmatpush1.bf16.msra.mxu0 0
    %1546 = vmatprep.subr.bf16.mxu0 0
    %1547 = vmatpush1.bf16.msra.mxu0 0
    %1548 = vmatprep.subr.bf16.mxu0 0
    %1549 = vmatpush1.bf16.msra.mxu0 0
    %1550 = vmatprep.subr.bf16.mxu0 0
    %1551 = vmatpush1.bf16.msra.mxu0 0
    %1552 = vmatprep.subr.bf16.mxu0 %v443
    %1553 = vmatpush1.bf16.msra.mxu0 %v442
    %1554 = vmatprep.subr.bf16.mxu0 %v441
    %1555 = vmatpush1.bf16.msra.mxu0 %v440
    %1556 = vmatprep.subr.bf16.mxu0 %v439
    %1557 = vmatpush1.bf16.msra.mxu0 %v438
    %1558 = vmatprep.subr.bf16.mxu0 %v437
    %1559 = vmatpush1.bf16.msra.mxu0 %v436
    %1560 = vmatprep.subr.bf16.mxu0 0
    %1561 = vmatpush2.bf16.msra.mxu0 0
    %1562 = vmatprep.subr.bf16.mxu0 0
    %1563 = vmatpush2.bf16.msra.mxu0 0
    %1564 = vmatprep.subr.bf16.mxu0 0
    %1565 = vmatpush2.bf16.msra.mxu0 0
    %1566 = vmatprep.subr.bf16.mxu0 0
    %1567 = vmatpush2.bf16.msra.mxu0 0
    %1568 = vmatprep.subr.bf16.mxu0 0
    %1569 = vmatpush2.bf16.msra.mxu0 0
    %1570 = vmatprep.subr.bf16.mxu0 0
    %1571 = vmatpush2.bf16.msra.mxu0 0
    %1572 = vmatprep.subr.bf16.mxu0 0
    %1573 = vmatpush2.bf16.msra.mxu0 0
    %1574 = vmatprep.subr.bf16.mxu0 0
    %1575 = vmatpush2.bf16.msra.mxu0 0
    %1576 = vmatprep.mubr.bf16.mxu0 0
    %1577 = vmatmul.mubr.bf16.gmra.mxu0 %v1542
    %v1578 = vpop.f32.mrf.mxu0
    %v1579 = vadd.f32 %v405, %v1578
    %v1580 = vpop.f32.mrf.mxu0
    %v1581 = vadd.f32 %v409, %v1580
    %v1582 = vpop.f32.mrf.mxu0
    %v1583 = vpop.f32.mrf.mxu0
    %1584 = vdwg.mxu0
    %v1585 = vld [vmem:[#allocation2 + $0x30] sm:$0xff]
    %v1586 = vld [vmem:[#allocation2 + $0x8] sm:$0xff]
    %v1587 = vunpack.c.l.bf16 %v1585
    %v1588 = vadd.f32 %v1587, %v1579
    %v1589 = vxor.u32 %v1588, 2147483648
    %v1590 = vmul.f32 %v1589, 1.442695
    %v1591 = vpow.pop %v1590
    %v1592 = vadd.f32 %v1591, 1.0
    %v1593 = vrcp.pop %v1592
    %v1594 = vmul.f32 1.0, %v1593
    %1596 = vrot.lane.b32.xlu0 %v1579, 64
    %v1597 = vpop.permute.xlu0 %1596
    %v1599 = vmul.f32 %v1594, %v1597
    %1601 = vrot.lane.b32.xlu0 %v1599, 64
    %v1602 = vpop.permute.xlu0 %1601
    %v1604 = vadd.f32 %v1587, %v1602
    %v1605 = vtanh.pop %v1604
    %v1606 = vsub.f32 1.0, %v1594
    %1608 = vrot.lane.b32.xlu0 %v1605, 96
    %v1609 = vpop.permute.xlu0 %1608
    %v1611 = vmul.f32 %v1606, %v1609
    %1613 = vrot.lane.b32.xlu0 %v1539, 32
    %v1614 = vpop.permute.xlu0 %1613
    %v1616 = vmul.f32 %v1594, %v1614
    %v1617 = vadd.f32 %v1611, %v1616
    %1619 = vset.pattern.permute.xlu0 0
    %1620 = vperm.xlu0 %1619, %v1537
    %v1621 = vpop.permute.xlu0 %1620
    %v1623 = vmul.f32 %v1621, %v1617
    %v1624 = vsub.f32 1.0, %v1537
    %1626 = vset.pattern.permute.xlu0 0
    %1627 = vperm.xlu0 %1626, %v1624
    %v1628 = vpop.permute.xlu0 %1627
    %v1630 = vmul.f32 %v1628, %v1539
    %1632 = vrot.lane.b32.xlu0 %v1630, 32
    %v1633 = vpop.permute.xlu0 %1632
    %v1635 = vadd.f32 %v1623, %v1633
    %1637 = vrot.lane.b32.xlu0 %v1635, 96
    %v1638 = vpop.permute.xlu0 %1637
    %1640 = vst.msk [vmem:[#allocation3] sm:$0xff] %vm551, %v1638
    %v1641 = vunpack.c.l.bf16 %v1586
    %v1642 = vadd.f32 %v1641, %v1579
    %v1643 = vxor.u32 %v1642, 2147483648
    %v1644 = vmul.f32 %v1643, 1.442695
    %v1645 = vpow.pop %v1644
    %v1646 = vadd.f32 %v1645, 1.0
    %v1647 = vrcp.pop %v1646
    %v1648 = vmul.f32 1.0, %v1647
    %v1650 = vrot.slane %v1586, 4
    %v1652 = vunpack.c.l.bf16 %v1650
    %v1653 = vadd.f32 %v1652, %v1581
    %v1654 = vxor.u32 %v1653, 2147483648
    %v1655 = vmul.f32 %v1654, 1.442695
    %v1656 = vpow.pop %v1655
    %v1657 = vadd.f32 %v1656, 1.0
    %v1658 = vrcp.pop %v1657
    %v1659 = vmul.f32 1.0, %v1658
    %1661 = vrot.lane.b32.xlu0 %v1581, 64
    %v1662 = vpop.permute.xlu0 %1661
    %v1664 = vmul.f32 %v1648, %v1662
    %1665 = vrot.lane.b32.xlu0 %v1586, 96
    %v1666 = vpop.permute.xlu0 %1665
    %v1667 = vrot.slane %v1666, 4
    %v1669 = vunpack.c.l.bf16 %v1667
    %1671 = vrot.lane.b32.xlu0 %v1664, 32
    %v1672 = vpop.permute.xlu0 %1671
    %v1674 = vadd.f32 %v1669, %v1672
    %v1675 = vtanh.pop %v1674
    %v1676 = vsub.f32 1.0, %v1659
    %v1677 = vmul.f32 %v1676, %v1675
    %1678 = vrot.lane.b32.xlu0 %v1539, 96
    %v1679 = vpop.permute.xlu0 %1678
    %v1681 = vmul.f32 %v1659, %v1679
    %v1682 = vadd.f32 %v1677, %v1681
    %1684 = vset.pattern.permute.xlu0 0
    %1685 = vperm.xlu0 %1684, %v1538
    %v1686 = vpop.permute.xlu0 %1685
    %v1688 = vmul.f32 %v1686, %v1682
    %v1689 = vsub.f32 1.0, %v1538
    %1691 = vset.pattern.permute.xlu0 0
    %1692 = vperm.xlu0 %1691, %v1689
    %v1693 = vpop.permute.xlu0 %1692
    %v1695 = vmul.f32 %v1693, %v1539
    %1697 = vrot.lane.b32.xlu0 %v1695, 96
    %v1698 = vpop.permute.xlu0 %1697
    %v1700 = vadd.f32 %v1688, %v1698
    %1702 = vrot.lane.b32.xlu0 %v1700, 32
    %v1703 = vpop.permute.xlu0 %1702
    %1705 = vst.msk [vmem:[#allocation3] sm:$0xff] %vm617, %v1703
    %1707 = vrot.lane.b32.xlu0 %v1623, 96
    %v1708 = vpop.permute.xlu0 %1707
    %1710 = vst.msk [vmem:[%s811] sm:$0xff] %vm551, %v1708
    %1712 = vrot.lane.b32.xlu0 %v1688, 32
    %v1713 = vpop.permute.xlu0 %1712
    %1715 = vst.msk [vmem:[%s805] sm:$0xff] %vm617, %v1713
    %v1716 = vld [vmem:[%s397] sm:$0xff]
    %v1717 = vld [vmem:[%s0] sm:$0xff]
    %v1718 = vld [vmem:[#allocation3] sm:$0xff]
    %v1719 = vpack.c.bf16 %v1718, %v1718
    %v1721 = vsel %vm394, %v1719, 0
    %1723 = vmatprep.subr.bf16.mxu0 0
    %1724 = vmatpush1.bf16.msra.mxu0 0
    %1725 = vmatprep.subr.bf16.mxu0 0
    %1726 = vmatpush1.bf16.msra.mxu0 0
    %1727 = vmatprep.subr.bf16.mxu0 0
    %1728 = vmatpush1.bf16.msra.mxu0 0
    %1729 = vmatprep.subr.bf16.mxu0 0
    %1730 = vmatpush1.bf16.msra.mxu0 0
    %1731 = vmatprep.subr.bf16.mxu0 %v443
    %1732 = vmatpush1.bf16.msra.mxu0 %v442
    %1733 = vmatprep.subr.bf16.mxu0 %v441
    %1734 = vmatpush1.bf16.msra.mxu0 %v440
    %1735 = vmatprep.subr.bf16.mxu0 %v439
    %1736 = vmatpush1.bf16.msra.mxu0 %v438
    %1737 = vmatprep.subr.bf16.mxu0 %v437
    %1738 = vmatpush1.bf16.msra.mxu0 %v436
    %1739 = vmatprep.subr.bf16.mxu0 0
    %1740 = vmatpush2.bf16.msra.mxu0 0
    %1741 = vmatprep.subr.bf16.mxu0 0
    %1742 = vmatpush2.bf16.msra.mxu0 0
    %1743 = vmatprep.subr.bf16.mxu0 0
    %1744 = vmatpush2.bf16.msra.mxu0 0
    %1745 = vmatprep.subr.bf16.mxu0 0
    %1746 = vmatpush2.bf16.msra.mxu0 0
    %1747 = vmatprep.subr.bf16.mxu0 0
    %1748 = vmatpush2.bf16.msra.mxu0 0
    %1749 = vmatprep.subr.bf16.mxu0 0
    %1750 = vmatpush2.bf16.msra.mxu0 0
    %1751 = vmatprep.subr.bf16.mxu0 0
    %1752 = vmatpush2.bf16.msra.mxu0 0
    %1753 = vmatprep.subr.bf16.mxu0 0
    %1754 = vmatpush2.bf16.msra.mxu0 0
    %1755 = vmatprep.mubr.bf16.mxu0 0
    %1756 = vmatmul.mubr.bf16.gmra.mxu0 %v1721
    %v1757 = vpop.f32.mrf.mxu0
    %v1758 = vadd.f32 %v405, %v1757
    %v1759 = vpop.f32.mrf.mxu0
    %v1760 = vadd.f32 %v409, %v1759
    %v1761 = vpop.f32.mrf.mxu0
    %v1762 = vpop.f32.mrf.mxu0
    %1763 = vdwg.mxu0
    %v1764 = vld [vmem:[#allocation2 + $0x38] sm:$0xff]
    %v1765 = vld [vmem:[#allocation2] sm:$0xff]
    %v1766 = vunpack.c.l.bf16 %v1764
    %v1767 = vadd.f32 %v1766, %v1758
    %v1768 = vxor.u32 %v1767, 2147483648
    %v1769 = vmul.f32 %v1768, 1.442695
    %v1770 = vpow.pop %v1769
    %v1771 = vadd.f32 %v1770, 1.0
    %v1772 = vrcp.pop %v1771
    %v1773 = vmul.f32 1.0, %v1772
    %1775 = vrot.lane.b32.xlu0 %v1758, 64
    %v1776 = vpop.permute.xlu0 %1775
    %v1778 = vmul.f32 %v1773, %v1776
    %1780 = vrot.lane.b32.xlu0 %v1778, 64
    %v1781 = vpop.permute.xlu0 %1780
    %v1783 = vadd.f32 %v1766, %v1781
    %v1784 = vtanh.pop %v1783
    %v1785 = vsub.f32 1.0, %v1773
    %1787 = vrot.lane.b32.xlu0 %v1784, 96
    %v1788 = vpop.permute.xlu0 %1787
    %v1790 = vmul.f32 %v1785, %v1788
    %1792 = vrot.lane.b32.xlu0 %v1718, 32
    %v1793 = vpop.permute.xlu0 %1792
    %v1795 = vmul.f32 %v1773, %v1793
    %v1796 = vadd.f32 %v1790, %v1795
    %1798 = vset.pattern.permute.xlu0 0
    %1799 = vperm.xlu0 %1798, %v1716
    %v1800 = vpop.permute.xlu0 %1799
    %v1802 = vmul.f32 %v1800, %v1796
    %v1803 = vsub.f32 1.0, %v1716
    %1805 = vset.pattern.permute.xlu0 0
    %1806 = vperm.xlu0 %1805, %v1803
    %v1807 = vpop.permute.xlu0 %1806
    %v1809 = vmul.f32 %v1807, %v1718
    %1811 = vrot.lane.b32.xlu0 %v1809, 32
    %v1812 = vpop.permute.xlu0 %1811
    %v1814 = vadd.f32 %v1802, %v1812
    %1816 = vrot.lane.b32.xlu0 %v1814, 96
    %v1817 = vpop.permute.xlu0 %1816
    %1819 = vst.msk [vmem:[#allocation3] sm:$0xff] %vm551, %v1817
    %v1820 = vunpack.c.l.bf16 %v1765
    %v1821 = vadd.f32 %v1820, %v1758
    %v1822 = vxor.u32 %v1821, 2147483648
    %v1823 = vmul.f32 %v1822, 1.442695
    %v1824 = vpow.pop %v1823
    %v1825 = vadd.f32 %v1824, 1.0
    %v1826 = vrcp.pop %v1825
    %v1827 = vmul.f32 1.0, %v1826
    %v1829 = vrot.slane %v1765, 4
    %v1831 = vunpack.c.l.bf16 %v1829
    %v1832 = vadd.f32 %v1831, %v1760
    %v1833 = vxor.u32 %v1832, 2147483648
    %v1834 = vmul.f32 %v1833, 1.442695
    %v1835 = vpow.pop %v1834
    %v1836 = vadd.f32 %v1835, 1.0
    %v1837 = vrcp.pop %v1836
    %v1838 = vmul.f32 1.0, %v1837
    %1840 = vrot.lane.b32.xlu0 %v1760, 64
    %v1841 = vpop.permute.xlu0 %1840
    %v1843 = vmul.f32 %v1827, %v1841
    %1844 = vrot.lane.b32.xlu0 %v1765, 96
    %v1845 = vpop.permute.xlu0 %1844
    %v1846 = vrot.slane %v1845, 4
    %v1848 = vunpack.c.l.bf16 %v1846
    %1850 = vrot.lane.b32.xlu0 %v1843, 32
    %v1851 = vpop.permute.xlu0 %1850
    %v1853 = vadd.f32 %v1848, %v1851
    %v1854 = vtanh.pop %v1853
    %v1855 = vsub.f32 1.0, %v1838
    %v1856 = vmul.f32 %v1855, %v1854
    %1857 = vrot.lane.b32.xlu0 %v1718, 96
    %v1858 = vpop.permute.xlu0 %1857
    %v1860 = vmul.f32 %v1838, %v1858
    %v1861 = vadd.f32 %v1856, %v1860
    %1863 = vset.pattern.permute.xlu0 0
    %1864 = vperm.xlu0 %1863, %v1717
    %v1865 = vpop.permute.xlu0 %1864
    %v1867 = vmul.f32 %v1865, %v1861
    %v1868 = vsub.f32 1.0, %v1717
    %1870 = vset.pattern.permute.xlu0 0
    %1871 = vperm.xlu0 %1870, %v1868
    %v1872 = vpop.permute.xlu0 %1871
    %v1874 = vmul.f32 %v1872, %v1718
    %1876 = vrot.lane.b32.xlu0 %v1874, 96
    %v1877 = vpop.permute.xlu0 %1876
    %v1879 = vadd.f32 %v1867, %v1877
    %1881 = vrot.lane.b32.xlu0 %v1879, 32
    %v1882 = vpop.permute.xlu0 %1881
    %1884 = vst.msk [vmem:[#allocation3] sm:$0xff] %vm617, %v1882
    %1886 = vrot.lane.b32.xlu0 %v1802, 96
    %v1887 = vpop.permute.xlu0 %1886
    %1889 = vst.msk [vmem:[%s628] sm:$0xff] %vm551, %v1887
    %1891 = vrot.lane.b32.xlu0 %v1867, 32
    %v1892 = vpop.permute.xlu0 %1891
    %1894 = vst.msk [vmem:[#allocation4] sm:$0xff] %vm617, %v1892
    %v1895 = vld [vmem:[#allocation3] sm:$0xff]
    %1896 = vst.msk [vmem:[#allocation6] sm:$0xff] %vm551, %v1895
    %1898 = vrot.lane.b32.xlu0 %v1895, 96
    %v1899 = vpop.permute.xlu0 %1898
    %s1901 = scalar_lea.vmem [#allocation6], 8
    %1902 = vst.msk [vmem:[%s1901] sm:$0xff] %vm551, %v1899
    // Predicated region
    $region34: #{tpu_custom_call.1} parent=1 // pred_check
      _
    $region35: #{tpu_custom_call.1} parent=1 // pred_check_branch
      %1904 = sbr.rel (0) target = $region37
    $region36: #{tpu_custom_call.1} parent=1 // pred_region
      %s1906 = ssub.s32 1024, 1024
      %1907 = vsyncadd [#allocation5], %s1906
      %s1908 = sshll.u32 [#allocation4], 4
      %s1909 = int_to_ptr.vmem [resolvable:$true] %s1908
      %1914 = dma.vmem_to_hbm [thread:$0]  %s1909, 1024, %s8, [#allocation5], 128, 128, 8
    $region37: #{tpu_custom_call.1} parent=1 // pred_fallthru
      _
    // Predicated region
    $region38: #{tpu_custom_call.1} parent=1 // pred_check
      _
    $region39: #{tpu_custom_call.1} parent=1 // pred_check_branch
      %1916 = sbr.rel (0) target = $region41
    $region40: #{tpu_custom_call.1} parent=1 // pred_region
      %s1918 = ssub.s32 256, 256
      %1919 = vsyncadd [#allocation7], %s1918
      %s1920 = sshll.u32 [#allocation6], 4
      %s1921 = int_to_ptr.vmem [resolvable:$true] %s1920
      %1926 = dma.vmem_to_hbm [thread:$0]  %s1921, 256, %s9, [#allocation7], 128, 128, 8
    $region41: #{tpu_custom_call.1} parent=1 // pred_fallthru
      _
    // Predicated region
    $region42: #{tpu_custom_call.1} parent=1 // pred_check
      _
    $region43: #{tpu_custom_call.1} parent=1 // pred_check_branch
      %1928 = sbr.rel (0) target = $region45
    $region44: #{tpu_custom_call.1} parent=1 // pred_region
      %1929 = dma.done [#allocation5], 1024
    $region45: #{tpu_custom_call.1} parent=1 // pred_fallthru
      _
    // Predicated region
    $region46: #{tpu_custom_call.1} parent=1 // pred_check
      _
    $region47: #{tpu_custom_call.1} parent=1 // pred_check_branch
      %1931 = sbr.rel (0) target = $region49
    $region48: #{tpu_custom_call.1} parent=1 // pred_region
      %1932 = dma.done [#allocation7], 256
    $region49: #{tpu_custom_call.1} parent=1 // pred_fallthru
      _
    %1933 = vsyncpa [#allocation5], 1
    %1934 = vsyncpa [#allocation7], 1

</llo_original>
